<compile_context>
chip_gen: v6e
topology: v6e:2x2x1
jax: 0.10.0
libtpu: 0.0.40
codegen_flags: <defaults>
</compile_context>

<pallas_src>
import numpy as np
import jax
import jax.numpy as jnp
from jax.experimental import pallas as pl
from jax.experimental.pallas import tpu as pltpu

NUM_CLASSES = 9
BN_EPS = 1e-5


# ----------------------------------------------------------------------------
# Host-side helpers (static shapes only)
# ----------------------------------------------------------------------------
def _interp_matrix(out_size, in_size):
    """PyTorch bilinear (align_corners=False) interpolation matrix A: out = A @ in."""
    scale = in_size / out_size
    dst = np.arange(out_size)
    src = np.maximum((dst + 0.5) * scale - 0.5, 0.0)
    i0 = np.minimum(np.floor(src).astype(np.int64), in_size - 1)
    i1 = np.minimum(i0 + 1, in_size - 1)
    w1 = (src - i0).astype(np.float32)
    w0 = (1.0 - w1).astype(np.float32)
    A = np.zeros((out_size, in_size), dtype=np.float32)
    A[dst, i0] += w0
    A[dst, i1] += w1
    return A


def _upsample_matrix(ho, hs, wo, ws):
    """Dense (Hs*Ws, Ho*Wo) matrix M with vec(Ah @ Y @ Aw^T) = vec(Y) @ M."""
    Ah = _interp_matrix(ho, hs)                       # (Ho, Hs)
    Aw = _interp_matrix(wo, ws)                       # (Wo, Ws)
    M = np.einsum("oh,qw->hwoq", Ah, Aw).reshape(hs * ws, ho * wo)
    return jnp.asarray(M, jnp.float32)


# ----------------------------------------------------------------------------
# Fused kernel: side convs + ReLU + (folded) BN + bilinear upsample + fusion
# ----------------------------------------------------------------------------
def _edge_dnn_kernel(x2_ref, x3_ref, x4_ref, x5_ref,
                     w2_ref, b2_ref, w3_ref, b3_ref, w4_ref, b4_ref,
                     w5_ref, b5_ref,
                     m2_ref, m3_ref, m4_ref, m5_ref,
                     fw0_ref, fw1_ref, fw2_ref, fw3_ref, fb_ref,
                     o_ref):
    """Whole EdgeDNN forward for one batch element (channels-first slabs)."""

    def side_c1(x_ref, w_ref, b_ref, m_ref):
        # 1x1 conv with Cout == 1 (BN pre-folded): VPU multiply + sublane
        # reduce (keeps the tiny conv off the MXU), ReLU, then bilinear
        # upsample as a single lane-dense MXU matmul.
        x = x_ref[0]                                            # (Cin, Hs*Ws)
        y = jnp.sum(x * w_ref[...], axis=0, keepdims=True)      # (1, Hs*Ws)
        y = jnp.maximum(y + b_ref[...], 0.0)                    # ReLU
        return jnp.dot(y, m_ref[...],
                       preferred_element_type=jnp.float32)      # (1, Ho*Wo)

    z2 = side_c1(x2_ref, w2_ref, b2_ref, m2_ref)
    z3 = side_c1(x3_ref, w3_ref, b3_ref, m3_ref)
    z4 = side_c1(x4_ref, w4_ref, b4_ref, m4_ref)

    # side5: Cout == num_classes -> MXU matmul for the conv as well.
    x5 = x5_ref[0]                                              # (C5, H5*W5)
    y5 = jnp.dot(w5_ref[...], x5,
                 preferred_element_type=jnp.float32)            # (K, H5*W5)
    y5 = jnp.maximum(y5 + b5_ref[...], 0.0)
    z5 = jnp.dot(y5, m5_ref[...],
                 preferred_element_type=jnp.float32)            # (K, Ho*Wo)

    # Fused interleaved _shared_concat + grouped 1x1 conv (groups == K):
    #   out[c] = w[c,0]*side5[c] + w[c,1]*side2 + w[c,2]*side3 + w[c,3]*side4 + b[c]
    o_ref[0] = (z5 * fw0_ref[...]
                + z2 * fw1_ref[...]
                + z3 * fw2_ref[...]
                + z4 * fw3_ref[...]
                + fb_ref[...])


# ----------------------------------------------------------------------------
# Parameters & forward
# ----------------------------------------------------------------------------
def init_params(key, in_planes, num_classes=NUM_CLASSES):
    """in_planes given in the torch-module convention (will be reversed)."""
    in_planes = list(reversed(in_planes))       # [side2, side3, side4, side5]
    couts = [1, 1, 1, num_classes]
    names = ["side2", "side3", "side4", "side5"]
    params = {}
    for name, cin, cout in zip(names, in_planes, couts):
        key, sub = jax.random.split(key)
        bound = float(np.sqrt(3.0 / cin))       # c2_xavier_fill (kaiming_uniform a=1)
        w = jax.random.uniform(sub, (cout, cin), jnp.float32, -bound, bound)
        b = jnp.zeros((cout,), jnp.float32)     # c2_xavier_fill zeros bias
        params[name] = {"w": w, "b": b}
    # ce_fusion: Conv2d(4*K, K, kernel_size=1, groups=K) -> weight (K, 4), bias (K,)
    key, kw, kb = jax.random.split(key, 3)
    fb_bound = float(np.sqrt(1.0 / 4.0))
    params["fusion_w"] = jax.random.uniform(kw, (num_classes, 4), jnp.float32,
                                            -fb_bound, fb_bound)
    params["fusion_b"] = jax.random.uniform(kb, (num_classes,), jnp.float32,
                                            -fb_bound, fb_bound)
    return params


def edge_dnn_forward(intermediate_result, params, num_classes=NUM_CLASSES):
    x2, x3, x4, x5 = (intermediate_result[0], intermediate_result[1],
                      intermediate_result[2], intermediate_result[-1])
    N, C2, H2, W2 = x2.shape
    _, C3, H3, W3 = x3.shape
    _, C4, H4, W4 = x4.shape
    _, C5, H5, W5 = x5.shape
    K = num_classes
    Ho, Wo = H2 * 2, W2 * 2
    assert (H3 * 4, W3 * 4) == (Ho, Wo)
    assert (H4 * 8, W4 * 8) == (Ho, Wo)
    assert (H5 * 16, W5 * 16) == (Ho, Wo)

    # Fold eval-mode BN (gamma=1, beta=0, mean=0, var=1) into conv weights/bias.
    # Valid because scale > 0 and ReLU is positively homogeneous; shift == 0.
    bn_scale = float(1.0 / np.sqrt(1.0 + BN_EPS))

    def fold(name):
        return params[name]["w"] * bn_scale, params[name]["b"] * bn_scale

    w2r, b2r = fold("side2")
    w3r, b3r = fold("side3")
    w4r, b4r = fold("side4")
    w5r, b5r = fold("side5")

    # Channels-first operand shapes (Cout==1 weights as column vectors).
    w2v, b2v = w2r.reshape(C2, 1), b2r.reshape(1, 1)
    w3v, b3v = w3r.reshape(C3, 1), b3r.reshape(1, 1)
    w4v, b4v = w4r.reshape(C4, 1), b4r.reshape(1, 1)
    w5v, b5v = w5r, b5r.reshape(K, 1)               # (K, C5), (K, 1)

    fw = params["fusion_w"]
    fwc0, fwc1, fwc2, fwc3 = (fw[:, 0:1], fw[:, 1:2], fw[:, 2:3], fw[:, 3:4])
    fbv = params["fusion_b"].reshape(K, 1)

    # Flatten spatial dims (free reshape on contiguous NCHW).
    x2f = x2.reshape(N, C2, H2 * W2)
    x3f = x3.reshape(N, C3, H3 * W3)
    x4f = x4.reshape(N, C4, H4 * W4)
    x5f = x5.reshape(N, C5, H5 * W5)

    # Dense Kronecker interpolation matrices (host, static shapes).
    m2 = _upsample_matrix(Ho, H2, Wo, W2)           # (H2*W2, Ho*Wo)
    m3 = _upsample_matrix(Ho, H3, Wo, W3)
    m4 = _upsample_matrix(Ho, H4, Wo, W4)
    m5 = _upsample_matrix(Ho, H5, Wo, W5)

    xmap = lambda n: (n, 0, 0)
    pmap = lambda n: (0, 0)

    out = pl.pallas_call(
        _edge_dnn_kernel,
        out_shape=jax.ShapeDtypeStruct((N, K, Ho * Wo), jnp.float32),
        grid=(N,),
        in_specs=[
            pl.BlockSpec((1, C2, H2 * W2), xmap),
            pl.BlockSpec((1, C3, H3 * W3), xmap),
            pl.BlockSpec((1, C4, H4 * W4), xmap),
            pl.BlockSpec((1, C5, H5 * W5), xmap),
            pl.BlockSpec((C2, 1), pmap),
            pl.BlockSpec((1, 1), pmap),
            pl.BlockSpec((C3, 1), pmap),
            pl.BlockSpec((1, 1), pmap),
            pl.BlockSpec((C4, 1), pmap),
            pl.BlockSpec((1, 1), pmap),
            pl.BlockSpec((K, C5), pmap),
            pl.BlockSpec((K, 1), pmap),
            pl.BlockSpec((H2 * W2, Ho * Wo), pmap),
            pl.BlockSpec((H3 * W3, Ho * Wo), pmap),
            pl.BlockSpec((H4 * W4, Ho * Wo), pmap),
            pl.BlockSpec((H5 * W5, Ho * Wo), pmap),
            pl.BlockSpec((K, 1), pmap),
            pl.BlockSpec((K, 1), pmap),
            pl.BlockSpec((K, 1), pmap),
            pl.BlockSpec((K, 1), pmap),
            pl.BlockSpec((K, 1), pmap),
        ],
        out_specs=pl.BlockSpec((1, K, Ho * Wo), xmap),
        compiler_params=pltpu.CompilerParams(
            dimension_semantics=("parallel",)),     # megacore split on v7x
    )(x2f, x3f, x4f, x5f,
      w2v, b2v, w3v, b3v, w4v, b4v, w5v, b5v,
      m2, m3, m4, m5,
      fwc0, fwc1, fwc2, fwc3, fbv)

    return out.reshape(N, K, Ho, Wo)                # NCHW


# ----------------------------------------------------------------------------
# Pure-JAX reference (for correctness check only)
# ----------------------------------------------------------------------------
def _edge_dnn_reference(intermediate_result, params, num_classes=NUM_CLASSES):
    bn_scale = 1.0 / np.sqrt(1.0 + BN_EPS)

    def side(x, w, b, stride):
        y = jnp.einsum("nchw,oc->nohw", x, w) + b[None, :, None, None]
        y = jnp.maximum(y, 0.0) * bn_scale
        Hs, Ws = y.shape[2], y.shape[3]
        Ah = jnp.asarray(_interp_matrix(Hs * stride, Hs))
        Aw = jnp.asarray(_interp_matrix(Ws * stride, Ws))
        return jnp.einsum("oh,nchw,qw->ncoq", Ah, y, Aw)

    s2 = side(intermediate_result[0], params["side2"]["w"], params["side2"]["b"], 2)
    s3 = side(intermediate_result[1], params["side3"]["w"], params["side3"]["b"], 4)
    s4 = side(intermediate_result[2], params["side4"]["w"], params["side4"]["b"], 8)
    s5 = side(intermediate_result[-1], params["side5"]["w"], params["side5"]["b"], 16)

    fw, fb = params["fusion_w"], params["fusion_b"]
    return (fw[None, :, 0, None, None] * s5
            + fw[None, :, 1, None, None] * s2
            + fw[None, :, 2, None, None] * s3
            + fw[None, :, 3, None, None] * s4
            + fb[None, :, None, None])


# ----------------------------------------------------------------------------
if __name__ == "__main__":
    key = jax.random.PRNGKey(0)

    # Small, module-consistent configuration: EdgeDNN(in_planes=[128, 64, 32, 16])
    in_planes = [128, 64, 32, 16]   # reversed inside -> side2:16 side3:32 side4:64 side5:128
    N, H0, W0 = 2, 32, 32

    key, k0, k1, k2, k3, kp = jax.random.split(key, 6)
    intermediate_result = [
        jax.random.normal(k0, (N, 16, H0 // 2, W0 // 2), jnp.float32),     # stride 2
        jax.random.normal(k1, (N, 32, H0 // 4, W0 // 4), jnp.float32),     # stride 4
        jax.random.normal(k2, (N, 64, H0 // 8, W0 // 8), jnp.float32),     # stride 8
        jax.random.normal(k3, (N, 128, H0 // 16, W0 // 16), jnp.float32),  # stride 16
    ]

    params = init_params(kp, in_planes, NUM_CLASSES)

    out = edge_dnn_forward(intermediate_result, params)
    out = jax.block_until_ready(out)

    assert out.shape == (N, NUM_CLASSES, H0, W0), out.shape
    assert out.dtype == jnp.float32
    assert bool(jnp.all(jnp.isfinite(out)))

    ref = _edge_dnn_reference(intermediate_result, params)
    err = float(jnp.max(jnp.abs(out - ref)))
    assert err < 1e-3, f"max abs err vs reference: {err}"

    print("KERNEL_OK")
</pallas_src>

<mosaic_0001>
module attributes {stable_mosaic.version = 11 : i64} {
  func.func @_edge_dnn_kernel(%arg0: i32, %arg1: memref<1x16x256xf32, #tpu.memory_space<vmem>>, %arg2: memref<1x32x64xf32, #tpu.memory_space<vmem>>, %arg3: memref<1x64x16xf32, #tpu.memory_space<vmem>>, %arg4: memref<1x128x4xf32, #tpu.memory_space<vmem>>, %arg5: memref<16x1xf32, #tpu.memory_space<vmem>>, %arg6: memref<1x1xf32, #tpu.memory_space<vmem>>, %arg7: memref<32x1xf32, #tpu.memory_space<vmem>>, %arg8: memref<1x1xf32, #tpu.memory_space<vmem>>, %arg9: memref<64x1xf32, #tpu.memory_space<vmem>>, %arg10: memref<1x1xf32, #tpu.memory_space<vmem>>, %arg11: memref<9x128xf32, #tpu.memory_space<vmem>>, %arg12: memref<9x1xf32, #tpu.memory_space<vmem>>, %arg13: memref<256x1024xf32, #tpu.memory_space<vmem>>, %arg14: memref<64x1024xf32, #tpu.memory_space<vmem>>, %arg15: memref<16x1024xf32, #tpu.memory_space<vmem>>, %arg16: memref<4x1024xf32, #tpu.memory_space<vmem>>, %arg17: memref<9x1xf32, #tpu.memory_space<vmem>>, %arg18: memref<9x1xf32, #tpu.memory_space<vmem>>, %arg19: memref<9x1xf32, #tpu.memory_space<vmem>>, %arg20: memref<9x1xf32, #tpu.memory_space<vmem>>, %arg21: memref<9x1xf32, #tpu.memory_space<vmem>>, %arg22: memref<1x9x1024xf32, #tpu.memory_space<vmem>>) attributes {dimension_semantics = [#tpu.dimension_semantics<parallel>], iteration_bounds = array<i64: 2>, scalar_prefetch = 0 : i64, scratch_operands = 0 : i64, tpu.core_type = #tpu.core_type<tc>, window_params = [{transform_indices = @transform_0, window_bounds = array<i64: 1, 16, 256>}, {transform_indices = @transform_1, window_bounds = array<i64: 1, 32, 64>}, {transform_indices = @transform_2, window_bounds = array<i64: 1, 64, 16>}, {transform_indices = @transform_3, window_bounds = array<i64: 1, 128, 4>}, {pipeline_mode = #tpu.pipeline_mode<synchronous>, transform_indices = @transform_4, window_bounds = array<i64: 16, 1>}, {pipeline_mode = #tpu.pipeline_mode<synchronous>, transform_indices = @transform_5, window_bounds = array<i64: 1, 1>}, {pipeline_mode = #tpu.pipeline_mode<synchronous>, transform_indices = @transform_6, window_bounds = array<i64: 32, 1>}, {pipeline_mode = #tpu.pipeline_mode<synchronous>, transform_indices = @transform_7, window_bounds = array<i64: 1, 1>}, {pipeline_mode = #tpu.pipeline_mode<synchronous>, transform_indices = @transform_8, window_bounds = array<i64: 64, 1>}, {pipeline_mode = #tpu.pipeline_mode<synchronous>, transform_indices = @transform_9, window_bounds = array<i64: 1, 1>}, {pipeline_mode = #tpu.pipeline_mode<synchronous>, transform_indices = @transform_10, window_bounds = array<i64: 9, 128>}, {pipeline_mode = #tpu.pipeline_mode<synchronous>, transform_indices = @transform_11, window_bounds = array<i64: 9, 1>}, {pipeline_mode = #tpu.pipeline_mode<synchronous>, transform_indices = @transform_12, window_bounds = array<i64: 256, 1024>}, {pipeline_mode = #tpu.pipeline_mode<synchronous>, transform_indices = @transform_13, window_bounds = array<i64: 64, 1024>}, {pipeline_mode = #tpu.pipeline_mode<synchronous>, transform_indices = @transform_14, window_bounds = array<i64: 16, 1024>}, {pipeline_mode = #tpu.pipeline_mode<synchronous>, transform_indices = @transform_15, window_bounds = array<i64: 4, 1024>}, {pipeline_mode = #tpu.pipeline_mode<synchronous>, transform_indices = @transform_16, window_bounds = array<i64: 9, 1>}, {pipeline_mode = #tpu.pipeline_mode<synchronous>, transform_indices = @transform_17, window_bounds = array<i64: 9, 1>}, {pipeline_mode = #tpu.pipeline_mode<synchronous>, transform_indices = @transform_18, window_bounds = array<i64: 9, 1>}, {pipeline_mode = #tpu.pipeline_mode<synchronous>, transform_indices = @transform_19, window_bounds = array<i64: 9, 1>}, {pipeline_mode = #tpu.pipeline_mode<synchronous>, transform_indices = @transform_20, window_bounds = array<i64: 9, 1>}, {transform_indices = @transform_21, window_bounds = array<i64: 1, 9, 1024>}]} {
    %c0 = arith.constant 0 : index
    %c0_0 = arith.constant 0 : index
    %c0_1 = arith.constant 0 : index
    %0 = vector.load %arg1[%c0, %c0_0, %c0_1] : memref<1x16x256xf32, #tpu.memory_space<vmem>>, vector<1x16x256xf32>
    %1 = vector.shape_cast %0 : vector<1x16x256xf32> to vector<16x256xf32>
    %c0_2 = arith.constant 0 : index
    %c0_3 = arith.constant 0 : index
    %2 = vector.load %arg5[%c0_2, %c0_3] : memref<16x1xf32, #tpu.memory_space<vmem>>, vector<16x1xf32>
    %3 = vector.broadcast %2 : vector<16x1xf32> to vector<16x256xf32>
    %4 = arith.mulf %1, %3 : vector<16x256xf32>
    %cst = arith.constant dense<0.000000e+00> : vector<256xf32>
    %5 = vector.multi_reduction <add>, %4, %cst [0] : vector<16x256xf32> to vector<256xf32>
    %6 = vector.shape_cast %5 : vector<256xf32> to vector<1x256xf32>
    %c0_4 = arith.constant 0 : index
    %c0_5 = arith.constant 0 : index
    %7 = vector.load %arg6[%c0_4, %c0_5] : memref<1x1xf32, #tpu.memory_space<vmem>>, vector<1x1xf32>
    %8 = vector.broadcast %7 : vector<1x1xf32> to vector<1x256xf32>
    %9 = arith.addf %6, %8 : vector<1x256xf32>
    %cst_6 = arith.constant 0.000000e+00 : f32
    %10 = vector.broadcast %cst_6 : f32 to vector<1x256xf32>
    %11 = arith.maximumf %9, %10 : vector<1x256xf32>
    %c0_7 = arith.constant 0 : index
    %c0_8 = arith.constant 0 : index
    %12 = vector.load %arg13[%c0_7, %c0_8] : memref<256x1024xf32, #tpu.memory_space<vmem>>, vector<256x1024xf32>
    %cst_9 = arith.constant dense<0.000000e+00> : vector<1x1024xf32>
    %13 = tpu.matmul %11, %12, %cst_9 {dimension_numbers = #tpu.dot_dimension_numbers<[1], [0], [0], [1], [0, 0, 1, 1], [], []>} : vector<1x256xf32>, vector<256x1024xf32>, vector<1x1024xf32> -> vector<1x1024xf32>
    %c0_10 = arith.constant 0 : index
    %c0_11 = arith.constant 0 : index
    %c0_12 = arith.constant 0 : index
    %14 = vector.load %arg2[%c0_10, %c0_11, %c0_12] : memref<1x32x64xf32, #tpu.memory_space<vmem>>, vector<1x32x64xf32>
    %15 = vector.shape_cast %14 : vector<1x32x64xf32> to vector<32x64xf32>
    %c0_13 = arith.constant 0 : index
    %c0_14 = arith.constant 0 : index
    %16 = vector.load %arg7[%c0_13, %c0_14] : memref<32x1xf32, #tpu.memory_space<vmem>>, vector<32x1xf32>
    %17 = vector.broadcast %16 : vector<32x1xf32> to vector<32x64xf32>
    %18 = arith.mulf %15, %17 : vector<32x64xf32>
    %cst_15 = arith.constant dense<0.000000e+00> : vector<64xf32>
    %19 = vector.multi_reduction <add>, %18, %cst_15 [0] : vector<32x64xf32> to vector<64xf32>
    %20 = vector.shape_cast %19 : vector<64xf32> to vector<1x64xf32>
    %c0_16 = arith.constant 0 : index
    %c0_17 = arith.constant 0 : index
    %21 = vector.load %arg8[%c0_16, %c0_17] : memref<1x1xf32, #tpu.memory_space<vmem>>, vector<1x1xf32>
    %22 = vector.broadcast %21 : vector<1x1xf32> to vector<1x64xf32>
    %23 = arith.addf %20, %22 : vector<1x64xf32>
    %cst_18 = arith.constant 0.000000e+00 : f32
    %24 = vector.broadcast %cst_18 : f32 to vector<1x64xf32>
    %25 = arith.maximumf %23, %24 : vector<1x64xf32>
    %c0_19 = arith.constant 0 : index
    %c0_20 = arith.constant 0 : index
    %26 = vector.load %arg14[%c0_19, %c0_20] : memref<64x1024xf32, #tpu.memory_space<vmem>>, vector<64x1024xf32>
    %cst_21 = arith.constant dense<0.000000e+00> : vector<1x1024xf32>
    %27 = tpu.matmul %25, %26, %cst_21 {dimension_numbers = #tpu.dot_dimension_numbers<[1], [0], [0], [1], [0, 0, 1, 1], [], []>} : vector<1x64xf32>, vector<64x1024xf32>, vector<1x1024xf32> -> vector<1x1024xf32>
    %c0_22 = arith.constant 0 : index
    %c0_23 = arith.constant 0 : index
    %c0_24 = arith.constant 0 : index
    %28 = vector.load %arg3[%c0_22, %c0_23, %c0_24] : memref<1x64x16xf32, #tpu.memory_space<vmem>>, vector<1x64x16xf32>
    %29 = vector.shape_cast %28 : vector<1x64x16xf32> to vector<64x16xf32>
    %c0_25 = arith.constant 0 : index
    %c0_26 = arith.constant 0 : index
    %30 = vector.load %arg9[%c0_25, %c0_26] : memref<64x1xf32, #tpu.memory_space<vmem>>, vector<64x1xf32>
    %31 = vector.broadcast %30 : vector<64x1xf32> to vector<64x16xf32>
    %32 = arith.mulf %29, %31 : vector<64x16xf32>
    %cst_27 = arith.constant dense<0.000000e+00> : vector<16xf32>
    %33 = vector.multi_reduction <add>, %32, %cst_27 [0] : vector<64x16xf32> to vector<16xf32>
    %34 = vector.shape_cast %33 : vector<16xf32> to vector<1x16xf32>
    %c0_28 = arith.constant 0 : index
    %c0_29 = arith.constant 0 : index
    %35 = vector.load %arg10[%c0_28, %c0_29] : memref<1x1xf32, #tpu.memory_space<vmem>>, vector<1x1xf32>
    %36 = vector.broadcast %35 : vector<1x1xf32> to vector<1x16xf32>
    %37 = arith.addf %34, %36 : vector<1x16xf32>
    %cst_30 = arith.constant 0.000000e+00 : f32
    %38 = vector.broadcast %cst_30 : f32 to vector<1x16xf32>
    %39 = arith.maximumf %37, %38 : vector<1x16xf32>
    %c0_31 = arith.constant 0 : index
    %c0_32 = arith.constant 0 : index
    %40 = vector.load %arg15[%c0_31, %c0_32] : memref<16x1024xf32, #tpu.memory_space<vmem>>, vector<16x1024xf32>
    %cst_33 = arith.constant dense<0.000000e+00> : vector<1x1024xf32>
    %41 = tpu.matmul %39, %40, %cst_33 {dimension_numbers = #tpu.dot_dimension_numbers<[1], [0], [0], [1], [0, 0, 1, 1], [], []>} : vector<1x16xf32>, vector<16x1024xf32>, vector<1x1024xf32> -> vector<1x1024xf32>
    %c0_34 = arith.constant 0 : index
    %c0_35 = arith.constant 0 : index
    %c0_36 = arith.constant 0 : index
    %42 = vector.load %arg4[%c0_34, %c0_35, %c0_36] : memref<1x128x4xf32, #tpu.memory_space<vmem>>, vector<1x128x4xf32>
    %43 = vector.shape_cast %42 : vector<1x128x4xf32> to vector<128x4xf32>
    %c0_37 = arith.constant 0 : index
    %c0_38 = arith.constant 0 : index
    %44 = vector.load %arg11[%c0_37, %c0_38] : memref<9x128xf32, #tpu.memory_space<vmem>>, vector<9x128xf32>
    %cst_39 = arith.constant dense<0.000000e+00> : vector<9x4xf32>
    %45 = tpu.matmul %44, %43, %cst_39 {dimension_numbers = #tpu.dot_dimension_numbers<[1], [0], [0], [1], [0, 0, 1, 1], [], []>} : vector<9x128xf32>, vector<128x4xf32>, vector<9x4xf32> -> vector<9x4xf32>
    %c0_40 = arith.constant 0 : index
    %c0_41 = arith.constant 0 : index
    %46 = vector.load %arg12[%c0_40, %c0_41] : memref<9x1xf32, #tpu.memory_space<vmem>>, vector<9x1xf32>
    %47 = vector.broadcast %46 : vector<9x1xf32> to vector<9x4xf32>
    %48 = arith.addf %45, %47 : vector<9x4xf32>
    %cst_42 = arith.constant 0.000000e+00 : f32
    %49 = vector.broadcast %cst_42 : f32 to vector<9x4xf32>
    %50 = arith.maximumf %48, %49 : vector<9x4xf32>
    %c0_43 = arith.constant 0 : index
    %c0_44 = arith.constant 0 : index
    %51 = vector.load %arg16[%c0_43, %c0_44] : memref<4x1024xf32, #tpu.memory_space<vmem>>, vector<4x1024xf32>
    %cst_45 = arith.constant dense<0.000000e+00> : vector<9x1024xf32>
    %52 = tpu.matmul %50, %51, %cst_45 {dimension_numbers = #tpu.dot_dimension_numbers<[1], [0], [0], [1], [0, 0, 1, 1], [], []>} : vector<9x4xf32>, vector<4x1024xf32>, vector<9x1024xf32> -> vector<9x1024xf32>
    %c0_46 = arith.constant 0 : index
    %c0_47 = arith.constant 0 : index
    %53 = vector.load %arg17[%c0_46, %c0_47] : memref<9x1xf32, #tpu.memory_space<vmem>>, vector<9x1xf32>
    %54 = vector.broadcast %53 : vector<9x1xf32> to vector<9x1024xf32>
    %55 = arith.mulf %52, %54 : vector<9x1024xf32>
    %c0_48 = arith.constant 0 : index
    %c0_49 = arith.constant 0 : index
    %56 = vector.load %arg18[%c0_48, %c0_49] : memref<9x1xf32, #tpu.memory_space<vmem>>, vector<9x1xf32>
    %57 = vector.broadcast %13 : vector<1x1024xf32> to vector<9x1024xf32>
    %58 = vector.broadcast %56 : vector<9x1xf32> to vector<9x1024xf32>
    %59 = arith.mulf %57, %58 : vector<9x1024xf32>
    %60 = arith.addf %55, %59 : vector<9x1024xf32>
    %c0_50 = arith.constant 0 : index
    %c0_51 = arith.constant 0 : index
    %61 = vector.load %arg19[%c0_50, %c0_51] : memref<9x1xf32, #tpu.memory_space<vmem>>, vector<9x1xf32>
    %62 = vector.broadcast %27 : vector<1x1024xf32> to vector<9x1024xf32>
    %63 = vector.broadcast %61 : vector<9x1xf32> to vector<9x1024xf32>
    %64 = arith.mulf %62, %63 : vector<9x1024xf32>
    %65 = arith.addf %60, %64 : vector<9x1024xf32>
    %c0_52 = arith.constant 0 : index
    %c0_53 = arith.constant 0 : index
    %66 = vector.load %arg20[%c0_52, %c0_53] : memref<9x1xf32, #tpu.memory_space<vmem>>, vector<9x1xf32>
    %67 = vector.broadcast %41 : vector<1x1024xf32> to vector<9x1024xf32>
    %68 = vector.broadcast %66 : vector<9x1xf32> to vector<9x1024xf32>
    %69 = arith.mulf %67, %68 : vector<9x1024xf32>
    %70 = arith.addf %65, %69 : vector<9x1024xf32>
    %c0_54 = arith.constant 0 : index
    %c0_55 = arith.constant 0 : index
    %71 = vector.load %arg21[%c0_54, %c0_55] : memref<9x1xf32, #tpu.memory_space<vmem>>, vector<9x1xf32>
    %72 = vector.broadcast %71 : vector<9x1xf32> to vector<9x1024xf32>
    %73 = arith.addf %70, %72 : vector<9x1024xf32>
    %c0_56 = arith.constant 0 : index
    %c0_57 = arith.constant 0 : index
    %c0_58 = arith.constant 0 : index
    %74 = vector.load %arg22[%c0_56, %c0_57, %c0_58] : memref<1x9x1024xf32, #tpu.memory_space<vmem>>, vector<1x9x1024xf32>
    %75 = vector.shape_cast %74 : vector<1x9x1024xf32> to vector<9x1024xf32>
    %76 = vector.shape_cast %73 : vector<9x1024xf32> to vector<1x9x1024xf32>
    tpu.vector_store %arg22[%c0_56, %c0_57, %c0_58], %76 {strides = array<i32>} : memref<1x9x1024xf32, #tpu.memory_space<vmem>>, vector<1x9x1024xf32>,
    return
  }
  func.func @transform_0(%arg0: i32) -> (i32, i32, i32) {
    %c0_i32 = arith.constant 0 : i32
    %c0_i32_0 = arith.constant 0 : i32
    %c0_i32_1 = arith.constant 0 : i32
    return %arg0, %c0_i32, %c0_i32_0 : i32, i32, i32
  }
  func.func @transform_1(%arg0: i32) -> (i32, i32, i32) {
    %c0_i32 = arith.constant 0 : i32
    %c0_i32_0 = arith.constant 0 : i32
    %c0_i32_1 = arith.constant 0 : i32
    return %arg0, %c0_i32, %c0_i32_0 : i32, i32, i32
  }
  func.func @transform_2(%arg0: i32) -> (i32, i32, i32) {
    %c0_i32 = arith.constant 0 : i32
    %c0_i32_0 = arith.constant 0 : i32
    %c0_i32_1 = arith.constant 0 : i32
    return %arg0, %c0_i32, %c0_i32_0 : i32, i32, i32
  }
  func.func @transform_3(%arg0: i32) -> (i32, i32, i32) {
    %c0_i32 = arith.constant 0 : i32
    %c0_i32_0 = arith.constant 0 : i32
    %c0_i32_1 = arith.constant 0 : i32
    return %arg0, %c0_i32, %c0_i32_0 : i32, i32, i32
  }
  func.func @transform_4(%arg0: i32) -> (i32, i32) {
    %c0_i32 = arith.constant 0 : i32
    %c0_i32_0 = arith.constant 0 : i32
    %c0_i32_1 = arith.constant 0 : i32
    return %c0_i32, %c0_i32_0 : i32, i32
  }
  func.func @transform_5(%arg0: i32) -> (i32, i32) {
    %c0_i32 = arith.constant 0 : i32
    %c0_i32_0 = arith.constant 0 : i32
    %c0_i32_1 = arith.constant 0 : i32
    return %c0_i32, %c0_i32_0 : i32, i32
  }
  func.func @transform_6(%arg0: i32) -> (i32, i32) {
    %c0_i32 = arith.constant 0 : i32
    %c0_i32_0 = arith.constant 0 : i32
    %c0_i32_1 = arith.constant 0 : i32
    return %c0_i32, %c0_i32_0 : i32, i32
  }
  func.func @transform_7(%arg0: i32) -> (i32, i32) {
    %c0_i32 = arith.constant 0 : i32
    %c0_i32_0 = arith.constant 0 : i32
    %c0_i32_1 = arith.constant 0 : i32
    return %c0_i32, %c0_i32_0 : i32, i32
  }
  func.func @transform_8(%arg0: i32) -> (i32, i32) {
    %c0_i32 = arith.constant 0 : i32
    %c0_i32_0 = arith.constant 0 : i32
    %c0_i32_1 = arith.constant 0 : i32
    return %c0_i32, %c0_i32_0 : i32, i32
  }
  func.func @transform_9(%arg0: i32) -> (i32, i32) {
    %c0_i32 = arith.constant 0 : i32
    %c0_i32_0 = arith.constant 0 : i32
    %c0_i32_1 = arith.constant 0 : i32
    return %c0_i32, %c0_i32_0 : i32, i32
  }
  func.func @transform_10(%arg0: i32) -> (i32, i32) {
    %c0_i32 = arith.constant 0 : i32
    %c0_i32_0 = arith.constant 0 : i32
    %c0_i32_1 = arith.constant 0 : i32
    return %c0_i32, %c0_i32_0 : i32, i32
  }
  func.func @transform_11(%arg0: i32) -> (i32, i32) {
    %c0_i32 = arith.constant 0 : i32
    %c0_i32_0 = arith.constant 0 : i32
    %c0_i32_1 = arith.constant 0 : i32
    return %c0_i32, %c0_i32_0 : i32, i32
  }
  func.func @transform_12(%arg0: i32) -> (i32, i32) {
    %c0_i32 = arith.constant 0 : i32
    %c0_i32_0 = arith.constant 0 : i32
    %c0_i32_1 = arith.constant 0 : i32
    return %c0_i32, %c0_i32_0 : i32, i32
  }
  func.func @transform_13(%arg0: i32) -> (i32, i32) {
    %c0_i32 = arith.constant 0 : i32
    %c0_i32_0 = arith.constant 0 : i32
    %c0_i32_1 = arith.constant 0 : i32
    return %c0_i32, %c0_i32_0 : i32, i32
  }
  func.func @transform_14(%arg0: i32) -> (i32, i32) {
    %c0_i32 = arith.constant 0 : i32
    %c0_i32_0 = arith.constant 0 : i32
    %c0_i32_1 = arith.constant 0 : i32
    return %c0_i32, %c0_i32_0 : i32, i32
  }
  func.func @transform_15(%arg0: i32) -> (i32, i32) {
    %c0_i32 = arith.constant 0 : i32
    %c0_i32_0 = arith.constant 0 : i32
    %c0_i32_1 = arith.constant 0 : i32
    return %c0_i32, %c0_i32_0 : i32, i32
  }
  func.func @transform_16(%arg0: i32) -> (i32, i32) {
    %c0_i32 = arith.constant 0 : i32
    %c0_i32_0 = arith.constant 0 : i32
    %c0_i32_1 = arith.constant 0 : i32
    return %c0_i32, %c0_i32_0 : i32, i32
  }
  func.func @transform_17(%arg0: i32) -> (i32, i32) {
    %c0_i32 = arith.constant 0 : i32
    %c0_i32_0 = arith.constant 0 : i32
    %c0_i32_1 = arith.constant 0 : i32
    return %c0_i32, %c0_i32_0 : i32, i32
  }
  func.func @transform_18(%arg0: i32) -> (i32, i32) {
    %c0_i32 = arith.constant 0 : i32
    %c0_i32_0 = arith.constant 0 : i32
    %c0_i32_1 = arith.constant 0 : i32
    return %c0_i32, %c0_i32_0 : i32, i32
  }
  func.func @transform_19(%arg0: i32) -> (i32, i32) {
    %c0_i32 = arith.constant 0 : i32
    %c0_i32_0 = arith.constant 0 : i32
    %c0_i32_1 = arith.constant 0 : i32
    return %c0_i32, %c0_i32_0 : i32, i32
  }
  func.func @transform_20(%arg0: i32) -> (i32, i32) {
    %c0_i32 = arith.constant 0 : i32
    %c0_i32_0 = arith.constant 0 : i32
    %c0_i32_1 = arith.constant 0 : i32
    return %c0_i32, %c0_i32_0 : i32, i32
  }
  func.func @transform_21(%arg0: i32) -> (i32, i32, i32) {
    %c0_i32 = arith.constant 0 : i32
    %c0_i32_0 = arith.constant 0 : i32
    %c0_i32_1 = arith.constant 0 : i32
    return %arg0, %c0_i32, %c0_i32_0 : i32, i32, i32
  }
}

</mosaic_0001>

<llo_original>
// kernel: tpu_custom_call.1
$region0: #{tpu_custom_call.1}
  #allocation0 [shape = 'u32[]', space=smem, size = 0x4, offset = 0x4, fixed_abs, tag = 'smem constant byte address 0x4 - core index']
  #allocation1 [shape = 'u32[144,128]{1,0:T(1,128)}', space=vmem, size = 0x12000, scoped, tag = 'internal scratch']
  #allocation2 [shape = 'f32[1,1]{1,0:T(1,128)S(1)}', space=vmem, size = 0x200, scoped, tag = 'scoped memory for tpu_custom_call.1']
  #allocation3 [shape = 'f32[1,1]{1,0:T(1,128)S(1)}', space=vmem, size = 0x200, scoped, tag = 'scoped memory for tpu_custom_call.1']
  #allocation4 [shape = 'f32[1,1]{1,0:T(1,128)S(1)}', space=vmem, size = 0x200, scoped, tag = 'scoped memory for tpu_custom_call.1']
  %s0 = inlined_call_operand.hbm [shape: f32[2,16,256], index: 0, kind: input, shape index: {}]
  %s1 = inlined_call_operand.hbm [shape: f32[2,32,64], index: 1, kind: input, shape index: {}]
  %s2 = inlined_call_operand.vmem [shape: f32[2,64,16], index: 2, kind: input, shape index: {}]
  %s3 = inlined_call_operand.vmem [shape: f32[2,128,4], index: 3, kind: input, shape index: {}]
  %s4 = inlined_call_operand.vmem [shape: f32[16,1], index: 4, kind: input, shape index: {}]
  %s5 = inlined_call_operand.<no memory space> [shape: f32[1,1], index: 5, kind: input, shape index: {}]
  %s6 = inlined_call_operand.vmem [shape: f32[32,1], index: 6, kind: input, shape index: {}]
  %s7 = inlined_call_operand.<no memory space> [shape: f32[1,1], index: 7, kind: input, shape index: {}]
  %s8 = inlined_call_operand.vmem [shape: f32[64,1], index: 8, kind: input, shape index: {}]
  %s9 = inlined_call_operand.<no memory space> [shape: f32[1,1], index: 9, kind: input, shape index: {}]
  %s10 = inlined_call_operand.vmem [shape: f32[9,128], index: 10, kind: input, shape index: {}]
  %s11 = inlined_call_operand.vmem [shape: f32[9,1], index: 11, kind: input, shape index: {}]
  %s12 = inlined_call_operand.hbm [shape: f32[256,1024], index: 12, kind: input, shape index: {}]
  %s13 = inlined_call_operand.vmem [shape: f32[64,1024], index: 13, kind: input, shape index: {}]
  %s14 = inlined_call_operand.vmem [shape: f32[16,1024], index: 14, kind: input, shape index: {}]
  %s15 = inlined_call_operand.hbm [shape: f32[4,1024], index: 15, kind: input, shape index: {}]
  %s16 = inlined_call_operand.vmem [shape: f32[9,1], index: 16, kind: input, shape index: {}]
  %s17 = inlined_call_operand.vmem [shape: f32[9,1], index: 17, kind: input, shape index: {}]
  %s18 = inlined_call_operand.vmem [shape: f32[9,1], index: 18, kind: input, shape index: {}]
  %s19 = inlined_call_operand.vmem [shape: f32[9,1], index: 19, kind: input, shape index: {}]
  %s20 = inlined_call_operand.vmem [shape: f32[9,1], index: 20, kind: input, shape index: {}]
  %s21 = inlined_call_operand.vmem [shape: f32[2,9,1024], index: 21, kind: output, shape index: {}]
  %s22 = sld [smem:[#allocation0]]
  $region133: #{tpu_custom_call.1} parent=0
    _
  %s24 = ssub.s32 1, %s22
  %s25 = scalar_select 0, %s24, %s22
  %v26 = vstv %s5
  %27 = vst [vmem:[#allocation2] sm:$0x1] %v26
  %v28 = vstv %s7
  %29 = vst [vmem:[#allocation3] sm:$0x1] %v28
  %v30 = vstv %s9
  %31 = vst [vmem:[#allocation4] sm:$0x1] %v30
  $region1: #{tpu_custom_call.1} parent=0
    #allocation5 [shape = 'u8[32768]{0}', space=vmem, size = 0x8000, scoped, tag = 'input window, operand 0']
    #allocation6 [shape = 's32[2]{0}', space=sflag, size = 0x8, scoped, tag = 'scoped memory for tpu_custom_call.1']
    #allocation7 [shape = 'u8[32768]{0}', space=vmem, size = 0x8000, scoped, tag = 'input window, operand 1']
    #allocation8 [shape = 's32[2]{0}', space=sflag, size = 0x8, scoped, tag = 'scoped memory for tpu_custom_call.1']
    #allocation9 [shape = 'u8[1048576]{0}', space=vmem, size = 0x100000, scoped, tag = 'input window, operand 12, single buffered']
    #allocation10 [shape = 'u8[16384]{0}', space=vmem, size = 0x4000, scoped, tag = 'input window, operand 15, single buffered']
    #allocation11 [shape = 's32[1]{0}', space=sflag, size = 0x4, scoped, tag = 'scoped memory for tpu_custom_call.1']
    %32 = vsyncpa [#allocation6], 0
    %s33 = scalar_lea.sflag [#allocation6], 1
    %34 = vsyncpa %s33, 0
    %35 = vsyncpa [#allocation8], 0
    %s36 = scalar_lea.sflag [#allocation8], 1
    %37 = vsyncpa %s36, 0
    %38 = vsyncpa [#allocation11], 0
    loop: start=0, step=1, limit=4
    $region2: #{tpu_custom_call.1} parent=1 // loop_pre_header
      _
    $region3: #{tpu_custom_call.1} parent=1 // loop_header
      %s40 = sphi 0, %s44
      %p41 = scmp.ge.s32.totalorder %s40, 4
      %s50 = sphi 0, %s52
      %s53 = sphi 0, %s50
      %s54 = sphi 0, %s53
      %s70 = sphi 0, %s54
      %s76 = sphi 0, %s78
      %s79 = sphi 0, %s76
      %s80 = sphi 0, %s79
      %s96 = sphi 0, %s80
      %s102 = sphi 0, %s104
      %s105 = sphi 0, %s102
      %s106 = sphi 0, %s105
      %s122 = sphi 0, %s106
      %s128 = sphi 0, %s130
      %s131 = sphi 0, %s128
      %s132 = sphi 0, %s131
      %s148 = sphi 0, %s132
      %s152 = sphi 0, %s152
      %s154 = sphi 0, %s152
      %s155 = sphi 0, %s154
      %s169 = sphi 0, %s155
      %s173 = sphi 0, %s173
      %s175 = sphi 0, %s173
      %s176 = sphi 0, %s175
      %s190 = sphi 0, %s176
      %s194 = sphi 0, %s194
      %s196 = sphi 0, %s194
      %s197 = sphi 0, %s196
      %s211 = sphi 0, %s197
      %s215 = sphi 0, %s215
      %s217 = sphi 0, %s215
      %s218 = sphi 0, %s217
      %s232 = sphi 0, %s218
      %s236 = sphi 0, %s236
      %s238 = sphi 0, %s236
      %s239 = sphi 0, %s238
      %s253 = sphi 0, %s239
      %s257 = sphi 0, %s257
      %s259 = sphi 0, %s257
      %s260 = sphi 0, %s259
      %s274 = sphi 0, %s260
      %s278 = sphi 0, %s278
      %s280 = sphi 0, %s278
      %s281 = sphi 0, %s280
      %s295 = sphi 0, %s281
      %s299 = sphi 0, %s299
      %s301 = sphi 0, %s299
      %s302 = sphi 0, %s301
      %s316 = sphi 0, %s302
      %s320 = sphi 0, %s320
      %s322 = sphi 0, %s320
      %s323 = sphi 0, %s322
      %s337 = sphi 0, %s323
      %s341 = sphi 0, %s341
      %s343 = sphi 0, %s341
      %s344 = sphi 0, %s343
      %s358 = sphi 0, %s344
      %s362 = sphi 0, %s362
      %s364 = sphi 0, %s362
      %s365 = sphi 0, %s364
      %s379 = sphi 0, %s365
      %s383 = sphi 0, %s383
      %s385 = sphi 0, %s383
      %s386 = sphi 0, %s385
      %s400 = sphi 0, %s386
      %s404 = sphi 0, %s404
      %s406 = sphi 0, %s404
      %s407 = sphi 0, %s406
      %s421 = sphi 0, %s407
      %s425 = sphi 0, %s425
      %s427 = sphi 0, %s425
      %s428 = sphi 0, %s427
      %s442 = sphi 0, %s428
      %s446 = sphi 0, %s446
      %s448 = sphi 0, %s446
      %s449 = sphi 0, %s448
      %s463 = sphi 0, %s449
      %s467 = sphi 0, %s467
      %s469 = sphi 0, %s467
      %s470 = sphi 0, %s469
      %s484 = sphi 0, %s470
      %s488 = sphi 0, %s488
      %s490 = sphi 0, %s488
      %s491 = sphi 0, %s490
      %s505 = sphi 0, %s491
      %s511 = sphi 0, %s513
      %s514 = sphi 0, %s511
      %s515 = sphi 0, %s514
      %s531 = sphi 0, %s515
    $region4: #{tpu_custom_call.1} parent=1 // loop_header_branch
      %43 = sbr.rel (%p41) target = $region8
    $region5: #{tpu_custom_call.1} parent=1 // loop_body
      %s45 = ssub.s32 %s40, 1
      %s46 = ssub.s32 %s40, 2
      %s47 = sadd.s32 %s40, 1
      %s48 = ssub.s32 %s40, %s47
      %p49 = scmp.eq.s32.totalorder %s48, 0
      %s51 = sadd.s32 %s50, 1
      %s52 = scalar_select %p49, %s50, %s51
      %p55 = pneg %p49
      %p56 = scmp.eq.s32.totalorder %s40, 1
      %p57 = por %p55, %p56
      %p58 = scmp.ne.s32.totalorder %s50, %s53
      %p59 = scmp.eq.s32.totalorder %s40, 0
      %p60 = por %p58, %p59
      %p61 = scmp.ne.s32.totalorder %s50, %s53
      %p62 = scmp.eq.s32.totalorder %s45, 1
      %p63 = por %p61, %p62
      %p64 = scmp.ne.s32.totalorder %s53, %s54
      %p65 = scmp.eq.s32.totalorder %s45, 0
      %p66 = por %p64, %p65
      %p67 = scmp.ne.s32.totalorder %s53, %s54
      %p68 = scmp.eq.s32.totalorder %s46, 1
      %p69 = por %p67, %p68
      %p71 = scmp.ne.s32.totalorder %s54, %s70
      %p72 = scmp.eq.s32.totalorder %s46, 0
      %p73 = por %p71, %p72
      %s74 = ssub.s32 %s40, %s47
      %p75 = scmp.eq.s32.totalorder %s74, 0
      %s77 = sadd.s32 %s76, 1
      %s78 = scalar_select %p75, %s76, %s77
      %p81 = pneg %p75
      %p82 = scmp.eq.s32.totalorder %s40, 1
      %p83 = por %p81, %p82
      %p84 = scmp.ne.s32.totalorder %s76, %s79
      %p85 = scmp.eq.s32.totalorder %s40, 0
      %p86 = por %p84, %p85
      %p87 = scmp.ne.s32.totalorder %s76, %s79
      %p88 = scmp.eq.s32.totalorder %s45, 1
      %p89 = por %p87, %p88
      %p90 = scmp.ne.s32.totalorder %s79, %s80
      %p91 = scmp.eq.s32.totalorder %s45, 0
      %p92 = por %p90, %p91
      %p93 = scmp.ne.s32.totalorder %s79, %s80
      %p94 = scmp.eq.s32.totalorder %s46, 1
      %p95 = por %p93, %p94
      %p97 = scmp.ne.s32.totalorder %s80, %s96
      %p98 = scmp.eq.s32.totalorder %s46, 0
      %p99 = por %p97, %p98
      %s100 = ssub.s32 %s40, %s47
      %p101 = scmp.eq.s32.totalorder %s100, 0
      %s103 = sadd.s32 %s102, 1
      %s104 = scalar_select %p101, %s102, %s103
      %p107 = pneg %p101
      %p108 = scmp.eq.s32.totalorder %s40, 1
      %p109 = por %p107, %p108
      %p110 = scmp.ne.s32.totalorder %s102, %s105
      %p111 = scmp.eq.s32.totalorder %s40, 0
      %p112 = por %p110, %p111
      %p113 = scmp.ne.s32.totalorder %s102, %s105
      %p114 = scmp.eq.s32.totalorder %s45, 1
      %p115 = por %p113, %p114
      %p116 = scmp.ne.s32.totalorder %s105, %s106
      %p117 = scmp.eq.s32.totalorder %s45, 0
      %p118 = por %p116, %p117
      %p119 = scmp.ne.s32.totalorder %s105, %s106
      %p120 = scmp.eq.s32.totalorder %s46, 1
      %p121 = por %p119, %p120
      %p123 = scmp.ne.s32.totalorder %s106, %s122
      %p124 = scmp.eq.s32.totalorder %s46, 0
      %p125 = por %p123, %p124
      %s126 = ssub.s32 %s40, %s47
      %p127 = scmp.eq.s32.totalorder %s126, 0
      %s129 = sadd.s32 %s128, 1
      %s130 = scalar_select %p127, %s128, %s129
      %p133 = pneg %p127
      %p134 = scmp.eq.s32.totalorder %s40, 1
      %p135 = por %p133, %p134
      %p136 = scmp.ne.s32.totalorder %s128, %s131
      %p137 = scmp.eq.s32.totalorder %s40, 0
      %p138 = por %p136, %p137
      %p139 = scmp.ne.s32.totalorder %s128, %s131
      %p140 = scmp.eq.s32.totalorder %s45, 1
      %p141 = por %p139, %p140
      %p142 = scmp.ne.s32.totalorder %s131, %s132
      %p143 = scmp.eq.s32.totalorder %s45, 0
      %p144 = por %p142, %p143
      %p145 = scmp.ne.s32.totalorder %s131, %s132
      %p146 = scmp.eq.s32.totalorder %s46, 1
      %p147 = por %p145, %p146
      %p149 = scmp.ne.s32.totalorder %s132, %s148
      %p150 = scmp.eq.s32.totalorder %s46, 0
      %p151 = por %p149, %p150
      %s153 = sadd.s32 %s152, 1
      %p156 = scmp.eq.s32.totalorder %s40, 1
      %p157 = scmp.ne.s32.totalorder %s152, %s154
      %p158 = scmp.eq.s32.totalorder %s40, 0
      %p159 = por %p157, %p158
      %p160 = scmp.ne.s32.totalorder %s152, %s154
      %p161 = scmp.eq.s32.totalorder %s45, 1
      %p162 = por %p160, %p161
      %p163 = scmp.ne.s32.totalorder %s154, %s155
      %p164 = scmp.eq.s32.totalorder %s45, 0
      %p165 = por %p163, %p164
      %p166 = scmp.ne.s32.totalorder %s154, %s155
      %p167 = scmp.eq.s32.totalorder %s46, 1
      %p168 = por %p166, %p167
      %p170 = scmp.ne.s32.totalorder %s155, %s169
      %p171 = scmp.eq.s32.totalorder %s46, 0
      %p172 = por %p170, %p171
      %s174 = sadd.s32 %s173, 1
      %p177 = scmp.eq.s32.totalorder %s40, 1
      %p178 = scmp.ne.s32.totalorder %s173, %s175
      %p179 = scmp.eq.s32.totalorder %s40, 0
      %p180 = por %p178, %p179
      %p181 = scmp.ne.s32.totalorder %s173, %s175
      %p182 = scmp.eq.s32.totalorder %s45, 1
      %p183 = por %p181, %p182
      %p184 = scmp.ne.s32.totalorder %s175, %s176
      %p185 = scmp.eq.s32.totalorder %s45, 0
      %p186 = por %p184, %p185
      %p187 = scmp.ne.s32.totalorder %s175, %s176
      %p188 = scmp.eq.s32.totalorder %s46, 1
      %p189 = por %p187, %p188
      %p191 = scmp.ne.s32.totalorder %s176, %s190
      %p192 = scmp.eq.s32.totalorder %s46, 0
      %p193 = por %p191, %p192
      %s195 = sadd.s32 %s194, 1
      %p198 = scmp.eq.s32.totalorder %s40, 1
      %p199 = scmp.ne.s32.totalorder %s194, %s196
      %p200 = scmp.eq.s32.totalorder %s40, 0
      %p201 = por %p199, %p200
      %p202 = scmp.ne.s32.totalorder %s194, %s196
      %p203 = scmp.eq.s32.totalorder %s45, 1
      %p204 = por %p202, %p203
      %p205 = scmp.ne.s32.totalorder %s196, %s197
      %p206 = scmp.eq.s32.totalorder %s45, 0
      %p207 = por %p205, %p206
      %p208 = scmp.ne.s32.totalorder %s196, %s197
      %p209 = scmp.eq.s32.totalorder %s46, 1
      %p210 = por %p208, %p209
      %p212 = scmp.ne.s32.totalorder %s197, %s211
      %p213 = scmp.eq.s32.totalorder %s46, 0
      %p214 = por %p212, %p213
      %s216 = sadd.s32 %s215, 1
      %p219 = scmp.eq.s32.totalorder %s40, 1
      %p220 = scmp.ne.s32.totalorder %s215, %s217
      %p221 = scmp.eq.s32.totalorder %s40, 0
      %p222 = por %p220, %p221
      %p223 = scmp.ne.s32.totalorder %s215, %s217
      %p224 = scmp.eq.s32.totalorder %s45, 1
      %p225 = por %p223, %p224
      %p226 = scmp.ne.s32.totalorder %s217, %s218
      %p227 = scmp.eq.s32.totalorder %s45, 0
      %p228 = por %p226, %p227
      %p229 = scmp.ne.s32.totalorder %s217, %s218
      %p230 = scmp.eq.s32.totalorder %s46, 1
      %p231 = por %p229, %p230
      %p233 = scmp.ne.s32.totalorder %s218, %s232
      %p234 = scmp.eq.s32.totalorder %s46, 0
      %p235 = por %p233, %p234
      %s237 = sadd.s32 %s236, 1
      %p240 = scmp.eq.s32.totalorder %s40, 1
      %p241 = scmp.ne.s32.totalorder %s236, %s238
      %p242 = scmp.eq.s32.totalorder %s40, 0
      %p243 = por %p241, %p242
      %p244 = scmp.ne.s32.totalorder %s236, %s238
      %p245 = scmp.eq.s32.totalorder %s45, 1
      %p246 = por %p244, %p245
      %p247 = scmp.ne.s32.totalorder %s238, %s239
      %p248 = scmp.eq.s32.totalorder %s45, 0
      %p249 = por %p247, %p248
      %p250 = scmp.ne.s32.totalorder %s238, %s239
      %p251 = scmp.eq.s32.totalorder %s46, 1
      %p252 = por %p250, %p251
      %p254 = scmp.ne.s32.totalorder %s239, %s253
      %p255 = scmp.eq.s32.totalorder %s46, 0
      %p256 = por %p254, %p255
      %s258 = sadd.s32 %s257, 1
      %p261 = scmp.eq.s32.totalorder %s40, 1
      %p262 = scmp.ne.s32.totalorder %s257, %s259
      %p263 = scmp.eq.s32.totalorder %s40, 0
      %p264 = por %p262, %p263
      %p265 = scmp.ne.s32.totalorder %s257, %s259
      %p266 = scmp.eq.s32.totalorder %s45, 1
      %p267 = por %p265, %p266
      %p268 = scmp.ne.s32.totalorder %s259, %s260
      %p269 = scmp.eq.s32.totalorder %s45, 0
      %p270 = por %p268, %p269
      %p271 = scmp.ne.s32.totalorder %s259, %s260
      %p272 = scmp.eq.s32.totalorder %s46, 1
      %p273 = por %p271, %p272
      %p275 = scmp.ne.s32.totalorder %s260, %s274
      %p276 = scmp.eq.s32.totalorder %s46, 0
      %p277 = por %p275, %p276
      %s279 = sadd.s32 %s278, 1
      %p282 = scmp.eq.s32.totalorder %s40, 1
      %p283 = scmp.ne.s32.totalorder %s278, %s280
      %p284 = scmp.eq.s32.totalorder %s40, 0
      %p285 = por %p283, %p284
      %p286 = scmp.ne.s32.totalorder %s278, %s280
      %p287 = scmp.eq.s32.totalorder %s45, 1
      %p288 = por %p286, %p287
      %p289 = scmp.ne.s32.totalorder %s280, %s281
      %p290 = scmp.eq.s32.totalorder %s45, 0
      %p291 = por %p289, %p290
      %p292 = scmp.ne.s32.totalorder %s280, %s281
      %p293 = scmp.eq.s32.totalorder %s46, 1
      %p294 = por %p292, %p293
      %p296 = scmp.ne.s32.totalorder %s281, %s295
      %p297 = scmp.eq.s32.totalorder %s46, 0
      %p298 = por %p296, %p297
      %s300 = sadd.s32 %s299, 1
      %p303 = scmp.eq.s32.totalorder %s40, 1
      %p304 = scmp.ne.s32.totalorder %s299, %s301
      %p305 = scmp.eq.s32.totalorder %s40, 0
      %p306 = por %p304, %p305
      %p307 = scmp.ne.s32.totalorder %s299, %s301
      %p308 = scmp.eq.s32.totalorder %s45, 1
      %p309 = por %p307, %p308
      %p310 = scmp.ne.s32.totalorder %s301, %s302
      %p311 = scmp.eq.s32.totalorder %s45, 0
      %p312 = por %p310, %p311
      %p313 = scmp.ne.s32.totalorder %s301, %s302
      %p314 = scmp.eq.s32.totalorder %s46, 1
      %p315 = por %p313, %p314
      %p317 = scmp.ne.s32.totalorder %s302, %s316
      %p318 = scmp.eq.s32.totalorder %s46, 0
      %p319 = por %p317, %p318
      %s321 = sadd.s32 %s320, 1
      %p324 = scmp.eq.s32.totalorder %s40, 1
      %p325 = scmp.ne.s32.totalorder %s320, %s322
      %p326 = scmp.eq.s32.totalorder %s40, 0
      %p327 = por %p325, %p326
      %p328 = scmp.ne.s32.totalorder %s320, %s322
      %p329 = scmp.eq.s32.totalorder %s45, 1
      %p330 = por %p328, %p329
      %p331 = scmp.ne.s32.totalorder %s322, %s323
      %p332 = scmp.eq.s32.totalorder %s45, 0
      %p333 = por %p331, %p332
      %p334 = scmp.ne.s32.totalorder %s322, %s323
      %p335 = scmp.eq.s32.totalorder %s46, 1
      %p336 = por %p334, %p335
      %p338 = scmp.ne.s32.totalorder %s323, %s337
      %p339 = scmp.eq.s32.totalorder %s46, 0
      %p340 = por %p338, %p339
      %s342 = sadd.s32 %s341, 1
      %p345 = scmp.eq.s32.totalorder %s40, 1
      %p346 = scmp.ne.s32.totalorder %s341, %s343
      %p347 = scmp.eq.s32.totalorder %s40, 0
      %p348 = por %p346, %p347
      %p349 = scmp.ne.s32.totalorder %s341, %s343
      %p350 = scmp.eq.s32.totalorder %s45, 1
      %p351 = por %p349, %p350
      %p352 = scmp.ne.s32.totalorder %s343, %s344
      %p353 = scmp.eq.s32.totalorder %s45, 0
      %p354 = por %p352, %p353
      %p355 = scmp.ne.s32.totalorder %s343, %s344
      %p356 = scmp.eq.s32.totalorder %s46, 1
      %p357 = por %p355, %p356
      %p359 = scmp.ne.s32.totalorder %s344, %s358
      %p360 = scmp.eq.s32.totalorder %s46, 0
      %p361 = por %p359, %p360
      %s363 = sadd.s32 %s362, 1
      %p366 = scmp.eq.s32.totalorder %s40, 1
      %p367 = scmp.ne.s32.totalorder %s362, %s364
      %p368 = scmp.eq.s32.totalorder %s40, 0
      %p369 = por %p367, %p368
      %p370 = scmp.ne.s32.totalorder %s362, %s364
      %p371 = scmp.eq.s32.totalorder %s45, 1
      %p372 = por %p370, %p371
      %p373 = scmp.ne.s32.totalorder %s364, %s365
      %p374 = scmp.eq.s32.totalorder %s45, 0
      %p375 = por %p373, %p374
      %p376 = scmp.ne.s32.totalorder %s364, %s365
      %p377 = scmp.eq.s32.totalorder %s46, 1
      %p378 = por %p376, %p377
      %p380 = scmp.ne.s32.totalorder %s365, %s379
      %p381 = scmp.eq.s32.totalorder %s46, 0
      %p382 = por %p380, %p381
      %s384 = sadd.s32 %s383, 1
      %p387 = scmp.eq.s32.totalorder %s40, 1
      %p388 = scmp.ne.s32.totalorder %s383, %s385
      %p389 = scmp.eq.s32.totalorder %s40, 0
      %p390 = por %p388, %p389
      %p391 = scmp.ne.s32.totalorder %s383, %s385
      %p392 = scmp.eq.s32.totalorder %s45, 1
      %p393 = por %p391, %p392
      %p394 = scmp.ne.s32.totalorder %s385, %s386
      %p395 = scmp.eq.s32.totalorder %s45, 0
      %p396 = por %p394, %p395
      %p397 = scmp.ne.s32.totalorder %s385, %s386
      %p398 = scmp.eq.s32.totalorder %s46, 1
      %p399 = por %p397, %p398
      %p401 = scmp.ne.s32.totalorder %s386, %s400
      %p402 = scmp.eq.s32.totalorder %s46, 0
      %p403 = por %p401, %p402
      %s405 = sadd.s32 %s404, 1
      %p408 = scmp.eq.s32.totalorder %s40, 1
      %p409 = scmp.ne.s32.totalorder %s404, %s406
      %p410 = scmp.eq.s32.totalorder %s40, 0
      %p411 = por %p409, %p410
      %p412 = scmp.ne.s32.totalorder %s404, %s406
      %p413 = scmp.eq.s32.totalorder %s45, 1
      %p414 = por %p412, %p413
      %p415 = scmp.ne.s32.totalorder %s406, %s407
      %p416 = scmp.eq.s32.totalorder %s45, 0
      %p417 = por %p415, %p416
      %p418 = scmp.ne.s32.totalorder %s406, %s407
      %p419 = scmp.eq.s32.totalorder %s46, 1
      %p420 = por %p418, %p419
      %p422 = scmp.ne.s32.totalorder %s407, %s421
      %p423 = scmp.eq.s32.totalorder %s46, 0
      %p424 = por %p422, %p423
      %s426 = sadd.s32 %s425, 1
      %p429 = scmp.eq.s32.totalorder %s40, 1
      %p430 = scmp.ne.s32.totalorder %s425, %s427
      %p431 = scmp.eq.s32.totalorder %s40, 0
      %p432 = por %p430, %p431
      %p433 = scmp.ne.s32.totalorder %s425, %s427
      %p434 = scmp.eq.s32.totalorder %s45, 1
      %p435 = por %p433, %p434
      %p436 = scmp.ne.s32.totalorder %s427, %s428
      %p437 = scmp.eq.s32.totalorder %s45, 0
      %p438 = por %p436, %p437
      %p439 = scmp.ne.s32.totalorder %s427, %s428
      %p440 = scmp.eq.s32.totalorder %s46, 1
      %p441 = por %p439, %p440
      %p443 = scmp.ne.s32.totalorder %s428, %s442
      %p444 = scmp.eq.s32.totalorder %s46, 0
      %p445 = por %p443, %p444
      %s447 = sadd.s32 %s446, 1
      %p450 = scmp.eq.s32.totalorder %s40, 1
      %p451 = scmp.ne.s32.totalorder %s446, %s448
      %p452 = scmp.eq.s32.totalorder %s40, 0
      %p453 = por %p451, %p452
      %p454 = scmp.ne.s32.totalorder %s446, %s448
      %p455 = scmp.eq.s32.totalorder %s45, 1
      %p456 = por %p454, %p455
      %p457 = scmp.ne.s32.totalorder %s448, %s449
      %p458 = scmp.eq.s32.totalorder %s45, 0
      %p459 = por %p457, %p458
      %p460 = scmp.ne.s32.totalorder %s448, %s449
      %p461 = scmp.eq.s32.totalorder %s46, 1
      %p462 = por %p460, %p461
      %p464 = scmp.ne.s32.totalorder %s449, %s463
      %p465 = scmp.eq.s32.totalorder %s46, 0
      %p466 = por %p464, %p465
      %s468 = sadd.s32 %s467, 1
      %p471 = scmp.eq.s32.totalorder %s40, 1
      %p472 = scmp.ne.s32.totalorder %s467, %s469
      %p473 = scmp.eq.s32.totalorder %s40, 0
      %p474 = por %p472, %p473
      %p475 = scmp.ne.s32.totalorder %s467, %s469
      %p476 = scmp.eq.s32.totalorder %s45, 1
      %p477 = por %p475, %p476
      %p478 = scmp.ne.s32.totalorder %s469, %s470
      %p479 = scmp.eq.s32.totalorder %s45, 0
      %p480 = por %p478, %p479
      %p481 = scmp.ne.s32.totalorder %s469, %s470
      %p482 = scmp.eq.s32.totalorder %s46, 1
      %p483 = por %p481, %p482
      %p485 = scmp.ne.s32.totalorder %s470, %s484
      %p486 = scmp.eq.s32.totalorder %s46, 0
      %p487 = por %p485, %p486
      %s489 = sadd.s32 %s488, 1
      %p492 = scmp.eq.s32.totalorder %s40, 1
      %p493 = scmp.ne.s32.totalorder %s488, %s490
      %p494 = scmp.eq.s32.totalorder %s40, 0
      %p495 = por %p493, %p494
      %p496 = scmp.ne.s32.totalorder %s488, %s490
      %p497 = scmp.eq.s32.totalorder %s45, 1
      %p498 = por %p496, %p497
      %p499 = scmp.ne.s32.totalorder %s490, %s491
      %p500 = scmp.eq.s32.totalorder %s45, 0
      %p501 = por %p499, %p500
      %p502 = scmp.ne.s32.totalorder %s490, %s491
      %p503 = scmp.eq.s32.totalorder %s46, 1
      %p504 = por %p502, %p503
      %p506 = scmp.ne.s32.totalorder %s491, %s505
      %p507 = scmp.eq.s32.totalorder %s46, 0
      %p508 = por %p506, %p507
      %s509 = ssub.s32 %s40, %s47
      %p510 = scmp.eq.s32.totalorder %s509, 0
      %s512 = sadd.s32 %s511, 1
      %s513 = scalar_select %p510, %s511, %s512
      %p516 = pneg %p510
      %p517 = scmp.eq.s32.totalorder %s40, 1
      %p518 = por %p516, %p517
      %p519 = scmp.ne.s32.totalorder %s511, %s514
      %p520 = scmp.eq.s32.totalorder %s40, 0
      %p521 = por %p519, %p520
      %p522 = scmp.ne.s32.totalorder %s511, %s514
      %p523 = scmp.eq.s32.totalorder %s45, 1
      %p524 = por %p522, %p523
      %p525 = scmp.ne.s32.totalorder %s514, %s515
      %p526 = scmp.eq.s32.totalorder %s45, 0
      %p527 = por %p525, %p526
      %p528 = scmp.ne.s32.totalorder %s514, %s515
      %p529 = scmp.eq.s32.totalorder %s46, 1
      %p530 = por %p528, %p529
      %p532 = scmp.ne.s32.totalorder %s515, %s531
      %p533 = scmp.eq.s32.totalorder %s46, 0
      %p534 = por %p532, %p533
      %p535 = scmp.le.s32.totalorder 1, %s40
      %p536 = scmp.lt.s32.totalorder %s40, 3
      %p537 = pnand %p535, %p536
      %p538 = pneg %p537
      // Predicated region
      $region9: #{tpu_custom_call.1} parent=5 // pred_check
        _
      $region10: #{tpu_custom_call.1} parent=5 // pred_check_branch
        %540 = sbr.rel (%p537) target = $region12
      $region11: #{tpu_custom_call.1} parent=5 // pred_region
        %s541 = ssub.s32 %s40, 1
        // Predicated region
        $region13: #{tpu_custom_call.1} parent=11 // pred_check
          %p542 = pneg %p165
        $region14: #{tpu_custom_call.1} parent=11 // pred_check_branch
          %544 = sbr.rel (%p542) target = $region16
        $region15: #{tpu_custom_call.1} parent=11 // pred_region
          _
        $region16: #{tpu_custom_call.1} parent=11 // pred_fallthru
          _
        // Predicated region
        $region17: #{tpu_custom_call.1} parent=11 // pred_check
          %p545 = pneg %p186
        $region18: #{tpu_custom_call.1} parent=11 // pred_check_branch
          %547 = sbr.rel (%p545) target = $region20
        $region19: #{tpu_custom_call.1} parent=11 // pred_region
          _
        $region20: #{tpu_custom_call.1} parent=11 // pred_fallthru
          _
        // Predicated region
        $region21: #{tpu_custom_call.1} parent=11 // pred_check
          %p548 = pneg %p207
        $region22: #{tpu_custom_call.1} parent=11 // pred_check_branch
          %550 = sbr.rel (%p548) target = $region24
        $region23: #{tpu_custom_call.1} parent=11 // pred_region
          _
        $region24: #{tpu_custom_call.1} parent=11 // pred_fallthru
          _
        // Predicated region
        $region25: #{tpu_custom_call.1} parent=11 // pred_check
          %p551 = pneg %p228
        $region26: #{tpu_custom_call.1} parent=11 // pred_check_branch
          %553 = sbr.rel (%p551) target = $region28
        $region27: #{tpu_custom_call.1} parent=11 // pred_region
          _
        $region28: #{tpu_custom_call.1} parent=11 // pred_fallthru
          _
        // Predicated region
        $region29: #{tpu_custom_call.1} parent=11 // pred_check
          %p554 = pneg %p249
        $region30: #{tpu_custom_call.1} parent=11 // pred_check_branch
          %556 = sbr.rel (%p554) target = $region32
        $region31: #{tpu_custom_call.1} parent=11 // pred_region
          _
        $region32: #{tpu_custom_call.1} parent=11 // pred_fallthru
          _
        // Predicated region
        $region33: #{tpu_custom_call.1} parent=11 // pred_check
          %p557 = pneg %p270
        $region34: #{tpu_custom_call.1} parent=11 // pred_check_branch
          %559 = sbr.rel (%p557) target = $region36
        $region35: #{tpu_custom_call.1} parent=11 // pred_region
          _
        $region36: #{tpu_custom_call.1} parent=11 // pred_fallthru
          _
        // Predicated region
        $region37: #{tpu_custom_call.1} parent=11 // pred_check
          %p560 = pneg %p291
        $region38: #{tpu_custom_call.1} parent=11 // pred_check_branch
          %562 = sbr.rel (%p560) target = $region40
        $region39: #{tpu_custom_call.1} parent=11 // pred_region
          _
        $region40: #{tpu_custom_call.1} parent=11 // pred_fallthru
          _
        // Predicated region
        $region41: #{tpu_custom_call.1} parent=11 // pred_check
          %p563 = pneg %p312
        $region42: #{tpu_custom_call.1} parent=11 // pred_check_branch
          %565 = sbr.rel (%p563) target = $region44
        $region43: #{tpu_custom_call.1} parent=11 // pred_region
          _
        $region44: #{tpu_custom_call.1} parent=11 // pred_fallthru
          _
        // Predicated region
        $region45: #{tpu_custom_call.1} parent=11 // pred_check
          %p566 = pneg %p333
        $region46: #{tpu_custom_call.1} parent=11 // pred_check_branch
          %568 = sbr.rel (%p566) target = $region48
        $region47: #{tpu_custom_call.1} parent=11 // pred_region
          %s570 = ssub.s32 32768, 32768
          %571 = vsyncadd [#allocation8], %s570
          %s572 = sshll.u32 [#allocation9], 4
          %s573 = int_to_ptr.vmem [resolvable:$true] %s572
          %578 = dma.hbm_to_vmem [thread:$0]  %s12, 32768, %s573, [#allocation8], 1024, 1024, 64
        $region48: #{tpu_custom_call.1} parent=11 // pred_fallthru
          _
        // Predicated region
        $region49: #{tpu_custom_call.1} parent=11 // pred_check
          %p579 = pneg %p354
        $region50: #{tpu_custom_call.1} parent=11 // pred_check_branch
          %581 = sbr.rel (%p579) target = $region52
        $region51: #{tpu_custom_call.1} parent=11 // pred_region
          _
        $region52: #{tpu_custom_call.1} parent=11 // pred_fallthru
          _
        // Predicated region
        $region53: #{tpu_custom_call.1} parent=11 // pred_check
          %p582 = pneg %p375
        $region54: #{tpu_custom_call.1} parent=11 // pred_check_branch
          %584 = sbr.rel (%p582) target = $region56
        $region55: #{tpu_custom_call.1} parent=11 // pred_region
          _
        $region56: #{tpu_custom_call.1} parent=11 // pred_fallthru
          _
        // Predicated region
        $region57: #{tpu_custom_call.1} parent=11 // pred_check
          %p585 = pneg %p396
        $region58: #{tpu_custom_call.1} parent=11 // pred_check_branch
          %587 = sbr.rel (%p585) target = $region60
        $region59: #{tpu_custom_call.1} parent=11 // pred_region
          %s589 = ssub.s32 512, 512
          %590 = vsyncadd [#allocation11], %s589
          %s592 = sshll.u32 [#allocation10], 4
          %s593 = int_to_ptr.vmem [resolvable:$true] %s592
          %595 = dma.hbm_to_vmem [thread:$0]  %s15, 512, %s593, [#allocation11]
        $region60: #{tpu_custom_call.1} parent=11 // pred_fallthru
          _
        // Predicated region
        $region61: #{tpu_custom_call.1} parent=11 // pred_check
          %p596 = pneg %p417
        $region62: #{tpu_custom_call.1} parent=11 // pred_check_branch
          %598 = sbr.rel (%p596) target = $region64
        $region63: #{tpu_custom_call.1} parent=11 // pred_region
          _
        $region64: #{tpu_custom_call.1} parent=11 // pred_fallthru
          _
        // Predicated region
        $region65: #{tpu_custom_call.1} parent=11 // pred_check
          %p599 = pneg %p438
        $region66: #{tpu_custom_call.1} parent=11 // pred_check_branch
          %601 = sbr.rel (%p599) target = $region68
        $region67: #{tpu_custom_call.1} parent=11 // pred_region
          _
        $region68: #{tpu_custom_call.1} parent=11 // pred_fallthru
          _
        // Predicated region
        $region69: #{tpu_custom_call.1} parent=11 // pred_check
          %p602 = pneg %p459
        $region70: #{tpu_custom_call.1} parent=11 // pred_check_branch
          %604 = sbr.rel (%p602) target = $region72
        $region71: #{tpu_custom_call.1} parent=11 // pred_region
          _
        $region72: #{tpu_custom_call.1} parent=11 // pred_fallthru
          _
        // Predicated region
        $region73: #{tpu_custom_call.1} parent=11 // pred_check
          %p605 = pneg %p480
        $region74: #{tpu_custom_call.1} parent=11 // pred_check_branch
          %607 = sbr.rel (%p605) target = $region76
        $region75: #{tpu_custom_call.1} parent=11 // pred_region
          _
        $region76: #{tpu_custom_call.1} parent=11 // pred_fallthru
          _
        // Predicated region
        $region77: #{tpu_custom_call.1} parent=11 // pred_check
          %p608 = pneg %p501
        $region78: #{tpu_custom_call.1} parent=11 // pred_check_branch
          %610 = sbr.rel (%p608) target = $region80
        $region79: #{tpu_custom_call.1} parent=11 // pred_region
          _
        $region80: #{tpu_custom_call.1} parent=11 // pred_fallthru
          _
      $region12: #{tpu_custom_call.1} parent=5 // pred_fallthru
        _
      %p611 = scmp.lt.s32.totalorder %s40, 2
      // Predicated region
      $region81: #{tpu_custom_call.1} parent=5 // pred_check
        %p612 = pneg %p611
      $region82: #{tpu_custom_call.1} parent=5 // pred_check_branch
        %614 = sbr.rel (%p612) target = $region84
      $region83: #{tpu_custom_call.1} parent=5 // pred_region
        // Predicated region
        $region85: #{tpu_custom_call.1} parent=83 // pred_check
          %p615 = pneg %p60
        $region86: #{tpu_custom_call.1} parent=83 // pred_check_branch
          %617 = sbr.rel (%p615) target = $region88
        $region87: #{tpu_custom_call.1} parent=83 // pred_region
          %s618 = sand.u32 %s50, 1
          %s619 = scalar_lea.sflag [#allocation6], %s618
          %s620 = sand.u32 %s50, 1
          %s621 = smul.addr %s620, 32
          %s622 = scalar_lea.vmem [#allocation5], %s621
          %s624 = ssub.s32 512, 512
          %625 = vsyncadd %s619, %s624
          %s626 = smul.addr %s40, 4
          %s627 = smul.addr %s626, 128
          %s628 = scalar_lea.hbm %s0, %s627
          %s629 = sshll.u32 %s622, 4
          %s630 = int_to_ptr.vmem [resolvable:$true] %s629
          %635 = dma.hbm_to_vmem [thread:$0]  %s628, 512, %s630, %s619, 256, 256, 16
        $region88: #{tpu_custom_call.1} parent=83 // pred_fallthru
          _
        // Predicated region
        $region89: #{tpu_custom_call.1} parent=83 // pred_check
          %p636 = pneg %p86
        $region90: #{tpu_custom_call.1} parent=83 // pred_check_branch
          %638 = sbr.rel (%p636) target = $region92
        $region91: #{tpu_custom_call.1} parent=83 // pred_region
          %s639 = sand.u32 %s40, 1
          %s640 = scalar_lea.sflag [#allocation8], %s639
          %s641 = sand.u32 %s76, 1
          %s642 = smul.addr %s641, 32
          %s643 = scalar_lea.vmem [#allocation7], %s642
          %s645 = ssub.s32 512, 512
          %646 = vsyncadd %s640, %s645
          %s647 = smul.addr %s40, 4
          %s648 = smul.addr %s647, 128
          %s649 = scalar_lea.hbm %s1, %s648
          %s650 = sshll.u32 %s643, 4
          %s651 = int_to_ptr.vmem [resolvable:$true] %s650
          %656 = dma.hbm_to_vmem [thread:$0]  %s649, 512, %s651, %s640, 128, 128, 8
        $region92: #{tpu_custom_call.1} parent=83 // pred_fallthru
          _
        // Predicated region
        $region93: #{tpu_custom_call.1} parent=83 // pred_check
          %p657 = pneg %p112
        $region94: #{tpu_custom_call.1} parent=83 // pred_check_branch
          %659 = sbr.rel (%p657) target = $region96
        $region95: #{tpu_custom_call.1} parent=83 // pred_region
          %p660 = scmp.lt.s32.totalorder %s40, 1
          %s661 = scalar_select %p660, %s40, 1
          %s662 = smul.addr %s661, 8
          %s663 = smul.addr %s662, 8
          %s664 = scalar_lea.vmem %s2, %s663
        $region96: #{tpu_custom_call.1} parent=83 // pred_fallthru
          _
        // Predicated region
        $region97: #{tpu_custom_call.1} parent=83 // pred_check
          %p665 = pneg %p138
        $region98: #{tpu_custom_call.1} parent=83 // pred_check_branch
          %667 = sbr.rel (%p665) target = $region100
        $region99: #{tpu_custom_call.1} parent=83 // pred_region
          %p668 = scmp.lt.s32.totalorder %s40, 1
          %s669 = scalar_select %p668, %s40, 1
          %s670 = smul.addr %s669, 16
          %s671 = smul.addr %s670, 8
          %s672 = scalar_lea.vmem %s3, %s671
        $region100: #{tpu_custom_call.1} parent=83 // pred_fallthru
          _
      $region84: #{tpu_custom_call.1} parent=5 // pred_fallthru
        _
      %p673 = scmp.le.s32.totalorder 1, %s40
      %p674 = scmp.lt.s32.totalorder %s40, 3
      %p675 = pnand %p673, %p674
      %p676 = pneg %p675
      // Predicated region
      $region101: #{tpu_custom_call.1} parent=5 // pred_check
        _
      $region102: #{tpu_custom_call.1} parent=5 // pred_check_branch
        %678 = sbr.rel (%p675) target = $region104
      $region103: #{tpu_custom_call.1} parent=5 // pred_region
        %s679 = ssub.s32 %s40, 1
        %s680 = sand.u32 %s53, 1
        %s681 = scalar_lea.sflag [#allocation6], %s680
        %s682 = sand.u32 %s53, 1
        %s683 = smul.addr %s682, 32
        %s684 = scalar_lea.vmem [#allocation5], %s683
        // Predicated region
        $region105: #{tpu_custom_call.1} parent=103 // pred_check
          %p685 = pneg %p66
        $region106: #{tpu_custom_call.1} parent=103 // pred_check_branch
          %687 = sbr.rel (%p685) target = $region108
        $region107: #{tpu_custom_call.1} parent=103 // pred_region
          %688 = dma.done %s681, 512
        $region108: #{tpu_custom_call.1} parent=103 // pred_fallthru
          _
        %s689 = sand.u32 %s45, 1
        %s690 = scalar_lea.sflag [#allocation8], %s689
        %s691 = sand.u32 %s79, 1
        %s692 = smul.addr %s691, 32
        %s693 = scalar_lea.vmem [#allocation7], %s692
        // Predicated region
        $region109: #{tpu_custom_call.1} parent=103 // pred_check
          %p694 = pneg %p92
        $region110: #{tpu_custom_call.1} parent=103 // pred_check_branch
          %696 = sbr.rel (%p694) target = $region112
        $region111: #{tpu_custom_call.1} parent=103 // pred_region
          %697 = dma.done %s690, 512
        $region112: #{tpu_custom_call.1} parent=103 // pred_fallthru
          _
        // Predicated region
        $region113: #{tpu_custom_call.1} parent=103 // pred_check
          %p698 = pneg %p333
        $region114: #{tpu_custom_call.1} parent=103 // pred_check_branch
          %700 = sbr.rel (%p698) target = $region116
        $region115: #{tpu_custom_call.1} parent=103 // pred_region
          %701 = dma.done [#allocation8], 32768
        $region116: #{tpu_custom_call.1} parent=103 // pred_fallthru
          _
        // Predicated region
        $region117: #{tpu_custom_call.1} parent=103 // pred_check
          %p702 = pneg %p396
        $region118: #{tpu_custom_call.1} parent=103 // pred_check_branch
          %704 = sbr.rel (%p702) target = $region120
        $region119: #{tpu_custom_call.1} parent=103 // pred_region
          %705 = dma.done [#allocation11], 512
        $region120: #{tpu_custom_call.1} parent=103 // pred_fallthru
          _
        %s706 = sand.u32 %s53, 1
        %s707 = scalar_lea.sflag [#allocation6], %s706
        %s708 = sand.u32 %s53, 1
        %s709 = smul.addr %s708, 32
        %s710 = scalar_lea.vmem [#allocation5], %s709
        %p711 = pneg %p66
        %p712 = pneg %p63
        %s713 = sand.u32 %s45, 1
        %s714 = scalar_lea.sflag [#allocation8], %s713
        %s715 = sand.u32 %s79, 1
        %s716 = smul.addr %s715, 32
        %s717 = scalar_lea.vmem [#allocation7], %s716
        %p718 = pneg %p92
        %p719 = pneg %p89
        %p720 = scmp.lt.s32.totalorder %s45, 1
        %s721 = scalar_select %p720, %s45, 1
        %s722 = smul.addr %s721, 8
        %s723 = smul.addr %s722, 8
        %s724 = scalar_lea.vmem %s2, %s723
        %p725 = pneg %p118
        %p726 = pneg %p115
        %p727 = scmp.lt.s32.totalorder %s45, 1
        %s728 = scalar_select %p727, %s45, 1
        %s729 = smul.addr %s728, 16
        %s730 = smul.addr %s729, 8
        %s731 = scalar_lea.vmem %s3, %s730
        %p732 = pneg %p144
        %p733 = pneg %p141
        %p734 = pneg %p165
        %p735 = pneg %p162
        %p736 = pneg %p186
        %p737 = pneg %p183
        %p738 = pneg %p207
        %p739 = pneg %p204
        %p740 = pneg %p228
        %p741 = pneg %p225
        %p742 = pneg %p249
        %p743 = pneg %p246
        %p744 = pneg %p270
        %p745 = pneg %p267
        %p746 = pneg %p291
        %p747 = pneg %p288
        %p748 = pneg %p312
        %p749 = pneg %p309
        %p750 = pneg %p333
        %p751 = pneg %p330
        %p752 = pneg %p354
        %p753 = pneg %p351
        %p754 = pneg %p375
        %p755 = pneg %p372
        %p756 = pneg %p396
        %p757 = pneg %p393
        %p758 = pneg %p417
        %p759 = pneg %p414
        %p760 = pneg %p438
        %p761 = pneg %p435
        %p762 = pneg %p459
        %p763 = pneg %p456
        %p764 = pneg %p480
        %p765 = pneg %p477
        %p766 = pneg %p501
        %p767 = pneg %p498
        %p768 = pneg %p527
        %p769 = pneg %p524
        %p770 = scmp.lt.s32.totalorder %s45, 1
        %s771 = scalar_select %p770, %s45, 1
        %s772 = smul.addr %s771, 16
        %s773 = smul.addr %s772, 8
        %s774 = scalar_lea.vmem %s21, %s773
        %p775 = scmp.lt.s32.totalorder %s45, 1
        %s776 = scalar_select %p775, %s45, 1
        %s777 = smul.addr %s776, 8
        %s778 = smul.addr %s777, 8
        %s779 = scalar_lea.vmem %s2, %s778
        %p780 = scmp.lt.s32.totalorder %s45, 1
        %s781 = scalar_select %p780, %s45, 1
        %s782 = smul.addr %s781, 16
        %s783 = smul.addr %s782, 8
        %s784 = scalar_lea.vmem %s3, %s783
        %p785 = scmp.lt.s32.totalorder %s45, 1
        %s786 = scalar_select %p785, %s45, 1
        %s787 = smul.addr %s786, 16
        %s788 = smul.addr %s787, 8
        %s789 = scalar_lea.vmem %s21, %s788
        %v790 = vld [vmem:[%s684] sm:$0xff]
        %v791 = vld [vmem:[%s684 + $0x8] sm:$0xff]
        %v792 = vld [vmem:[%s684 + $0x10] sm:$0xff]
        %v793 = vld [vmem:[%s684 + $0x18] sm:$0xff]
        %v794 = vld [vmem:[%s4] sm:$0xff]
        %v795 = vld [vmem:[%s4 + $0x8] sm:$0xff]
        %797 = vset.pattern.permute.xlu0 0
        %798 = vperm.xlu0 %797, %v794
        %v799 = vpop.permute.xlu0 %798
        %802 = vset.pattern.permute.xlu0 0
        %803 = vperm.xlu0 %802, %v795
        %v804 = vpop.permute.xlu0 %803
        %v806 = vmul.f32 %v790, %v799
        %v807 = vmul.f32 %v791, %v799
        %v808 = vmul.f32 %v792, %v804
        %v809 = vmul.f32 %v793, %v804
        %v810 = vadd.f32 %v806, %v808
        %v811 = vrot.slane %v810, 4
        %v812 = vadd.f32 %v810, %v811
        %v813 = vrot.slane %v812, 2
        %v814 = vadd.f32 %v812, %v813
        %v815 = vrot.slane %v814, 1
        %v816 = vadd.f32 %v814, %v815
        %v817 = vadd.f32 %v807, %v809
        %v818 = vrot.slane %v817, 4
        %v819 = vadd.f32 %v817, %v818
        %v820 = vrot.slane %v819, 2
        %v821 = vadd.f32 %v819, %v820
        %v822 = vrot.slane %v821, 1
        %v823 = vadd.f32 %v821, %v822
        %v824 = vld [vmem:[#allocation2] sm:$0x1]
        %826 = vset.pattern.permute.xlu0 0
        %827 = vperm.xlu0 %826, %v824
        %v828 = vpop.permute.xlu0 %827
        %v830 = vlaneseq
        %v831 = vshrl.u32 %v830, 7
        %v832 = vsub.s32 0, %v831
        %v833 = vrot.slane %v828, %v832
        %v834 = vadd.f32 %v816, %v833
        %v835 = vadd.f32 %v823, %v833
        %v836 = vmax.f32 %v834, 0.0
        %v837 = vmax.f32 %v835, 0.0
        %v838 = vld [vmem:[#allocation9] sm:$0xff]
        %v839 = vld [vmem:[#allocation9 + $0x8] sm:$0xff]
        %v840 = vld [vmem:[#allocation9 + $0x10] sm:$0xff]
        %v841 = vld [vmem:[#allocation9 + $0x18] sm:$0xff]
        %v842 = vld [vmem:[#allocation9 + $0x20] sm:$0xff]
        %v843 = vld [vmem:[#allocation9 + $0x28] sm:$0xff]
        %v844 = vld [vmem:[#allocation9 + $0x30] sm:$0xff]
        %v845 = vld [vmem:[#allocation9 + $0x38] sm:$0xff]
        %v846 = vld [vmem:[#allocation9 + $0x40] sm:$0xff]
        %v847 = vld [vmem:[#allocation9 + $0x48] sm:$0xff]
        %v848 = vld [vmem:[#allocation9 + $0x50] sm:$0xff]
        %v849 = vld [vmem:[#allocation9 + $0x58] sm:$0xff]
        %v850 = vld [vmem:[#allocation9 + $0x60] sm:$0xff]
        %v851 = vld [vmem:[#allocation9 + $0x68] sm:$0xff]
        %v852 = vld [vmem:[#allocation9 + $0x70] sm:$0xff]
        %v853 = vld [vmem:[#allocation9 + $0x78] sm:$0xff]
        %v854 = vld [vmem:[#allocation9 + $0x80] sm:$0xff]
        %v855 = vld [vmem:[#allocation9 + $0x88] sm:$0xff]
        %v856 = vld [vmem:[#allocation9 + $0x90] sm:$0xff]
        %v857 = vld [vmem:[#allocation9 + $0x98] sm:$0xff]
        %v858 = vld [vmem:[#allocation9 + $0xa0] sm:$0xff]
        %v859 = vld [vmem:[#allocation9 + $0xa8] sm:$0xff]
        %v860 = vld [vmem:[#allocation9 + $0xb0] sm:$0xff]
        %v861 = vld [vmem:[#allocation9 + $0xb8] sm:$0xff]
        %v862 = vld [vmem:[#allocation9 + $0xc0] sm:$0xff]
        %v863 = vld [vmem:[#allocation9 + $0xc8] sm:$0xff]
        %v864 = vld [vmem:[#allocation9 + $0xd0] sm:$0xff]
        %v865 = vld [vmem:[#allocation9 + $0xd8] sm:$0xff]
        %v866 = vld [vmem:[#allocation9 + $0xe0] sm:$0xff]
        %v867 = vld [vmem:[#allocation9 + $0xe8] sm:$0xff]
        %v868 = vld [vmem:[#allocation9 + $0xf0] sm:$0xff]
        %v869 = vld [vmem:[#allocation9 + $0xf8] sm:$0xff]
        %v870 = vld [vmem:[#allocation9 + $0x100] sm:$0xff]
        %v871 = vld [vmem:[#allocation9 + $0x108] sm:$0xff]
        %v872 = vld [vmem:[#allocation9 + $0x110] sm:$0xff]
        %v873 = vld [vmem:[#allocation9 + $0x118] sm:$0xff]
        %v874 = vld [vmem:[#allocation9 + $0x120] sm:$0xff]
        %v875 = vld [vmem:[#allocation9 + $0x128] sm:$0xff]
        %v876 = vld [vmem:[#allocation9 + $0x130] sm:$0xff]
        %v877 = vld [vmem:[#allocation9 + $0x138] sm:$0xff]
        %v878 = vld [vmem:[#allocation9 + $0x140] sm:$0xff]
        %v879 = vld [vmem:[#allocation9 + $0x148] sm:$0xff]
        %v880 = vld [vmem:[#allocation9 + $0x150] sm:$0xff]
        %v881 = vld [vmem:[#allocation9 + $0x158] sm:$0xff]
        %v882 = vld [vmem:[#allocation9 + $0x160] sm:$0xff]
        %v883 = vld [vmem:[#allocation9 + $0x168] sm:$0xff]
        %v884 = vld [vmem:[#allocation9 + $0x170] sm:$0xff]
        %v885 = vld [vmem:[#allocation9 + $0x178] sm:$0xff]
        %v886 = vld [vmem:[#allocation9 + $0x180] sm:$0xff]
        %v887 = vld [vmem:[#allocation9 + $0x188] sm:$0xff]
        %v888 = vld [vmem:[#allocation9 + $0x190] sm:$0xff]
        %v889 = vld [vmem:[#allocation9 + $0x198] sm:$0xff]
        %v890 = vld [vmem:[#allocation9 + $0x1a0] sm:$0xff]
        %v891 = vld [vmem:[#allocation9 + $0x1a8] sm:$0xff]
        %v892 = vld [vmem:[#allocation9 + $0x1b0] sm:$0xff]
        %v893 = vld [vmem:[#allocation9 + $0x1b8] sm:$0xff]
        %v894 = vld [vmem:[#allocation9 + $0x1c0] sm:$0xff]
        %v895 = vld [vmem:[#allocation9 + $0x1c8] sm:$0xff]
        %v896 = vld [vmem:[#allocation9 + $0x1d0] sm:$0xff]
        %v897 = vld [vmem:[#allocation9 + $0x1d8] sm:$0xff]
        %v898 = vld [vmem:[#allocation9 + $0x1e0] sm:$0xff]
        %v899 = vld [vmem:[#allocation9 + $0x1e8] sm:$0xff]
        %v900 = vld [vmem:[#allocation9 + $0x1f0] sm:$0xff]
        %v901 = vld [vmem:[#allocation9 + $0x1f8] sm:$0xff]
        %v902 = vld [vmem:[#allocation9 + $0x200] sm:$0xff]
        %v903 = vld [vmem:[#allocation9 + $0x208] sm:$0xff]
        %v904 = vld [vmem:[#allocation9 + $0x210] sm:$0xff]
        %v905 = vld [vmem:[#allocation9 + $0x218] sm:$0xff]
        %v906 = vld [vmem:[#allocation9 + $0x220] sm:$0xff]
        %v907 = vld [vmem:[#allocation9 + $0x228] sm:$0xff]
        %v908 = vld [vmem:[#allocation9 + $0x230] sm:$0xff]
        %v909 = vld [vmem:[#allocation9 + $0x238] sm:$0xff]
        %v910 = vld [vmem:[#allocation9 + $0x240] sm:$0xff]
        %v911 = vld [vmem:[#allocation9 + $0x248] sm:$0xff]
        %v912 = vld [vmem:[#allocation9 + $0x250] sm:$0xff]
        %v913 = vld [vmem:[#allocation9 + $0x258] sm:$0xff]
        %v914 = vld [vmem:[#allocation9 + $0x260] sm:$0xff]
        %v915 = vld [vmem:[#allocation9 + $0x268] sm:$0xff]
        %v916 = vld [vmem:[#allocation9 + $0x270] sm:$0xff]
        %v917 = vld [vmem:[#allocation9 + $0x278] sm:$0xff]
        %v918 = vld [vmem:[#allocation9 + $0x280] sm:$0xff]
        %v919 = vld [vmem:[#allocation9 + $0x288] sm:$0xff]
        %v920 = vld [vmem:[#allocation9 + $0x290] sm:$0xff]
        %v921 = vld [vmem:[#allocation9 + $0x298] sm:$0xff]
        %v922 = vld [vmem:[#allocation9 + $0x2a0] sm:$0xff]
        %v923 = vld [vmem:[#allocation9 + $0x2a8] sm:$0xff]
        %v924 = vld [vmem:[#allocation9 + $0x2b0] sm:$0xff]
        %v925 = vld [vmem:[#allocation9 + $0x2b8] sm:$0xff]
        %v926 = vld [vmem:[#allocation9 + $0x2c0] sm:$0xff]
        %v927 = vld [vmem:[#allocation9 + $0x2c8] sm:$0xff]
        %v928 = vld [vmem:[#allocation9 + $0x2d0] sm:$0xff]
        %v929 = vld [vmem:[#allocation9 + $0x2d8] sm:$0xff]
        %v930 = vld [vmem:[#allocation9 + $0x2e0] sm:$0xff]
        %v931 = vld [vmem:[#allocation9 + $0x2e8] sm:$0xff]
        %v932 = vld [vmem:[#allocation9 + $0x2f0] sm:$0xff]
        %v933 = vld [vmem:[#allocation9 + $0x2f8] sm:$0xff]
        %v934 = vld [vmem:[#allocation9 + $0x300] sm:$0xff]
        %v935 = vld [vmem:[#allocation9 + $0x308] sm:$0xff]
        %v936 = vld [vmem:[#allocation9 + $0x310] sm:$0xff]
        %v937 = vld [vmem:[#allocation9 + $0x318] sm:$0xff]
        %v938 = vld [vmem:[#allocation9 + $0x320] sm:$0xff]
        %v939 = vld [vmem:[#allocation9 + $0x328] sm:$0xff]
        %v940 = vld [vmem:[#allocation9 + $0x330] sm:$0xff]
        %v941 = vld [vmem:[#allocation9 + $0x338] sm:$0xff]
        %v942 = vld [vmem:[#allocation9 + $0x340] sm:$0xff]
        %v943 = vld [vmem:[#allocation9 + $0x348] sm:$0xff]
        %v944 = vld [vmem:[#allocation9 + $0x350] sm:$0xff]
        %v945 = vld [vmem:[#allocation9 + $0x358] sm:$0xff]
        %v946 = vld [vmem:[#allocation9 + $0x360] sm:$0xff]
        %v947 = vld [vmem:[#allocation9 + $0x368] sm:$0xff]
        %v948 = vld [vmem:[#allocation9 + $0x370] sm:$0xff]
        %v949 = vld [vmem:[#allocation9 + $0x378] sm:$0xff]
        %v950 = vld [vmem:[#allocation9 + $0x380] sm:$0xff]
        %v951 = vld [vmem:[#allocation9 + $0x388] sm:$0xff]
        %v952 = vld [vmem:[#allocation9 + $0x390] sm:$0xff]
        %v953 = vld [vmem:[#allocation9 + $0x398] sm:$0xff]
        %v954 = vld [vmem:[#allocation9 + $0x3a0] sm:$0xff]
        %v955 = vld [vmem:[#allocation9 + $0x3a8] sm:$0xff]
        %v956 = vld [vmem:[#allocation9 + $0x3b0] sm:$0xff]
        %v957 = vld [vmem:[#allocation9 + $0x3b8] sm:$0xff]
        %v958 = vld [vmem:[#allocation9 + $0x3c0] sm:$0xff]
        %v959 = vld [vmem:[#allocation9 + $0x3c8] sm:$0xff]
        %v960 = vld [vmem:[#allocation9 + $0x3d0] sm:$0xff]
        %v961 = vld [vmem:[#allocation9 + $0x3d8] sm:$0xff]
        %v962 = vld [vmem:[#allocation9 + $0x3e0] sm:$0xff]
        %v963 = vld [vmem:[#allocation9 + $0x3e8] sm:$0xff]
        %v964 = vld [vmem:[#allocation9 + $0x3f0] sm:$0xff]
        %v965 = vld [vmem:[#allocation9 + $0x3f8] sm:$0xff]
        %v966 = vld [vmem:[#allocation9 + $0x400] sm:$0xff]
        %v967 = vld [vmem:[#allocation9 + $0x408] sm:$0xff]
        %v968 = vld [vmem:[#allocation9 + $0x410] sm:$0xff]
        %v969 = vld [vmem:[#allocation9 + $0x418] sm:$0xff]
        %v970 = vld [vmem:[#allocation9 + $0x420] sm:$0xff]
        %v971 = vld [vmem:[#allocation9 + $0x428] sm:$0xff]
        %v972 = vld [vmem:[#allocation9 + $0x430] sm:$0xff]
        %v973 = vld [vmem:[#allocation9 + $0x438] sm:$0xff]
        %v974 = vld [vmem:[#allocation9 + $0x440] sm:$0xff]
        %v975 = vld [vmem:[#allocation9 + $0x448] sm:$0xff]
        %v976 = vld [vmem:[#allocation9 + $0x450] sm:$0xff]
        %v977 = vld [vmem:[#allocation9 + $0x458] sm:$0xff]
        %v978 = vld [vmem:[#allocation9 + $0x460] sm:$0xff]
        %v979 = vld [vmem:[#allocation9 + $0x468] sm:$0xff]
        %v980 = vld [vmem:[#allocation9 + $0x470] sm:$0xff]
        %v981 = vld [vmem:[#allocation9 + $0x478] sm:$0xff]
        %v982 = vld [vmem:[#allocation9 + $0x480] sm:$0xff]
        %v983 = vld [vmem:[#allocation9 + $0x488] sm:$0xff]
        %v984 = vld [vmem:[#allocation9 + $0x490] sm:$0xff]
        %v985 = vld [vmem:[#allocation9 + $0x498] sm:$0xff]
        %v986 = vld [vmem:[#allocation9 + $0x4a0] sm:$0xff]
        %v987 = vld [vmem:[#allocation9 + $0x4a8] sm:$0xff]
        %v988 = vld [vmem:[#allocation9 + $0x4b0] sm:$0xff]
        %v989 = vld [vmem:[#allocation9 + $0x4b8] sm:$0xff]
        %v990 = vld [vmem:[#allocation9 + $0x4c0] sm:$0xff]
        %v991 = vld [vmem:[#allocation9 + $0x4c8] sm:$0xff]
        %v992 = vld [vmem:[#allocation9 + $0x4d0] sm:$0xff]
        %v993 = vld [vmem:[#allocation9 + $0x4d8] sm:$0xff]
        %v994 = vld [vmem:[#allocation9 + $0x4e0] sm:$0xff]
        %v995 = vld [vmem:[#allocation9 + $0x4e8] sm:$0xff]
        %v996 = vld [vmem:[#allocation9 + $0x4f0] sm:$0xff]
        %v997 = vld [vmem:[#allocation9 + $0x4f8] sm:$0xff]
        %v998 = vld [vmem:[#allocation9 + $0x500] sm:$0xff]
        %v999 = vld [vmem:[#allocation9 + $0x508] sm:$0xff]
        %v1000 = vld [vmem:[#allocation9 + $0x510] sm:$0xff]
        %v1001 = vld [vmem:[#allocation9 + $0x518] sm:$0xff]
        %v1002 = vld [vmem:[#allocation9 + $0x520] sm:$0xff]
        %v1003 = vld [vmem:[#allocation9 + $0x528] sm:$0xff]
        %v1004 = vld [vmem:[#allocation9 + $0x530] sm:$0xff]
        %v1005 = vld [vmem:[#allocation9 + $0x538] sm:$0xff]
        %v1006 = vld [vmem:[#allocation9 + $0x540] sm:$0xff]
        %v1007 = vld [vmem:[#allocation9 + $0x548] sm:$0xff]
        %v1008 = vld [vmem:[#allocation9 + $0x550] sm:$0xff]
        %v1009 = vld [vmem:[#allocation9 + $0x558] sm:$0xff]
        %v1010 = vld [vmem:[#allocation9 + $0x560] sm:$0xff]
        %v1011 = vld [vmem:[#allocation9 + $0x568] sm:$0xff]
        %v1012 = vld [vmem:[#allocation9 + $0x570] sm:$0xff]
        %v1013 = vld [vmem:[#allocation9 + $0x578] sm:$0xff]
        %v1014 = vld [vmem:[#allocation9 + $0x580] sm:$0xff]
        %v1015 = vld [vmem:[#allocation9 + $0x588] sm:$0xff]
        %v1016 = vld [vmem:[#allocation9 + $0x590] sm:$0xff]
        %v1017 = vld [vmem:[#allocation9 + $0x598] sm:$0xff]
        %v1018 = vld [vmem:[#allocation9 + $0x5a0] sm:$0xff]
        %v1019 = vld [vmem:[#allocation9 + $0x5a8] sm:$0xff]
        %v1020 = vld [vmem:[#allocation9 + $0x5b0] sm:$0xff]
        %v1021 = vld [vmem:[#allocation9 + $0x5b8] sm:$0xff]
        %v1022 = vld [vmem:[#allocation9 + $0x5c0] sm:$0xff]
        %v1023 = vld [vmem:[#allocation9 + $0x5c8] sm:$0xff]
        %v1024 = vld [vmem:[#allocation9 + $0x5d0] sm:$0xff]
        %v1025 = vld [vmem:[#allocation9 + $0x5d8] sm:$0xff]
        %v1026 = vld [vmem:[#allocation9 + $0x5e0] sm:$0xff]
        %v1027 = vld [vmem:[#allocation9 + $0x5e8] sm:$0xff]
        %v1028 = vld [vmem:[#allocation9 + $0x5f0] sm:$0xff]
        %v1029 = vld [vmem:[#allocation9 + $0x5f8] sm:$0xff]
        %v1030 = vld [vmem:[#allocation9 + $0x600] sm:$0xff]
        %v1031 = vld [vmem:[#allocation9 + $0x608] sm:$0xff]
        %v1032 = vld [vmem:[#allocation9 + $0x610] sm:$0xff]
        %v1033 = vld [vmem:[#allocation9 + $0x618] sm:$0xff]
        %v1034 = vld [vmem:[#allocation9 + $0x620] sm:$0xff]
        %v1035 = vld [vmem:[#allocation9 + $0x628] sm:$0xff]
        %v1036 = vld [vmem:[#allocation9 + $0x630] sm:$0xff]
        %v1037 = vld [vmem:[#allocation9 + $0x638] sm:$0xff]
        %v1038 = vld [vmem:[#allocation9 + $0x640] sm:$0xff]
        %v1039 = vld [vmem:[#allocation9 + $0x648] sm:$0xff]
        %v1040 = vld [vmem:[#allocation9 + $0x650] sm:$0xff]
        %v1041 = vld [vmem:[#allocation9 + $0x658] sm:$0xff]
        %v1042 = vld [vmem:[#allocation9 + $0x660] sm:$0xff]
        %v1043 = vld [vmem:[#allocation9 + $0x668] sm:$0xff]
        %v1044 = vld [vmem:[#allocation9 + $0x670] sm:$0xff]
        %v1045 = vld [vmem:[#allocation9 + $0x678] sm:$0xff]
        %v1046 = vld [vmem:[#allocation9 + $0x680] sm:$0xff]
        %v1047 = vld [vmem:[#allocation9 + $0x688] sm:$0xff]
        %v1048 = vld [vmem:[#allocation9 + $0x690] sm:$0xff]
        %v1049 = vld [vmem:[#allocation9 + $0x698] sm:$0xff]
        %v1050 = vld [vmem:[#allocation9 + $0x6a0] sm:$0xff]
        %v1051 = vld [vmem:[#allocation9 + $0x6a8] sm:$0xff]
        %v1052 = vld [vmem:[#allocation9 + $0x6b0] sm:$0xff]
        %v1053 = vld [vmem:[#allocation9 + $0x6b8] sm:$0xff]
        %v1054 = vld [vmem:[#allocation9 + $0x6c0] sm:$0xff]
        %v1055 = vld [vmem:[#allocation9 + $0x6c8] sm:$0xff]
        %v1056 = vld [vmem:[#allocation9 + $0x6d0] sm:$0xff]
        %v1057 = vld [vmem:[#allocation9 + $0x6d8] sm:$0xff]
        %v1058 = vld [vmem:[#allocation9 + $0x6e0] sm:$0xff]
        %v1059 = vld [vmem:[#allocation9 + $0x6e8] sm:$0xff]
        %v1060 = vld [vmem:[#allocation9 + $0x6f0] sm:$0xff]
        %v1061 = vld [vmem:[#allocation9 + $0x6f8] sm:$0xff]
        %v1062 = vld [vmem:[#allocation9 + $0x700] sm:$0xff]
        %v1063 = vld [vmem:[#allocation9 + $0x708] sm:$0xff]
        %v1064 = vld [vmem:[#allocation9 + $0x710] sm:$0xff]
        %v1065 = vld [vmem:[#allocation9 + $0x718] sm:$0xff]
        %v1066 = vld [vmem:[#allocation9 + $0x720] sm:$0xff]
        %v1067 = vld [vmem:[#allocation9 + $0x728] sm:$0xff]
        %v1068 = vld [vmem:[#allocation9 + $0x730] sm:$0xff]
        %v1069 = vld [vmem:[#allocation9 + $0x738] sm:$0xff]
        %v1070 = vld [vmem:[#allocation9 + $0x740] sm:$0xff]
        %v1071 = vld [vmem:[#allocation9 + $0x748] sm:$0xff]
        %v1072 = vld [vmem:[#allocation9 + $0x750] sm:$0xff]
        %v1073 = vld [vmem:[#allocation9 + $0x758] sm:$0xff]
        %v1074 = vld [vmem:[#allocation9 + $0x760] sm:$0xff]
        %v1075 = vld [vmem:[#allocation9 + $0x768] sm:$0xff]
        %v1076 = vld [vmem:[#allocation9 + $0x770] sm:$0xff]
        %v1077 = vld [vmem:[#allocation9 + $0x778] sm:$0xff]
        %v1078 = vld [vmem:[#allocation9 + $0x780] sm:$0xff]
        %v1079 = vld [vmem:[#allocation9 + $0x788] sm:$0xff]
        %v1080 = vld [vmem:[#allocation9 + $0x790] sm:$0xff]
        %v1081 = vld [vmem:[#allocation9 + $0x798] sm:$0xff]
        %v1082 = vld [vmem:[#allocation9 + $0x7a0] sm:$0xff]
        %v1083 = vld [vmem:[#allocation9 + $0x7a8] sm:$0xff]
        %v1084 = vld [vmem:[#allocation9 + $0x7b0] sm:$0xff]
        %v1085 = vld [vmem:[#allocation9 + $0x7b8] sm:$0xff]
        %v1086 = vld [vmem:[#allocation9 + $0x7c0] sm:$0xff]
        %v1087 = vld [vmem:[#allocation9 + $0x7c8] sm:$0xff]
        %v1088 = vld [vmem:[#allocation9 + $0x7d0] sm:$0xff]
        %v1089 = vld [vmem:[#allocation9 + $0x7d8] sm:$0xff]
        %v1090 = vld [vmem:[#allocation9 + $0x7e0] sm:$0xff]
        %v1091 = vld [vmem:[#allocation9 + $0x7e8] sm:$0xff]
        %v1092 = vld [vmem:[#allocation9 + $0x7f0] sm:$0xff]
        %v1093 = vld [vmem:[#allocation9 + $0x7f8] sm:$0xff]
        %1094 = vmatprep.subr.mxu0 %v959
        %1095 = vmatpush1.msra.mxu0 %v958
        %1096 = vmatprep.subr.mxu0 %v951
        %1097 = vmatpush1.msra.mxu0 %v950
        %1098 = vmatprep.subr.mxu0 %v943
        %1099 = vmatpush1.msra.mxu0 %v942
        %1100 = vmatprep.subr.mxu0 %v935
        %1101 = vmatpush1.msra.mxu0 %v934
        %1102 = vmatprep.subr.mxu0 %v927
        %1103 = vmatpush1.msra.mxu0 %v926
        %1104 = vmatprep.subr.mxu0 %v919
        %1105 = vmatpush1.msra.mxu0 %v918
        %1106 = vmatprep.subr.mxu0 %v911
        %1107 = vmatpush1.msra.mxu0 %v910
        %1108 = vmatprep.subr.mxu0 %v903
        %1109 = vmatpush1.msra.mxu0 %v902
        %1110 = vmatprep.subr.mxu0 %v895
        %1111 = vmatpush1.msra.mxu0 %v894
        %1112 = vmatprep.subr.mxu0 %v887
        %1113 = vmatpush1.msra.mxu0 %v886
        %1114 = vmatprep.subr.mxu0 %v879
        %1115 = vmatpush1.msra.mxu0 %v878
        %1116 = vmatprep.subr.mxu0 %v871
        %1117 = vmatpush1.msra.mxu0 %v870
        %1118 = vmatprep.subr.mxu0 %v863
        %1119 = vmatpush1.msra.mxu0 %v862
        %1120 = vmatprep.subr.mxu0 %v855
        %1121 = vmatpush1.msra.mxu0 %v854
        %1122 = vmatprep.subr.mxu0 %v847
        %1123 = vmatpush1.msra.mxu0 %v846
        %1124 = vmatprep.subr.mxu0 %v839
        %1125 = vmatpush1.msra.mxu0 %v838
        %1126 = vmatprep.subr.mxu0 %v1087
        %1127 = vmatpush2.msra.mxu0 %v1086
        %1128 = vmatprep.subr.mxu0 %v1079
        %1129 = vmatpush2.msra.mxu0 %v1078
        %1130 = vmatprep.subr.mxu0 %v1071
        %1131 = vmatpush2.msra.mxu0 %v1070
        %1132 = vmatprep.subr.mxu0 %v1063
        %1133 = vmatpush2.msra.mxu0 %v1062
        %1134 = vmatprep.subr.mxu0 %v1055
        %1135 = vmatpush2.msra.mxu0 %v1054
        %1136 = vmatprep.subr.mxu0 %v1047
        %1137 = vmatpush2.msra.mxu0 %v1046
        %1138 = vmatprep.subr.mxu0 %v1039
        %1139 = vmatpush2.msra.mxu0 %v1038
        %1140 = vmatprep.subr.mxu0 %v1031
        %1141 = vmatpush2.msra.mxu0 %v1030
        %1142 = vmatprep.subr.mxu0 %v1023
        %1143 = vmatpush2.msra.mxu0 %v1022
        %1144 = vmatprep.subr.mxu0 %v1015
        %1145 = vmatpush2.msra.mxu0 %v1014
        %1146 = vmatprep.subr.mxu0 %v1007
        %1147 = vmatpush2.msra.mxu0 %v1006
        %1148 = vmatprep.subr.mxu0 %v999
        %1149 = vmatpush2.msra.mxu0 %v998
        %1150 = vmatprep.subr.mxu0 %v991
        %1151 = vmatpush2.msra.mxu0 %v990
        %1152 = vmatprep.subr.mxu0 %v983
        %1153 = vmatpush2.msra.mxu0 %v982
        %1154 = vmatprep.subr.mxu0 %v975
        %1155 = vmatpush2.msra.mxu0 %v974
        %1156 = vmatprep.subr.mxu0 %v967
        %1157 = vmatpush2.msra.mxu0 %v966
        %1158 = vmatprep.mubr.f32.mxu0 %v837
        %1159 = vmatmul.mubr.f32.gmra.mxu0 %v836
        %v1160 = vpop.f32.mrf.mxu0
        %v1161 = vadd.f32 0.0, %v1160
        %v1162 = vpop.f32.mrf.mxu0
        %v1163 = vadd.f32 0.0, %v1162
        %1164 = vdwg.mxu0
        %1165 = vmatprep.subr.mxu0 %v961
        %1166 = vmatpush1.msra.mxu0 %v960
        %1167 = vmatprep.subr.mxu0 %v953
        %1168 = vmatpush1.msra.mxu0 %v952
        %1169 = vmatprep.subr.mxu0 %v945
        %1170 = vmatpush1.msra.mxu0 %v944
        %1171 = vmatprep.subr.mxu0 %v937
        %1172 = vmatpush1.msra.mxu0 %v936
        %1173 = vmatprep.subr.mxu0 %v929
        %1174 = vmatpush1.msra.mxu0 %v928
        %1175 = vmatprep.subr.mxu0 %v921
        %1176 = vmatpush1.msra.mxu0 %v920
        %1177 = vmatprep.subr.mxu0 %v913
        %1178 = vmatpush1.msra.mxu0 %v912
        %1179 = vmatprep.subr.mxu0 %v905
        %1180 = vmatpush1.msra.mxu0 %v904
        %1181 = vmatprep.subr.mxu0 %v897
        %1182 = vmatpush1.msra.mxu0 %v896
        %1183 = vmatprep.subr.mxu0 %v889
        %1184 = vmatpush1.msra.mxu0 %v888
        %1185 = vmatprep.subr.mxu0 %v881
        %1186 = vmatpush1.msra.mxu0 %v880
        %1187 = vmatprep.subr.mxu0 %v873
        %1188 = vmatpush1.msra.mxu0 %v872
        %1189 = vmatprep.subr.mxu0 %v865
        %1190 = vmatpush1.msra.mxu0 %v864
        %1191 = vmatprep.subr.mxu0 %v857
        %1192 = vmatpush1.msra.mxu0 %v856
        %1193 = vmatprep.subr.mxu0 %v849
        %1194 = vmatpush1.msra.mxu0 %v848
        %1195 = vmatprep.subr.mxu0 %v841
        %1196 = vmatpush1.msra.mxu0 %v840
        %1197 = vmatprep.subr.mxu0 %v1089
        %1198 = vmatpush2.msra.mxu0 %v1088
        %1199 = vmatprep.subr.mxu0 %v1081
        %1200 = vmatpush2.msra.mxu0 %v1080
        %1201 = vmatprep.subr.mxu0 %v1073
        %1202 = vmatpush2.msra.mxu0 %v1072
        %1203 = vmatprep.subr.mxu0 %v1065
        %1204 = vmatpush2.msra.mxu0 %v1064
        %1205 = vmatprep.subr.mxu0 %v1057
        %1206 = vmatpush2.msra.mxu0 %v1056
        %1207 = vmatprep.subr.mxu0 %v1049
        %1208 = vmatpush2.msra.mxu0 %v1048
        %1209 = vmatprep.subr.mxu0 %v1041
        %1210 = vmatpush2.msra.mxu0 %v1040
        %1211 = vmatprep.subr.mxu0 %v1033
        %1212 = vmatpush2.msra.mxu0 %v1032
        %1213 = vmatprep.subr.mxu0 %v1025
        %1214 = vmatpush2.msra.mxu0 %v1024
        %1215 = vmatprep.subr.mxu0 %v1017
        %1216 = vmatpush2.msra.mxu0 %v1016
        %1217 = vmatprep.subr.mxu0 %v1009
        %1218 = vmatpush2.msra.mxu0 %v1008
        %1219 = vmatprep.subr.mxu0 %v1001
        %1220 = vmatpush2.msra.mxu0 %v1000
        %1221 = vmatprep.subr.mxu0 %v993
        %1222 = vmatpush2.msra.mxu0 %v992
        %1223 = vmatprep.subr.mxu0 %v985
        %1224 = vmatpush2.msra.mxu0 %v984
        %1225 = vmatprep.subr.mxu0 %v977
        %1226 = vmatpush2.msra.mxu0 %v976
        %1227 = vmatprep.subr.mxu0 %v969
        %1228 = vmatpush2.msra.mxu0 %v968
        %1229 = vmatprep.mubr.f32.mxu0 %v837
        %1230 = vmatmul.mubr.f32.gmra.mxu0 %v836
        %v1231 = vpop.f32.mrf.mxu0
        %v1232 = vadd.f32 0.0, %v1231
        %v1233 = vpop.f32.mrf.mxu0
        %v1234 = vadd.f32 0.0, %v1233
        %1235 = vdwg.mxu0
        %1236 = vmatprep.subr.mxu0 %v963
        %1237 = vmatpush1.msra.mxu0 %v962
        %1238 = vmatprep.subr.mxu0 %v955
        %1239 = vmatpush1.msra.mxu0 %v954
        %1240 = vmatprep.subr.mxu0 %v947
        %1241 = vmatpush1.msra.mxu0 %v946
        %1242 = vmatprep.subr.mxu0 %v939
        %1243 = vmatpush1.msra.mxu0 %v938
        %1244 = vmatprep.subr.mxu0 %v931
        %1245 = vmatpush1.msra.mxu0 %v930
        %1246 = vmatprep.subr.mxu0 %v923
        %1247 = vmatpush1.msra.mxu0 %v922
        %1248 = vmatprep.subr.mxu0 %v915
        %1249 = vmatpush1.msra.mxu0 %v914
        %1250 = vmatprep.subr.mxu0 %v907
        %1251 = vmatpush1.msra.mxu0 %v906
        %1252 = vmatprep.subr.mxu0 %v899
        %1253 = vmatpush1.msra.mxu0 %v898
        %1254 = vmatprep.subr.mxu0 %v891
        %1255 = vmatpush1.msra.mxu0 %v890
        %1256 = vmatprep.subr.mxu0 %v883
        %1257 = vmatpush1.msra.mxu0 %v882
        %1258 = vmatprep.subr.mxu0 %v875
        %1259 = vmatpush1.msra.mxu0 %v874
        %1260 = vmatprep.subr.mxu0 %v867
        %1261 = vmatpush1.msra.mxu0 %v866
        %1262 = vmatprep.subr.mxu0 %v859
        %1263 = vmatpush1.msra.mxu0 %v858
        %1264 = vmatprep.subr.mxu0 %v851
        %1265 = vmatpush1.msra.mxu0 %v850
        %1266 = vmatprep.subr.mxu0 %v843
        %1267 = vmatpush1.msra.mxu0 %v842
        %1268 = vmatprep.subr.mxu0 %v1091
        %1269 = vmatpush2.msra.mxu0 %v1090
        %1270 = vmatprep.subr.mxu0 %v1083
        %1271 = vmatpush2.msra.mxu0 %v1082
        %1272 = vmatprep.subr.mxu0 %v1075
        %1273 = vmatpush2.msra.mxu0 %v1074
        %1274 = vmatprep.subr.mxu0 %v1067
        %1275 = vmatpush2.msra.mxu0 %v1066
        %1276 = vmatprep.subr.mxu0 %v1059
        %1277 = vmatpush2.msra.mxu0 %v1058
        %1278 = vmatprep.subr.mxu0 %v1051
        %1279 = vmatpush2.msra.mxu0 %v1050
        %1280 = vmatprep.subr.mxu0 %v1043
        %1281 = vmatpush2.msra.mxu0 %v1042
        %1282 = vmatprep.subr.mxu0 %v1035
        %1283 = vmatpush2.msra.mxu0 %v1034
        %1284 = vmatprep.subr.mxu0 %v1027
        %1285 = vmatpush2.msra.mxu0 %v1026
        %1286 = vmatprep.subr.mxu0 %v1019
        %1287 = vmatpush2.msra.mxu0 %v1018
        %1288 = vmatprep.subr.mxu0 %v1011
        %1289 = vmatpush2.msra.mxu0 %v1010
        %1290 = vmatprep.subr.mxu0 %v1003
        %1291 = vmatpush2.msra.mxu0 %v1002
        %1292 = vmatprep.subr.mxu0 %v995
        %1293 = vmatpush2.msra.mxu0 %v994
        %1294 = vmatprep.subr.mxu0 %v987
        %1295 = vmatpush2.msra.mxu0 %v986
        %1296 = vmatprep.subr.mxu0 %v979
        %1297 = vmatpush2.msra.mxu0 %v978
        %1298 = vmatprep.subr.mxu0 %v971
        %1299 = vmatpush2.msra.mxu0 %v970
        %1300 = vmatprep.mubr.f32.mxu0 %v837
        %1301 = vmatmul.mubr.f32.gmra.mxu0 %v836
        %v1302 = vpop.f32.mrf.mxu0
        %v1303 = vadd.f32 0.0, %v1302
        %v1304 = vpop.f32.mrf.mxu0
        %v1305 = vadd.f32 0.0, %v1304
        %1306 = vdwg.mxu0
        %1307 = vmatprep.subr.mxu0 %v965
        %1308 = vmatpush1.msra.mxu0 %v964
        %1309 = vmatprep.subr.mxu0 %v957
        %1310 = vmatpush1.msra.mxu0 %v956
        %1311 = vmatprep.subr.mxu0 %v949
        %1312 = vmatpush1.msra.mxu0 %v948
        %1313 = vmatprep.subr.mxu0 %v941
        %1314 = vmatpush1.msra.mxu0 %v940
        %1315 = vmatprep.subr.mxu0 %v933
        %1316 = vmatpush1.msra.mxu0 %v932
        %1317 = vmatprep.subr.mxu0 %v925
        %1318 = vmatpush1.msra.mxu0 %v924
        %1319 = vmatprep.subr.mxu0 %v917
        %1320 = vmatpush1.msra.mxu0 %v916
        %1321 = vmatprep.subr.mxu0 %v909
        %1322 = vmatpush1.msra.mxu0 %v908
        %1323 = vmatprep.subr.mxu0 %v901
        %1324 = vmatpush1.msra.mxu0 %v900
        %1325 = vmatprep.subr.mxu0 %v893
        %1326 = vmatpush1.msra.mxu0 %v892
        %1327 = vmatprep.subr.mxu0 %v885
        %1328 = vmatpush1.msra.mxu0 %v884
        %1329 = vmatprep.subr.mxu0 %v877
        %1330 = vmatpush1.msra.mxu0 %v876
        %1331 = vmatprep.subr.mxu0 %v869
        %1332 = vmatpush1.msra.mxu0 %v868
        %1333 = vmatprep.subr.mxu0 %v861
        %1334 = vmatpush1.msra.mxu0 %v860
        %1335 = vmatprep.subr.mxu0 %v853
        %1336 = vmatpush1.msra.mxu0 %v852
        %1337 = vmatprep.subr.mxu0 %v845
        %1338 = vmatpush1.msra.mxu0 %v844
        %1339 = vmatprep.subr.mxu0 %v1093
        %1340 = vmatpush2.msra.mxu0 %v1092
        %1341 = vmatprep.subr.mxu0 %v1085
        %1342 = vmatpush2.msra.mxu0 %v1084
        %1343 = vmatprep.subr.mxu0 %v1077
        %1344 = vmatpush2.msra.mxu0 %v1076
        %1345 = vmatprep.subr.mxu0 %v1069
        %1346 = vmatpush2.msra.mxu0 %v1068
        %1347 = vmatprep.subr.mxu0 %v1061
        %1348 = vmatpush2.msra.mxu0 %v1060
        %1349 = vmatprep.subr.mxu0 %v1053
        %1350 = vmatpush2.msra.mxu0 %v1052
        %1351 = vmatprep.subr.mxu0 %v1045
        %1352 = vmatpush2.msra.mxu0 %v1044
        %1353 = vmatprep.subr.mxu0 %v1037
        %1354 = vmatpush2.msra.mxu0 %v1036
        %1355 = vmatprep.subr.mxu0 %v1029
        %1356 = vmatpush2.msra.mxu0 %v1028
        %1357 = vmatprep.subr.mxu0 %v1021
        %1358 = vmatpush2.msra.mxu0 %v1020
        %1359 = vmatprep.subr.mxu0 %v1013
        %1360 = vmatpush2.msra.mxu0 %v1012
        %1361 = vmatprep.subr.mxu0 %v1005
        %1362 = vmatpush2.msra.mxu0 %v1004
        %1363 = vmatprep.subr.mxu0 %v997
        %1364 = vmatpush2.msra.mxu0 %v996
        %1365 = vmatprep.subr.mxu0 %v989
        %1366 = vmatpush2.msra.mxu0 %v988
        %1367 = vmatprep.subr.mxu0 %v981
        %1368 = vmatpush2.msra.mxu0 %v980
        %1369 = vmatprep.subr.mxu0 %v973
        %1370 = vmatpush2.msra.mxu0 %v972
        %1371 = vmatprep.mubr.f32.mxu0 %v837
        %1372 = vmatmul.mubr.f32.gmra.mxu0 %v836
        %v1373 = vpop.f32.mrf.mxu0
        %v1374 = vadd.f32 0.0, %v1373
        %v1375 = vpop.f32.mrf.mxu0
        %v1376 = vadd.f32 0.0, %v1375
        %1377 = vdwg.mxu0
        %v1378 = vld [vmem:[%s693] sm:$0xff]
        %v1379 = vld [vmem:[%s693 + $0x8] sm:$0xff]
        %v1380 = vld [vmem:[%s693 + $0x10] sm:$0xff]
        %v1381 = vld [vmem:[%s693 + $0x18] sm:$0xff]
        %v1382 = vld [vmem:[%s6] sm:$0xff]
        %v1383 = vld [vmem:[%s6 + $0x8] sm:$0xff]
        %v1384 = vld [vmem:[%s6 + $0x10] sm:$0xff]
        %v1385 = vld [vmem:[%s6 + $0x18] sm:$0xff]
        %1387 = vset.pattern.permute.xlu0 0
        %1388 = vperm.xlu0 %1387, %v1382
        %v1389 = vpop.permute.xlu0 %1388
        %1392 = vset.pattern.permute.xlu0 0
        %1393 = vperm.xlu0 %1392, %v1383
        %v1394 = vpop.permute.xlu0 %1393
        %1397 = vset.pattern.permute.xlu0 0
        %1398 = vperm.xlu0 %1397, %v1384
        %v1399 = vpop.permute.xlu0 %1398
        %1402 = vset.pattern.permute.xlu0 0
        %1403 = vperm.xlu0 %1402, %v1385
        %v1404 = vpop.permute.xlu0 %1403
        %v1406 = vmul.f32 %v1378, %v1389
        %v1407 = vmul.f32 %v1379, %v1394
        %v1408 = vmul.f32 %v1380, %v1399
        %v1409 = vmul.f32 %v1381, %v1404
        %vm1410 = vcmask 523264
        %v1411 = vsel %vm1410, %v1406, 0.0
        %v1412 = vsel %vm1410, %v1407, 0.0
        %v1413 = vadd.f32 %v1411, %v1412
        %v1414 = vsel %vm1410, %v1408, 0.0
        %v1415 = vadd.f32 %v1413, %v1414
        %v1416 = vsel %vm1410, %v1409, 0.0
        %v1417 = vadd.f32 %v1415, %v1416
        %v1418 = vrot.slane %v1417, 4
        %v1419 = vadd.f32 %v1417, %v1418
        %v1420 = vrot.slane %v1419, 2
        %v1421 = vadd.f32 %v1419, %v1420
        %v1422 = vrot.slane %v1421, 1
        %v1423 = vadd.f32 %v1421, %v1422
        %v1424 = vld [vmem:[#allocation3] sm:$0x1]
        %1426 = vset.pattern.permute.xlu0 0
        %1427 = vperm.xlu0 %1426, %v1424
        %v1428 = vpop.permute.xlu0 %1427
        %v1430 = vlaneseq
        %v1431 = vshrl.u32 %v1430, 7
        %v1432 = vsub.s32 0, %v1431
        %v1433 = vrot.slane %v1428, %v1432
        %v1434 = vadd.f32 %v1423, %v1433
        %v1435 = vmax.f32 %v1434, 0.0
        %v1436 = vld [vmem:[%s13] sm:$0xff]
        %v1437 = vld [vmem:[%s13 + $0x8] sm:$0xff]
        %v1438 = vld [vmem:[%s13 + $0x10] sm:$0xff]
        %v1439 = vld [vmem:[%s13 + $0x18] sm:$0xff]
        %v1440 = vld [vmem:[%s13 + $0x20] sm:$0xff]
        %v1441 = vld [vmem:[%s13 + $0x28] sm:$0xff]
        %v1442 = vld [vmem:[%s13 + $0x30] sm:$0xff]
        %v1443 = vld [vmem:[%s13 + $0x38] sm:$0xff]
        %v1444 = vld [vmem:[%s13 + $0x40] sm:$0xff]
        %v1445 = vld [vmem:[%s13 + $0x48] sm:$0xff]
        %v1446 = vld [vmem:[%s13 + $0x50] sm:$0xff]
        %v1447 = vld [vmem:[%s13 + $0x58] sm:$0xff]
        %v1448 = vld [vmem:[%s13 + $0x60] sm:$0xff]
        %v1449 = vld [vmem:[%s13 + $0x68] sm:$0xff]
        %v1450 = vld [vmem:[%s13 + $0x70] sm:$0xff]
        %v1451 = vld [vmem:[%s13 + $0x78] sm:$0xff]
        %v1452 = vld [vmem:[%s13 + $0x80] sm:$0xff]
        %v1453 = vld [vmem:[%s13 + $0x88] sm:$0xff]
        %v1454 = vld [vmem:[%s13 + $0x90] sm:$0xff]
        %v1455 = vld [vmem:[%s13 + $0x98] sm:$0xff]
        %v1456 = vld [vmem:[%s13 + $0xa0] sm:$0xff]
        %v1457 = vld [vmem:[%s13 + $0xa8] sm:$0xff]
        %v1458 = vld [vmem:[%s13 + $0xb0] sm:$0xff]
        %v1459 = vld [vmem:[%s13 + $0xb8] sm:$0xff]
        %v1460 = vld [vmem:[%s13 + $0xc0] sm:$0xff]
        %v1461 = vld [vmem:[%s13 + $0xc8] sm:$0xff]
        %v1462 = vld [vmem:[%s13 + $0xd0] sm:$0xff]
        %v1463 = vld [vmem:[%s13 + $0xd8] sm:$0xff]
        %v1464 = vld [vmem:[%s13 + $0xe0] sm:$0xff]
        %v1465 = vld [vmem:[%s13 + $0xe8] sm:$0xff]
        %v1466 = vld [vmem:[%s13 + $0xf0] sm:$0xff]
        %v1467 = vld [vmem:[%s13 + $0xf8] sm:$0xff]
        %v1468 = vld [vmem:[%s13 + $0x100] sm:$0xff]
        %v1469 = vld [vmem:[%s13 + $0x108] sm:$0xff]
        %v1470 = vld [vmem:[%s13 + $0x110] sm:$0xff]
        %v1471 = vld [vmem:[%s13 + $0x118] sm:$0xff]
        %v1472 = vld [vmem:[%s13 + $0x120] sm:$0xff]
        %v1473 = vld [vmem:[%s13 + $0x128] sm:$0xff]
        %v1474 = vld [vmem:[%s13 + $0x130] sm:$0xff]
        %v1475 = vld [vmem:[%s13 + $0x138] sm:$0xff]
        %v1476 = vld [vmem:[%s13 + $0x140] sm:$0xff]
        %v1477 = vld [vmem:[%s13 + $0x148] sm:$0xff]
        %v1478 = vld [vmem:[%s13 + $0x150] sm:$0xff]
        %v1479 = vld [vmem:[%s13 + $0x158] sm:$0xff]
        %v1480 = vld [vmem:[%s13 + $0x160] sm:$0xff]
        %v1481 = vld [vmem:[%s13 + $0x168] sm:$0xff]
        %v1482 = vld [vmem:[%s13 + $0x170] sm:$0xff]
        %v1483 = vld [vmem:[%s13 + $0x178] sm:$0xff]
        %v1484 = vld [vmem:[%s13 + $0x180] sm:$0xff]
        %v1485 = vld [vmem:[%s13 + $0x188] sm:$0xff]
        %v1486 = vld [vmem:[%s13 + $0x190] sm:$0xff]
        %v1487 = vld [vmem:[%s13 + $0x198] sm:$0xff]
        %v1488 = vld [vmem:[%s13 + $0x1a0] sm:$0xff]
        %v1489 = vld [vmem:[%s13 + $0x1a8] sm:$0xff]
        %v1490 = vld [vmem:[%s13 + $0x1b0] sm:$0xff]
        %v1491 = vld [vmem:[%s13 + $0x1b8] sm:$0xff]
        %v1492 = vld [vmem:[%s13 + $0x1c0] sm:$0xff]
        %v1493 = vld [vmem:[%s13 + $0x1c8] sm:$0xff]
        %v1494 = vld [vmem:[%s13 + $0x1d0] sm:$0xff]
        %v1495 = vld [vmem:[%s13 + $0x1d8] sm:$0xff]
        %v1496 = vld [vmem:[%s13 + $0x1e0] sm:$0xff]
        %v1497 = vld [vmem:[%s13 + $0x1e8] sm:$0xff]
        %v1498 = vld [vmem:[%s13 + $0x1f0] sm:$0xff]
        %v1499 = vld [vmem:[%s13 + $0x1f8] sm:$0xff]
        %v1501 = vsel %vm1410, %v1435, 0
        %1503 = vmatprep.subr.mxu0 0.0
        %1504 = vmatpush1.msra.mxu0 0.0
        %1505 = vmatprep.subr.mxu0 0.0
        %1506 = vmatpush1.msra.mxu0 0.0
        %1507 = vmatprep.subr.mxu0 0.0
        %1508 = vmatpush1.msra.mxu0 0.0
        %1509 = vmatprep.subr.mxu0 0.0
        %1510 = vmatpush1.msra.mxu0 0.0
        %1511 = vmatprep.subr.mxu0 0.0
        %1512 = vmatpush1.msra.mxu0 0.0
        %1513 = vmatprep.subr.mxu0 0.0
        %1514 = vmatpush1.msra.mxu0 0.0
        %1515 = vmatprep.subr.mxu0 0.0
        %1516 = vmatpush1.msra.mxu0 0.0
        %1517 = vmatprep.subr.mxu0 0.0
        %1518 = vmatpush1.msra.mxu0 0.0
        %1519 = vmatprep.subr.mxu0 %v1493
        %1520 = vmatpush1.msra.mxu0 %v1492
        %1521 = vmatprep.subr.mxu0 %v1485
        %1522 = vmatpush1.msra.mxu0 %v1484
        %1523 = vmatprep.subr.mxu0 %v1477
        %1524 = vmatpush1.msra.mxu0 %v1476
        %1525 = vmatprep.subr.mxu0 %v1469
        %1526 = vmatpush1.msra.mxu0 %v1468
        %1527 = vmatprep.subr.mxu0 %v1461
        %1528 = vmatpush1.msra.mxu0 %v1460
        %1529 = vmatprep.subr.mxu0 %v1453
        %1530 = vmatpush1.msra.mxu0 %v1452
        %1531 = vmatprep.subr.mxu0 %v1445
        %1532 = vmatpush1.msra.mxu0 %v1444
        %1533 = vmatprep.subr.mxu0 %v1437
        %1534 = vmatpush1.msra.mxu0 %v1436
        %1535 = vmatprep.subr.mxu0 0.0
        %1536 = vmatpush2.msra.mxu0 0.0
        %1537 = vmatprep.subr.mxu0 0.0
        %1538 = vmatpush2.msra.mxu0 0.0
        %1539 = vmatprep.subr.mxu0 0.0
        %1540 = vmatpush2.msra.mxu0 0.0
        %1541 = vmatprep.subr.mxu0 0.0
        %1542 = vmatpush2.msra.mxu0 0.0
        %1543 = vmatprep.subr.mxu0 0.0
        %1544 = vmatpush2.msra.mxu0 0.0
        %1545 = vmatprep.subr.mxu0 0.0
        %1546 = vmatpush2.msra.mxu0 0.0
        %1547 = vmatprep.subr.mxu0 0.0
        %1548 = vmatpush2.msra.mxu0 0.0
        %1549 = vmatprep.subr.mxu0 0.0
        %1550 = vmatpush2.msra.mxu0 0.0
        %1551 = vmatprep.subr.mxu0 0.0
        %1552 = vmatpush2.msra.mxu0 0.0
        %1553 = vmatprep.subr.mxu0 0.0
        %1554 = vmatpush2.msra.mxu0 0.0
        %1555 = vmatprep.subr.mxu0 0.0
        %1556 = vmatpush2.msra.mxu0 0.0
        %1557 = vmatprep.subr.mxu0 0.0
        %1558 = vmatpush2.msra.mxu0 0.0
        %1559 = vmatprep.subr.mxu0 0.0
        %1560 = vmatpush2.msra.mxu0 0.0
        %1561 = vmatprep.subr.mxu0 0.0
        %1562 = vmatpush2.msra.mxu0 0.0
        %1563 = vmatprep.subr.mxu0 0.0
        %1564 = vmatpush2.msra.mxu0 0.0
        %1565 = vmatprep.subr.mxu0 0.0
        %1566 = vmatpush2.msra.mxu0 0.0
        %1567 = vmatprep.mubr.f32.mxu0 0.0
        %1568 = vmatmul.mubr.f32.gmra.mxu0 %v1501
        %v1569 = vpop.f32.mrf.mxu0
        %v1570 = vadd.f32 0.0, %v1569
        %v1571 = vpop.f32.mrf.mxu0
        %v1572 = vadd.f32 0.0, %v1571
        %1573 = vdwg.mxu0
        %1574 = vmatprep.subr.mxu0 0.0
        %1575 = vmatpush1.msra.mxu0 0.0
        %1576 = vmatprep.subr.mxu0 0.0
        %1577 = vmatpush1.msra.mxu0 0.0
        %1578 = vmatprep.subr.mxu0 0.0
        %1579 = vmatpush1.msra.mxu0 0.0
        %1580 = vmatprep.subr.mxu0 0.0
        %1581 = vmatpush1.msra.mxu0 0.0
        %1582 = vmatprep.subr.mxu0 0.0
        %1583 = vmatpush1.msra.mxu0 0.0
        %1584 = vmatprep.subr.mxu0 0.0
        %1585 = vmatpush1.msra.mxu0 0.0
        %1586 = vmatprep.subr.mxu0 0.0
        %1587 = vmatpush1.msra.mxu0 0.0
        %1588 = vmatprep.subr.mxu0 0.0
        %1589 = vmatpush1.msra.mxu0 0.0
        %1590 = vmatprep.subr.mxu0 %v1495
        %1591 = vmatpush1.msra.mxu0 %v1494
        %1592 = vmatprep.subr.mxu0 %v1487
        %1593 = vmatpush1.msra.mxu0 %v1486
        %1594 = vmatprep.subr.mxu0 %v1479
        %1595 = vmatpush1.msra.mxu0 %v1478
        %1596 = vmatprep.subr.mxu0 %v1471
        %1597 = vmatpush1.msra.mxu0 %v1470
        %1598 = vmatprep.subr.mxu0 %v1463
        %1599 = vmatpush1.msra.mxu0 %v1462
        %1600 = vmatprep.subr.mxu0 %v1455
        %1601 = vmatpush1.msra.mxu0 %v1454
        %1602 = vmatprep.subr.mxu0 %v1447
        %1603 = vmatpush1.msra.mxu0 %v1446
        %1604 = vmatprep.subr.mxu0 %v1439
        %1605 = vmatpush1.msra.mxu0 %v1438
        %1606 = vmatprep.subr.mxu0 0.0
        %1607 = vmatpush2.msra.mxu0 0.0
        %1608 = vmatprep.subr.mxu0 0.0
        %1609 = vmatpush2.msra.mxu0 0.0
        %1610 = vmatprep.subr.mxu0 0.0
        %1611 = vmatpush2.msra.mxu0 0.0
        %1612 = vmatprep.subr.mxu0 0.0
        %1613 = vmatpush2.msra.mxu0 0.0
        %1614 = vmatprep.subr.mxu0 0.0
        %1615 = vmatpush2.msra.mxu0 0.0
        %1616 = vmatprep.subr.mxu0 0.0
        %1617 = vmatpush2.msra.mxu0 0.0
        %1618 = vmatprep.subr.mxu0 0.0
        %1619 = vmatpush2.msra.mxu0 0.0
        %1620 = vmatprep.subr.mxu0 0.0
        %1621 = vmatpush2.msra.mxu0 0.0
        %1622 = vmatprep.subr.mxu0 0.0
        %1623 = vmatpush2.msra.mxu0 0.0
        %1624 = vmatprep.subr.mxu0 0.0
        %1625 = vmatpush2.msra.mxu0 0.0
        %1626 = vmatprep.subr.mxu0 0.0
        %1627 = vmatpush2.msra.mxu0 0.0
        %1628 = vmatprep.subr.mxu0 0.0
        %1629 = vmatpush2.msra.mxu0 0.0
        %1630 = vmatprep.subr.mxu0 0.0
        %1631 = vmatpush2.msra.mxu0 0.0
        %1632 = vmatprep.subr.mxu0 0.0
        %1633 = vmatpush2.msra.mxu0 0.0
        %1634 = vmatprep.subr.mxu0 0.0
        %1635 = vmatpush2.msra.mxu0 0.0
        %1636 = vmatprep.subr.mxu0 0.0
        %1637 = vmatpush2.msra.mxu0 0.0
        %1638 = vmatprep.mubr.f32.mxu0 0.0
        %1639 = vmatmul.mubr.f32.gmra.mxu0 %v1501
        %v1640 = vpop.f32.mrf.mxu0
        %v1641 = vadd.f32 0.0, %v1640
        %v1642 = vpop.f32.mrf.mxu0
        %v1643 = vadd.f32 0.0, %v1642
        %1644 = vdwg.mxu0
        %1645 = vmatprep.subr.mxu0 0.0
        %1646 = vmatpush1.msra.mxu0 0.0
        %1647 = vmatprep.subr.mxu0 0.0
        %1648 = vmatpush1.msra.mxu0 0.0
        %1649 = vmatprep.subr.mxu0 0.0
        %1650 = vmatpush1.msra.mxu0 0.0
        %1651 = vmatprep.subr.mxu0 0.0
        %1652 = vmatpush1.msra.mxu0 0.0
        %1653 = vmatprep.subr.mxu0 0.0
        %1654 = vmatpush1.msra.mxu0 0.0
        %1655 = vmatprep.subr.mxu0 0.0
        %1656 = vmatpush1.msra.mxu0 0.0
        %1657 = vmatprep.subr.mxu0 0.0
        %1658 = vmatpush1.msra.mxu0 0.0
        %1659 = vmatprep.subr.mxu0 0.0
        %1660 = vmatpush1.msra.mxu0 0.0
        %1661 = vmatprep.subr.mxu0 %v1497
        %1662 = vmatpush1.msra.mxu0 %v1496
        %1663 = vmatprep.subr.mxu0 %v1489
        %1664 = vmatpush1.msra.mxu0 %v1488
        %1665 = vmatprep.subr.mxu0 %v1481
        %1666 = vmatpush1.msra.mxu0 %v1480
        %1667 = vmatprep.subr.mxu0 %v1473
        %1668 = vmatpush1.msra.mxu0 %v1472
        %1669 = vmatprep.subr.mxu0 %v1465
        %1670 = vmatpush1.msra.mxu0 %v1464
        %1671 = vmatprep.subr.mxu0 %v1457
        %1672 = vmatpush1.msra.mxu0 %v1456
        %1673 = vmatprep.subr.mxu0 %v1449
        %1674 = vmatpush1.msra.mxu0 %v1448
        %1675 = vmatprep.subr.mxu0 %v1441
        %1676 = vmatpush1.msra.mxu0 %v1440
        %1677 = vmatprep.subr.mxu0 0.0
        %1678 = vmatpush2.msra.mxu0 0.0
        %1679 = vmatprep.subr.mxu0 0.0
        %1680 = vmatpush2.msra.mxu0 0.0
        %1681 = vmatprep.subr.mxu0 0.0
        %1682 = vmatpush2.msra.mxu0 0.0
        %1683 = vmatprep.subr.mxu0 0.0
        %1684 = vmatpush2.msra.mxu0 0.0
        %1685 = vmatprep.subr.mxu0 0.0
        %1686 = vmatpush2.msra.mxu0 0.0
        %1687 = vmatprep.subr.mxu0 0.0
        %1688 = vmatpush2.msra.mxu0 0.0
        %1689 = vmatprep.subr.mxu0 0.0
        %1690 = vmatpush2.msra.mxu0 0.0
        %1691 = vmatprep.subr.mxu0 0.0
        %1692 = vmatpush2.msra.mxu0 0.0
        %1693 = vmatprep.subr.mxu0 0.0
        %1694 = vmatpush2.msra.mxu0 0.0
        %1695 = vmatprep.subr.mxu0 0.0
        %1696 = vmatpush2.msra.mxu0 0.0
        %1697 = vmatprep.subr.mxu0 0.0
        %1698 = vmatpush2.msra.mxu0 0.0
        %1699 = vmatprep.subr.mxu0 0.0
        %1700 = vmatpush2.msra.mxu0 0.0
        %1701 = vmatprep.subr.mxu0 0.0
        %1702 = vmatpush2.msra.mxu0 0.0
        %1703 = vmatprep.subr.mxu0 0.0
        %1704 = vmatpush2.msra.mxu0 0.0
        %1705 = vmatprep.subr.mxu0 0.0
        %1706 = vmatpush2.msra.mxu0 0.0
        %1707 = vmatprep.subr.mxu0 0.0
        %1708 = vmatpush2.msra.mxu0 0.0
        %1709 = vmatprep.mubr.f32.mxu0 0.0
        %1710 = vmatmul.mubr.f32.gmra.mxu0 %v1501
        %v1711 = vpop.f32.mrf.mxu0
        %v1712 = vadd.f32 0.0, %v1711
        %v1713 = vpop.f32.mrf.mxu0
        %v1714 = vadd.f32 0.0, %v1713
        %1715 = vdwg.mxu0
        %1716 = vmatprep.subr.mxu0 0.0
        %1717 = vmatpush1.msra.mxu0 0.0
        %1718 = vmatprep.subr.mxu0 0.0
        %1719 = vmatpush1.msra.mxu0 0.0
        %1720 = vmatprep.subr.mxu0 0.0
        %1721 = vmatpush1.msra.mxu0 0.0
        %1722 = vmatprep.subr.mxu0 0.0
        %1723 = vmatpush1.msra.mxu0 0.0
        %1724 = vmatprep.subr.mxu0 0.0
        %1725 = vmatpush1.msra.mxu0 0.0
        %1726 = vmatprep.subr.mxu0 0.0
        %1727 = vmatpush1.msra.mxu0 0.0
        %1728 = vmatprep.subr.mxu0 0.0
        %1729 = vmatpush1.msra.mxu0 0.0
        %1730 = vmatprep.subr.mxu0 0.0
        %1731 = vmatpush1.msra.mxu0 0.0
        %1732 = vmatprep.subr.mxu0 %v1499
        %1733 = vmatpush1.msra.mxu0 %v1498
        %1734 = vmatprep.subr.mxu0 %v1491
        %1735 = vmatpush1.msra.mxu0 %v1490
        %1736 = vmatprep.subr.mxu0 %v1483
        %1737 = vmatpush1.msra.mxu0 %v1482
        %1738 = vmatprep.subr.mxu0 %v1475
        %1739 = vmatpush1.msra.mxu0 %v1474
        %1740 = vmatprep.subr.mxu0 %v1467
        %1741 = vmatpush1.msra.mxu0 %v1466
        %1742 = vmatprep.subr.mxu0 %v1459
        %1743 = vmatpush1.msra.mxu0 %v1458
        %1744 = vmatprep.subr.mxu0 %v1451
        %1745 = vmatpush1.msra.mxu0 %v1450
        %1746 = vmatprep.subr.mxu0 %v1443
        %1747 = vmatpush1.msra.mxu0 %v1442
        %1748 = vmatprep.subr.mxu0 0.0
        %1749 = vmatpush2.msra.mxu0 0.0
        %1750 = vmatprep.subr.mxu0 0.0
        %1751 = vmatpush2.msra.mxu0 0.0
        %1752 = vmatprep.subr.mxu0 0.0
        %1753 = vmatpush2.msra.mxu0 0.0
        %1754 = vmatprep.subr.mxu0 0.0
        %1755 = vmatpush2.msra.mxu0 0.0
        %1756 = vmatprep.subr.mxu0 0.0
        %1757 = vmatpush2.msra.mxu0 0.0
        %1758 = vmatprep.subr.mxu0 0.0
        %1759 = vmatpush2.msra.mxu0 0.0
        %1760 = vmatprep.subr.mxu0 0.0
        %1761 = vmatpush2.msra.mxu0 0.0
        %1762 = vmatprep.subr.mxu0 0.0
        %1763 = vmatpush2.msra.mxu0 0.0
        %1764 = vmatprep.subr.mxu0 0.0
        %1765 = vmatpush2.msra.mxu0 0.0
        %1766 = vmatprep.subr.mxu0 0.0
        %1767 = vmatpush2.msra.mxu0 0.0
        %1768 = vmatprep.subr.mxu0 0.0
        %1769 = vmatpush2.msra.mxu0 0.0
        %1770 = vmatprep.subr.mxu0 0.0
        %1771 = vmatpush2.msra.mxu0 0.0
        %1772 = vmatprep.subr.mxu0 0.0
        %1773 = vmatpush2.msra.mxu0 0.0
        %1774 = vmatprep.subr.mxu0 0.0
        %1775 = vmatpush2.msra.mxu0 0.0
        %1776 = vmatprep.subr.mxu0 0.0
        %1777 = vmatpush2.msra.mxu0 0.0
        %1778 = vmatprep.subr.mxu0 0.0
        %1779 = vmatpush2.msra.mxu0 0.0
        %1780 = vmatprep.mubr.f32.mxu0 0.0
        %1781 = vmatmul.mubr.f32.gmra.mxu0 %v1501
        %v1782 = vpop.f32.mrf.mxu0
        %v1783 = vadd.f32 0.0, %v1782
        %v1784 = vpop.f32.mrf.mxu0
        %v1785 = vadd.f32 0.0, %v1784
        %1786 = vdwg.mxu0
        %v1787 = vld [vmem:[%s779] sm:$0xff]
        %v1788 = vld [vmem:[%s779 + $0x8] sm:$0xff]
        %v1789 = vld [vmem:[%s779 + $0x10] sm:$0xff]
        %v1790 = vld [vmem:[%s779 + $0x18] sm:$0xff]
        %v1791 = vld [vmem:[%s779 + $0x20] sm:$0xff]
        %v1792 = vld [vmem:[%s779 + $0x28] sm:$0xff]
        %v1793 = vld [vmem:[%s779 + $0x30] sm:$0xff]
        %v1794 = vld [vmem:[%s779 + $0x38] sm:$0xff]
        %v1795 = vld [vmem:[%s8] sm:$0xff]
        %v1796 = vld [vmem:[%s8 + $0x8] sm:$0xff]
        %v1797 = vld [vmem:[%s8 + $0x10] sm:$0xff]
        %v1798 = vld [vmem:[%s8 + $0x18] sm:$0xff]
        %v1799 = vld [vmem:[%s8 + $0x20] sm:$0xff]
        %v1800 = vld [vmem:[%s8 + $0x28] sm:$0xff]
        %v1801 = vld [vmem:[%s8 + $0x30] sm:$0xff]
        %v1802 = vld [vmem:[%s8 + $0x38] sm:$0xff]
        %1804 = vset.pattern.permute.xlu0 0
        %1805 = vperm.xlu0 %1804, %v1795
        %v1806 = vpop.permute.xlu0 %1805
        %1809 = vset.pattern.permute.xlu0 0
        %1810 = vperm.xlu0 %1809, %v1796
        %v1811 = vpop.permute.xlu0 %1810
        %1814 = vset.pattern.permute.xlu0 0
        %1815 = vperm.xlu0 %1814, %v1797
        %v1816 = vpop.permute.xlu0 %1815
        %1819 = vset.pattern.permute.xlu0 0
        %1820 = vperm.xlu0 %1819, %v1798
        %v1821 = vpop.permute.xlu0 %1820
        %1824 = vset.pattern.permute.xlu0 0
        %1825 = vperm.xlu0 %1824, %v1799
        %v1826 = vpop.permute.xlu0 %1825
        %1829 = vset.pattern.permute.xlu0 0
        %1830 = vperm.xlu0 %1829, %v1800
        %v1831 = vpop.permute.xlu0 %1830
        %1834 = vset.pattern.permute.xlu0 0
        %1835 = vperm.xlu0 %1834, %v1801
        %v1836 = vpop.permute.xlu0 %1835
        %1839 = vset.pattern.permute.xlu0 0
        %1840 = vperm.xlu0 %1839, %v1802
        %v1841 = vpop.permute.xlu0 %1840
        %v1843 = vmul.f32 %v1787, %v1806
        %v1844 = vmul.f32 %v1788, %v1811
        %v1845 = vmul.f32 %v1789, %v1816
        %v1846 = vmul.f32 %v1790, %v1821
        %v1847 = vmul.f32 %v1791, %v1826
        %v1848 = vmul.f32 %v1792, %v1831
        %v1849 = vmul.f32 %v1793, %v1836
        %v1850 = vmul.f32 %v1794, %v1841
        %vm1851 = vcmask 130048
        %v1852 = vsel %vm1851, %v1843, 0.0
        %v1853 = vsel %vm1851, %v1844, 0.0
        %v1854 = vadd.f32 %v1852, %v1853
        %v1855 = vsel %vm1851, %v1845, 0.0
        %v1856 = vadd.f32 %v1854, %v1855
        %v1857 = vsel %vm1851, %v1846, 0.0
        %v1858 = vadd.f32 %v1856, %v1857
        %v1859 = vsel %vm1851, %v1847, 0.0
        %v1860 = vadd.f32 %v1858, %v1859
        %v1861 = vsel %vm1851, %v1848, 0.0
        %v1862 = vadd.f32 %v1860, %v1861
        %v1863 = vsel %vm1851, %v1849, 0.0
        %v1864 = vadd.f32 %v1862, %v1863
        %v1865 = vsel %vm1851, %v1850, 0.0
        %v1866 = vadd.f32 %v1864, %v1865
        %v1867 = vrot.slane %v1866, 4
        %v1868 = vadd.f32 %v1866, %v1867
        %v1869 = vrot.slane %v1868, 2
        %v1870 = vadd.f32 %v1868, %v1869
        %v1871 = vrot.slane %v1870, 1
        %v1872 = vadd.f32 %v1870, %v1871
        %v1873 = vld [vmem:[#allocation4] sm:$0x1]
        %1875 = vset.pattern.permute.xlu0 0
        %1876 = vperm.xlu0 %1875, %v1873
        %v1877 = vpop.permute.xlu0 %1876
        %v1879 = vlaneseq
        %v1880 = vshrl.u32 %v1879, 7
        %v1881 = vsub.s32 0, %v1880
        %v1882 = vrot.slane %v1877, %v1881
        %v1883 = vadd.f32 %v1872, %v1882
        %v1884 = vmax.f32 %v1883, 0.0
        %v1885 = vld [vmem:[%s14] sm:$0xff]
        %v1886 = vld [vmem:[%s14 + $0x8] sm:$0xff]
        %v1887 = vld [vmem:[%s14 + $0x10] sm:$0xff]
        %v1888 = vld [vmem:[%s14 + $0x18] sm:$0xff]
        %v1889 = vld [vmem:[%s14 + $0x20] sm:$0xff]
        %v1890 = vld [vmem:[%s14 + $0x28] sm:$0xff]
        %v1891 = vld [vmem:[%s14 + $0x30] sm:$0xff]
        %v1892 = vld [vmem:[%s14 + $0x38] sm:$0xff]
        %v1893 = vld [vmem:[%s14 + $0x40] sm:$0xff]
        %v1894 = vld [vmem:[%s14 + $0x48] sm:$0xff]
        %v1895 = vld [vmem:[%s14 + $0x50] sm:$0xff]
        %v1896 = vld [vmem:[%s14 + $0x58] sm:$0xff]
        %v1897 = vld [vmem:[%s14 + $0x60] sm:$0xff]
        %v1898 = vld [vmem:[%s14 + $0x68] sm:$0xff]
        %v1899 = vld [vmem:[%s14 + $0x70] sm:$0xff]
        %v1900 = vld [vmem:[%s14 + $0x78] sm:$0xff]
        %v1902 = vsel %vm1851, %v1884, 0
        %1904 = vmatprep.subr.mxu0 0.0
        %1905 = vmatpush1.msra.mxu0 0.0
        %1906 = vmatprep.subr.mxu0 0.0
        %1907 = vmatpush1.msra.mxu0 0.0
        %1908 = vmatprep.subr.mxu0 0.0
        %1909 = vmatpush1.msra.mxu0 0.0
        %1910 = vmatprep.subr.mxu0 0.0
        %1911 = vmatpush1.msra.mxu0 0.0
        %1912 = vmatprep.subr.mxu0 0.0
        %1913 = vmatpush1.msra.mxu0 0.0
        %1914 = vmatprep.subr.mxu0 0.0
        %1915 = vmatpush1.msra.mxu0 0.0
        %1916 = vmatprep.subr.mxu0 0.0
        %1917 = vmatpush1.msra.mxu0 0.0
        %1918 = vmatprep.subr.mxu0 0.0
        %1919 = vmatpush1.msra.mxu0 0.0
        %1920 = vmatprep.subr.mxu0 0.0
        %1921 = vmatpush1.msra.mxu0 0.0
        %1922 = vmatprep.subr.mxu0 0.0
        %1923 = vmatpush1.msra.mxu0 0.0
        %1924 = vmatprep.subr.mxu0 0.0
        %1925 = vmatpush1.msra.mxu0 0.0
        %1926 = vmatprep.subr.mxu0 0.0
        %1927 = vmatpush1.msra.mxu0 0.0
        %1928 = vmatprep.subr.mxu0 0.0
        %1929 = vmatpush1.msra.mxu0 0.0
        %1930 = vmatprep.subr.mxu0 0.0
        %1931 = vmatpush1.msra.mxu0 0.0
        %1932 = vmatprep.subr.mxu0 %v1894
        %1933 = vmatpush1.msra.mxu0 %v1893
        %1934 = vmatprep.subr.mxu0 %v1886
        %1935 = vmatpush1.msra.mxu0 %v1885
        %1936 = vmatprep.subr.mxu0 0.0
        %1937 = vmatpush2.msra.mxu0 0.0
        %1938 = vmatprep.subr.mxu0 0.0
        %1939 = vmatpush2.msra.mxu0 0.0
        %1940 = vmatprep.subr.mxu0 0.0
        %1941 = vmatpush2.msra.mxu0 0.0
        %1942 = vmatprep.subr.mxu0 0.0
        %1943 = vmatpush2.msra.mxu0 0.0
        %1944 = vmatprep.subr.mxu0 0.0
        %1945 = vmatpush2.msra.mxu0 0.0
        %1946 = vmatprep.subr.mxu0 0.0
        %1947 = vmatpush2.msra.mxu0 0.0
        %1948 = vmatprep.subr.mxu0 0.0
        %1949 = vmatpush2.msra.mxu0 0.0
        %1950 = vmatprep.subr.mxu0 0.0
        %1951 = vmatpush2.msra.mxu0 0.0
        %1952 = vmatprep.subr.mxu0 0.0
        %1953 = vmatpush2.msra.mxu0 0.0
        %1954 = vmatprep.subr.mxu0 0.0
        %1955 = vmatpush2.msra.mxu0 0.0
        %1956 = vmatprep.subr.mxu0 0.0
        %1957 = vmatpush2.msra.mxu0 0.0
        %1958 = vmatprep.subr.mxu0 0.0
        %1959 = vmatpush2.msra.mxu0 0.0
        %1960 = vmatprep.subr.mxu0 0.0
        %1961 = vmatpush2.msra.mxu0 0.0
        %1962 = vmatprep.subr.mxu0 0.0
        %1963 = vmatpush2.msra.mxu0 0.0
        %1964 = vmatprep.subr.mxu0 0.0
        %1965 = vmatpush2.msra.mxu0 0.0
        %1966 = vmatprep.subr.mxu0 0.0
        %1967 = vmatpush2.msra.mxu0 0.0
        %1968 = vmatprep.mubr.f32.mxu0 0.0
        %1969 = vmatmul.mubr.f32.gmra.mxu0 %v1902
        %v1970 = vpop.f32.mrf.mxu0
        %v1971 = vadd.f32 0.0, %v1970
        %v1972 = vpop.f32.mrf.mxu0
        %v1973 = vadd.f32 0.0, %v1972
        %1974 = vdwg.mxu0
        %1975 = vmatprep.subr.mxu0 0.0
        %1976 = vmatpush1.msra.mxu0 0.0
        %1977 = vmatprep.subr.mxu0 0.0
        %1978 = vmatpush1.msra.mxu0 0.0
        %1979 = vmatprep.subr.mxu0 0.0
        %1980 = vmatpush1.msra.mxu0 0.0
        %1981 = vmatprep.subr.mxu0 0.0
        %1982 = vmatpush1.msra.mxu0 0.0
        %1983 = vmatprep.subr.mxu0 0.0
        %1984 = vmatpush1.msra.mxu0 0.0
        %1985 = vmatprep.subr.mxu0 0.0
        %1986 = vmatpush1.msra.mxu0 0.0
        %1987 = vmatprep.subr.mxu0 0.0
        %1988 = vmatpush1.msra.mxu0 0.0
        %1989 = vmatprep.subr.mxu0 0.0
        %1990 = vmatpush1.msra.mxu0 0.0
        %1991 = vmatprep.subr.mxu0 0.0
        %1992 = vmatpush1.msra.mxu0 0.0
        %1993 = vmatprep.subr.mxu0 0.0
        %1994 = vmatpush1.msra.mxu0 0.0
        %1995 = vmatprep.subr.mxu0 0.0
        %1996 = vmatpush1.msra.mxu0 0.0
        %1997 = vmatprep.subr.mxu0 0.0
        %1998 = vmatpush1.msra.mxu0 0.0
        %1999 = vmatprep.subr.mxu0 0.0
        %2000 = vmatpush1.msra.mxu0 0.0
        %2001 = vmatprep.subr.mxu0 0.0
        %2002 = vmatpush1.msra.mxu0 0.0
        %2003 = vmatprep.subr.mxu0 %v1896
        %2004 = vmatpush1.msra.mxu0 %v1895
        %2005 = vmatprep.subr.mxu0 %v1888
        %2006 = vmatpush1.msra.mxu0 %v1887
        %2007 = vmatprep.subr.mxu0 0.0
        %2008 = vmatpush2.msra.mxu0 0.0
        %2009 = vmatprep.subr.mxu0 0.0
        %2010 = vmatpush2.msra.mxu0 0.0
        %2011 = vmatprep.subr.mxu0 0.0
        %2012 = vmatpush2.msra.mxu0 0.0
        %2013 = vmatprep.subr.mxu0 0.0
        %2014 = vmatpush2.msra.mxu0 0.0
        %2015 = vmatprep.subr.mxu0 0.0
        %2016 = vmatpush2.msra.mxu0 0.0
        %2017 = vmatprep.subr.mxu0 0.0
        %2018 = vmatpush2.msra.mxu0 0.0
        %2019 = vmatprep.subr.mxu0 0.0
        %2020 = vmatpush2.msra.mxu0 0.0
        %2021 = vmatprep.subr.mxu0 0.0
        %2022 = vmatpush2.msra.mxu0 0.0
        %2023 = vmatprep.subr.mxu0 0.0
        %2024 = vmatpush2.msra.mxu0 0.0
        %2025 = vmatprep.subr.mxu0 0.0
        %2026 = vmatpush2.msra.mxu0 0.0
        %2027 = vmatprep.subr.mxu0 0.0
        %2028 = vmatpush2.msra.mxu0 0.0
        %2029 = vmatprep.subr.mxu0 0.0
        %2030 = vmatpush2.msra.mxu0 0.0
        %2031 = vmatprep.subr.mxu0 0.0
        %2032 = vmatpush2.msra.mxu0 0.0
        %2033 = vmatprep.subr.mxu0 0.0
        %2034 = vmatpush2.msra.mxu0 0.0
        %2035 = vmatprep.subr.mxu0 0.0
        %2036 = vmatpush2.msra.mxu0 0.0
        %2037 = vmatprep.subr.mxu0 0.0
        %2038 = vmatpush2.msra.mxu0 0.0
        %2039 = vmatprep.mubr.f32.mxu0 0.0
        %2040 = vmatmul.mubr.f32.gmra.mxu0 %v1902
        %v2041 = vpop.f32.mrf.mxu0
        %v2042 = vadd.f32 0.0, %v2041
        %v2043 = vpop.f32.mrf.mxu0
        %v2044 = vadd.f32 0.0, %v2043
        %2045 = vdwg.mxu0
        %2046 = vmatprep.subr.mxu0 0.0
        %2047 = vmatpush1.msra.mxu0 0.0
        %2048 = vmatprep.subr.mxu0 0.0
        %2049 = vmatpush1.msra.mxu0 0.0
        %2050 = vmatprep.subr.mxu0 0.0
        %2051 = vmatpush1.msra.mxu0 0.0
        %2052 = vmatprep.subr.mxu0 0.0
        %2053 = vmatpush1.msra.mxu0 0.0
        %2054 = vmatprep.subr.mxu0 0.0
        %2055 = vmatpush1.msra.mxu0 0.0
        %2056 = vmatprep.subr.mxu0 0.0
        %2057 = vmatpush1.msra.mxu0 0.0
        %2058 = vmatprep.subr.mxu0 0.0
        %2059 = vmatpush1.msra.mxu0 0.0
        %2060 = vmatprep.subr.mxu0 0.0
        %2061 = vmatpush1.msra.mxu0 0.0
        %2062 = vmatprep.subr.mxu0 0.0
        %2063 = vmatpush1.msra.mxu0 0.0
        %2064 = vmatprep.subr.mxu0 0.0
        %2065 = vmatpush1.msra.mxu0 0.0
        %2066 = vmatprep.subr.mxu0 0.0
        %2067 = vmatpush1.msra.mxu0 0.0
        %2068 = vmatprep.subr.mxu0 0.0
        %2069 = vmatpush1.msra.mxu0 0.0
        %2070 = vmatprep.subr.mxu0 0.0
        %2071 = vmatpush1.msra.mxu0 0.0
        %2072 = vmatprep.subr.mxu0 0.0
        %2073 = vmatpush1.msra.mxu0 0.0
        %2074 = vmatprep.subr.mxu0 %v1898
        %2075 = vmatpush1.msra.mxu0 %v1897
        %2076 = vmatprep.subr.mxu0 %v1890
        %2077 = vmatpush1.msra.mxu0 %v1889
        %2078 = vmatprep.subr.mxu0 0.0
        %2079 = vmatpush2.msra.mxu0 0.0
        %2080 = vmatprep.subr.mxu0 0.0
        %2081 = vmatpush2.msra.mxu0 0.0
        %2082 = vmatprep.subr.mxu0 0.0
        %2083 = vmatpush2.msra.mxu0 0.0
        %2084 = vmatprep.subr.mxu0 0.0
        %2085 = vmatpush2.msra.mxu0 0.0
        %2086 = vmatprep.subr.mxu0 0.0
        %2087 = vmatpush2.msra.mxu0 0.0
        %2088 = vmatprep.subr.mxu0 0.0
        %2089 = vmatpush2.msra.mxu0 0.0
        %2090 = vmatprep.subr.mxu0 0.0
        %2091 = vmatpush2.msra.mxu0 0.0
        %2092 = vmatprep.subr.mxu0 0.0
        %2093 = vmatpush2.msra.mxu0 0.0
        %2094 = vmatprep.subr.mxu0 0.0
        %2095 = vmatpush2.msra.mxu0 0.0
        %2096 = vmatprep.subr.mxu0 0.0
        %2097 = vmatpush2.msra.mxu0 0.0
        %2098 = vmatprep.subr.mxu0 0.0
        %2099 = vmatpush2.msra.mxu0 0.0
        %2100 = vmatprep.subr.mxu0 0.0
        %2101 = vmatpush2.msra.mxu0 0.0
        %2102 = vmatprep.subr.mxu0 0.0
        %2103 = vmatpush2.msra.mxu0 0.0
        %2104 = vmatprep.subr.mxu0 0.0
        %2105 = vmatpush2.msra.mxu0 0.0
        %2106 = vmatprep.subr.mxu0 0.0
        %2107 = vmatpush2.msra.mxu0 0.0
        %2108 = vmatprep.subr.mxu0 0.0
        %2109 = vmatpush2.msra.mxu0 0.0
        %2110 = vmatprep.mubr.f32.mxu0 0.0
        %2111 = vmatmul.mubr.f32.gmra.mxu0 %v1902
        %v2112 = vpop.f32.mrf.mxu0
        %v2113 = vadd.f32 0.0, %v2112
        %v2114 = vpop.f32.mrf.mxu0
        %v2115 = vadd.f32 0.0, %v2114
        %2116 = vdwg.mxu0
        %2117 = vmatprep.subr.mxu0 0.0
        %2118 = vmatpush1.msra.mxu0 0.0
        %2119 = vmatprep.subr.mxu0 0.0
        %2120 = vmatpush1.msra.mxu0 0.0
        %2121 = vmatprep.subr.mxu0 0.0
        %2122 = vmatpush1.msra.mxu0 0.0
        %2123 = vmatprep.subr.mxu0 0.0
        %2124 = vmatpush1.msra.mxu0 0.0
        %2125 = vmatprep.subr.mxu0 0.0
        %2126 = vmatpush1.msra.mxu0 0.0
        %2127 = vmatprep.subr.mxu0 0.0
        %2128 = vmatpush1.msra.mxu0 0.0
        %2129 = vmatprep.subr.mxu0 0.0
        %2130 = vmatpush1.msra.mxu0 0.0
        %2131 = vmatprep.subr.mxu0 0.0
        %2132 = vmatpush1.msra.mxu0 0.0
        %2133 = vmatprep.subr.mxu0 0.0
        %2134 = vmatpush1.msra.mxu0 0.0
        %2135 = vmatprep.subr.mxu0 0.0
        %2136 = vmatpush1.msra.mxu0 0.0
        %2137 = vmatprep.subr.mxu0 0.0
        %2138 = vmatpush1.msra.mxu0 0.0
        %2139 = vmatprep.subr.mxu0 0.0
        %2140 = vmatpush1.msra.mxu0 0.0
        %2141 = vmatprep.subr.mxu0 0.0
        %2142 = vmatpush1.msra.mxu0 0.0
        %2143 = vmatprep.subr.mxu0 0.0
        %2144 = vmatpush1.msra.mxu0 0.0
        %2145 = vmatprep.subr.mxu0 %v1900
        %2146 = vmatpush1.msra.mxu0 %v1899
        %2147 = vmatprep.subr.mxu0 %v1892
        %2148 = vmatpush1.msra.mxu0 %v1891
        %2149 = vmatprep.subr.mxu0 0.0
        %2150 = vmatpush2.msra.mxu0 0.0
        %2151 = vmatprep.subr.mxu0 0.0
        %2152 = vmatpush2.msra.mxu0 0.0
        %2153 = vmatprep.subr.mxu0 0.0
        %2154 = vmatpush2.msra.mxu0 0.0
        %2155 = vmatprep.subr.mxu0 0.0
        %2156 = vmatpush2.msra.mxu0 0.0
        %2157 = vmatprep.subr.mxu0 0.0
        %2158 = vmatpush2.msra.mxu0 0.0
        %2159 = vmatprep.subr.mxu0 0.0
        %2160 = vmatpush2.msra.mxu0 0.0
        %2161 = vmatprep.subr.mxu0 0.0
        %2162 = vmatpush2.msra.mxu0 0.0
        %2163 = vmatprep.subr.mxu0 0.0
        %2164 = vmatpush2.msra.mxu0 0.0
        %2165 = vmatprep.subr.mxu0 0.0
        %2166 = vmatpush2.msra.mxu0 0.0
        %2167 = vmatprep.subr.mxu0 0.0
        %2168 = vmatpush2.msra.mxu0 0.0
        %2169 = vmatprep.subr.mxu0 0.0
        %2170 = vmatpush2.msra.mxu0 0.0
        %2171 = vmatprep.subr.mxu0 0.0
        %2172 = vmatpush2.msra.mxu0 0.0
        %2173 = vmatprep.subr.mxu0 0.0
        %2174 = vmatpush2.msra.mxu0 0.0
        %2175 = vmatprep.subr.mxu0 0.0
        %2176 = vmatpush2.msra.mxu0 0.0
        %2177 = vmatprep.subr.mxu0 0.0
        %2178 = vmatpush2.msra.mxu0 0.0
        %2179 = vmatprep.subr.mxu0 0.0
        %2180 = vmatpush2.msra.mxu0 0.0
        %2181 = vmatprep.mubr.f32.mxu0 0.0
        %2182 = vmatmul.mubr.f32.gmra.mxu0 %v1902
        %v2183 = vpop.f32.mrf.mxu0
        %v2184 = vadd.f32 0.0, %v2183
        %v2185 = vpop.f32.mrf.mxu0
        %v2186 = vadd.f32 0.0, %v2185
        %2187 = vdwg.mxu0
        %v2188 = vld [vmem:[%s784] sm:$0xff]
        %v2189 = vld [vmem:[%s784 + $0x8] sm:$0xff]
        %v2190 = vld [vmem:[%s784 + $0x10] sm:$0xff]
        %v2191 = vld [vmem:[%s784 + $0x18] sm:$0xff]
        %v2192 = vld [vmem:[%s784 + $0x20] sm:$0xff]
        %v2193 = vld [vmem:[%s784 + $0x28] sm:$0xff]
        %v2194 = vld [vmem:[%s784 + $0x30] sm:$0xff]
        %v2195 = vld [vmem:[%s784 + $0x38] sm:$0xff]
        %v2196 = vld [vmem:[%s784 + $0x40] sm:$0xff]
        %v2197 = vld [vmem:[%s784 + $0x48] sm:$0xff]
        %v2198 = vld [vmem:[%s784 + $0x50] sm:$0xff]
        %v2199 = vld [vmem:[%s784 + $0x58] sm:$0xff]
        %v2200 = vld [vmem:[%s784 + $0x60] sm:$0xff]
        %v2201 = vld [vmem:[%s784 + $0x68] sm:$0xff]
        %v2202 = vld [vmem:[%s784 + $0x70] sm:$0xff]
        %v2203 = vld [vmem:[%s784 + $0x78] sm:$0xff]
        %v2204 = vld [vmem:[%s10] sm:$0xff]
        %v2205 = vld [vmem:[%s10 + $0x8] sm:$0x1]
        %v2206 = vld [vmem:[%s11] sm:$0xff]
        %v2207 = vld [vmem:[%s11 + $0x8] sm:$0x1]
        %2209 = vset.pattern.permute.xlu0 0
        %2210 = vperm.xlu0 %2209, %v2206
        %v2211 = vpop.permute.xlu0 %2210
        %2214 = vset.pattern.permute.xlu0 0
        %2215 = vperm.xlu0 %2214, %v2207
        %v2216 = vpop.permute.xlu0 %2215
        %2218 = vmatprep.subr.mxu0 0.0
        %2219 = vmatpush1.msra.mxu0 %v2203
        %2220 = vmatprep.subr.mxu0 0.0
        %2221 = vmatpush1.msra.mxu0 %v2202
        %2222 = vmatprep.subr.mxu0 0.0
        %2223 = vmatpush1.msra.mxu0 %v2201
        %2224 = vmatprep.subr.mxu0 0.0
        %2225 = vmatpush1.msra.mxu0 %v2200
        %2226 = vmatprep.subr.mxu0 0.0
        %2227 = vmatpush1.msra.mxu0 %v2199
        %2228 = vmatprep.subr.mxu0 0.0
        %2229 = vmatpush1.msra.mxu0 %v2198
        %2230 = vmatprep.subr.mxu0 0.0
        %2231 = vmatpush1.msra.mxu0 %v2197
        %2232 = vmatprep.subr.mxu0 0.0
        %2233 = vmatpush1.msra.mxu0 %v2196
        %2234 = vmatprep.subr.mxu0 0.0
        %2235 = vmatpush1.msra.mxu0 %v2195
        %2236 = vmatprep.subr.mxu0 0.0
        %2237 = vmatpush1.msra.mxu0 %v2194
        %2238 = vmatprep.subr.mxu0 0.0
        %2239 = vmatpush1.msra.mxu0 %v2193
        %2240 = vmatprep.subr.mxu0 0.0
        %2241 = vmatpush1.msra.mxu0 %v2192
        %2242 = vmatprep.subr.mxu0 0.0
        %2243 = vmatpush1.msra.mxu0 %v2191
        %2244 = vmatprep.subr.mxu0 0.0
        %2245 = vmatpush1.msra.mxu0 %v2190
        %2246 = vmatprep.subr.mxu0 0.0
        %2247 = vmatpush1.msra.mxu0 %v2189
        %2248 = vmatprep.subr.mxu0 0.0
        %2249 = vmatpush1.msra.mxu0 %v2188
        %2250 = vmatprep.subr.mxu0 0.0
        %2251 = vmatpush2.msra.mxu0 0.0
        %2252 = vmatprep.subr.mxu0 0.0
        %2253 = vmatpush2.msra.mxu0 0.0
        %2254 = vmatprep.subr.mxu0 0.0
        %2255 = vmatpush2.msra.mxu0 0.0
        %2256 = vmatprep.subr.mxu0 0.0
        %2257 = vmatpush2.msra.mxu0 0.0
        %2258 = vmatprep.subr.mxu0 0.0
        %2259 = vmatpush2.msra.mxu0 0.0
        %2260 = vmatprep.subr.mxu0 0.0
        %2261 = vmatpush2.msra.mxu0 0.0
        %2262 = vmatprep.subr.mxu0 0.0
        %2263 = vmatpush2.msra.mxu0 0.0
        %2264 = vmatprep.subr.mxu0 0.0
        %2265 = vmatpush2.msra.mxu0 0.0
        %2266 = vmatprep.subr.mxu0 0.0
        %2267 = vmatpush2.msra.mxu0 0.0
        %2268 = vmatprep.subr.mxu0 0.0
        %2269 = vmatpush2.msra.mxu0 0.0
        %2270 = vmatprep.subr.mxu0 0.0
        %2271 = vmatpush2.msra.mxu0 0.0
        %2272 = vmatprep.subr.mxu0 0.0
        %2273 = vmatpush2.msra.mxu0 0.0
        %2274 = vmatprep.subr.mxu0 0.0
        %2275 = vmatpush2.msra.mxu0 0.0
        %2276 = vmatprep.subr.mxu0 0.0
        %2277 = vmatpush2.msra.mxu0 0.0
        %2278 = vmatprep.subr.mxu0 0.0
        %2279 = vmatpush2.msra.mxu0 0.0
        %2280 = vmatprep.subr.mxu0 0.0
        %2281 = vmatpush2.msra.mxu0 0.0
        %2282 = vmatprep.mubr.f32.mxu0 0.0
        %2283 = vmatmul.mubr.f32.gmra.mxu0 %v2204
        %v2284 = vpop.f32.mrf.mxu0
        %v2285 = vadd.f32 %v2211, %v2284
        %v2286 = vpop.f32.mrf.mxu0
        %2287 = vmatprep.mubr.f32.mxu0 0.0
        %2288 = vmatmul.mubr.f32.gmra.mxu0 %v2205
        %v2289 = vpop.f32.mrf.mxu0
        %v2290 = vadd.f32 %v2216, %v2289
        %v2291 = vpop.f32.mrf.mxu0
        %2292 = vdwg.mxu0
        %v2293 = vmax.f32 %v2285, 0.0
        %v2294 = vmax.f32 %v2290, 0.0
        %v2295 = vld [vmem:[#allocation10] sm:$0xff]
        %v2296 = vld [vmem:[#allocation10 + $0x8] sm:$0xff]
        %v2297 = vld [vmem:[#allocation10 + $0x10] sm:$0xff]
        %v2298 = vld [vmem:[#allocation10 + $0x18] sm:$0xff]
        %v2303 = vcombine.high %v2295, %v2295
        %v2304 = vcombine.high %v2296, %v2296
        %v2305 = vcombine.high %v2297, %v2297
        %v2306 = vcombine.high %v2298, %v2298
        %vm2307 = vcmask 31744
        %v2309 = vsel %vm2307, %v2293, 0
        %v2312 = vsel %vm2307, %v2294, 0
        %vm2314 = vcmask 1043456
        %v2315 = vsel %vm2314, %v2295, 0
        %v2317 = vsel %vm2314, %v2303, 0
        %v2319 = vsel %vm2314, %v2296, 0
        %v2321 = vsel %vm2314, %v2304, 0
        %v2323 = vsel %vm2314, %v2297, 0
        %v2325 = vsel %vm2314, %v2305, 0
        %v2327 = vsel %vm2314, %v2298, 0
        %v2329 = vsel %vm2314, %v2306, 0
        %2331 = vmatprep.subr.mxu0 0.0
        %2332 = vmatpush1.msra.mxu0 0.0
        %2333 = vmatprep.subr.mxu0 0.0
        %2334 = vmatpush1.msra.mxu0 0.0
        %2335 = vmatprep.subr.mxu0 0.0
        %2336 = vmatpush1.msra.mxu0 0.0
        %2337 = vmatprep.subr.mxu0 0.0
        %2338 = vmatpush1.msra.mxu0 0.0
        %2339 = vmatprep.subr.mxu0 0.0
        %2340 = vmatpush1.msra.mxu0 0.0
        %2341 = vmatprep.subr.mxu0 0.0
        %2342 = vmatpush1.msra.mxu0 0.0
        %2343 = vmatprep.subr.mxu0 0.0
        %2344 = vmatpush1.msra.mxu0 0.0
        %2345 = vmatprep.subr.mxu0 0.0
        %2346 = vmatpush1.msra.mxu0 0.0
        %2347 = vmatprep.subr.mxu0 0.0
        %2348 = vmatpush1.msra.mxu0 0.0
        %2349 = vmatprep.subr.mxu0 0.0
        %2350 = vmatpush1.msra.mxu0 0.0
        %2351 = vmatprep.subr.mxu0 0.0
        %2352 = vmatpush1.msra.mxu0 0.0
        %2353 = vmatprep.subr.mxu0 0.0
        %2354 = vmatpush1.msra.mxu0 0.0
        %2355 = vmatprep.subr.mxu0 0.0
        %2356 = vmatpush1.msra.mxu0 0.0
        %2357 = vmatprep.subr.mxu0 0.0
        %2358 = vmatpush1.msra.mxu0 0.0
        %2359 = vmatprep.subr.mxu0 0.0
        %2360 = vmatpush1.msra.mxu0 0.0
        %2361 = vmatprep.subr.mxu0 %v2317
        %2362 = vmatpush1.msra.mxu0 %v2315
        %2363 = vmatprep.subr.mxu0 0.0
        %2364 = vmatpush2.msra.mxu0 0.0
        %2365 = vmatprep.subr.mxu0 0.0
        %2366 = vmatpush2.msra.mxu0 0.0
        %2367 = vmatprep.subr.mxu0 0.0
        %2368 = vmatpush2.msra.mxu0 0.0
        %2369 = vmatprep.subr.mxu0 0.0
        %2370 = vmatpush2.msra.mxu0 0.0
        %2371 = vmatprep.subr.mxu0 0.0
        %2372 = vmatpush2.msra.mxu0 0.0
        %2373 = vmatprep.subr.mxu0 0.0
        %2374 = vmatpush2.msra.mxu0 0.0
        %2375 = vmatprep.subr.mxu0 0.0
        %2376 = vmatpush2.msra.mxu0 0.0
        %2377 = vmatprep.subr.mxu0 0.0
        %2378 = vmatpush2.msra.mxu0 0.0
        %2379 = vmatprep.subr.mxu0 0.0
        %2380 = vmatpush2.msra.mxu0 0.0
        %2381 = vmatprep.subr.mxu0 0.0
        %2382 = vmatpush2.msra.mxu0 0.0
        %2383 = vmatprep.subr.mxu0 0.0
        %2384 = vmatpush2.msra.mxu0 0.0
        %2385 = vmatprep.subr.mxu0 0.0
        %2386 = vmatpush2.msra.mxu0 0.0
        %2387 = vmatprep.subr.mxu0 0.0
        %2388 = vmatpush2.msra.mxu0 0.0
        %2389 = vmatprep.subr.mxu0 0.0
        %2390 = vmatpush2.msra.mxu0 0.0
        %2391 = vmatprep.subr.mxu0 0.0
        %2392 = vmatpush2.msra.mxu0 0.0
        %2393 = vmatprep.subr.mxu0 0.0
        %2394 = vmatpush2.msra.mxu0 0.0
        %2395 = vmatprep.mubr.f32.mxu0 0.0
        %2396 = vmatmul.mubr.f32.gmra.mxu0 %v2309
        %v2397 = vpop.f32.mrf.mxu0
        %v2398 = vadd.f32 0.0, %v2397
        %v2399 = vpop.f32.mrf.mxu0
        %v2400 = vadd.f32 0.0, %v2399
        %2401 = vmatprep.mubr.f32.mxu0 0.0
        %2402 = vmatmul.mubr.f32.gmra.mxu0 %v2312
        %v2403 = vpop.f32.mrf.mxu0
        %v2404 = vadd.f32 0.0, %v2403
        %v2405 = vpop.f32.mrf.mxu0
        %v2406 = vadd.f32 0.0, %v2405
        %2407 = vdwg.mxu0
        %2408 = vmatprep.subr.mxu0 0.0
        %2409 = vmatpush1.msra.mxu0 0.0
        %2410 = vmatprep.subr.mxu0 0.0
        %2411 = vmatpush1.msra.mxu0 0.0
        %2412 = vmatprep.subr.mxu0 0.0
        %2413 = vmatpush1.msra.mxu0 0.0
        %2414 = vmatprep.subr.mxu0 0.0
        %2415 = vmatpush1.msra.mxu0 0.0
        %2416 = vmatprep.subr.mxu0 0.0
        %2417 = vmatpush1.msra.mxu0 0.0
        %2418 = vmatprep.subr.mxu0 0.0
        %2419 = vmatpush1.msra.mxu0 0.0
        %2420 = vmatprep.subr.mxu0 0.0
        %2421 = vmatpush1.msra.mxu0 0.0
        %2422 = vmatprep.subr.mxu0 0.0
        %2423 = vmatpush1.msra.mxu0 0.0
        %2424 = vmatprep.subr.mxu0 0.0
        %2425 = vmatpush1.msra.mxu0 0.0
        %2426 = vmatprep.subr.mxu0 0.0
        %2427 = vmatpush1.msra.mxu0 0.0
        %2428 = vmatprep.subr.mxu0 0.0
        %2429 = vmatpush1.msra.mxu0 0.0
        %2430 = vmatprep.subr.mxu0 0.0
        %2431 = vmatpush1.msra.mxu0 0.0
        %2432 = vmatprep.subr.mxu0 0.0
        %2433 = vmatpush1.msra.mxu0 0.0
        %2434 = vmatprep.subr.mxu0 0.0
        %2435 = vmatpush1.msra.mxu0 0.0
        %2436 = vmatprep.subr.mxu0 0.0
        %2437 = vmatpush1.msra.mxu0 0.0
        %2438 = vmatprep.subr.mxu0 %v2321
        %2439 = vmatpush1.msra.mxu0 %v2319
        %2440 = vmatprep.subr.mxu0 0.0
        %2441 = vmatpush2.msra.mxu0 0.0
        %2442 = vmatprep.subr.mxu0 0.0
        %2443 = vmatpush2.msra.mxu0 0.0
        %2444 = vmatprep.subr.mxu0 0.0
        %2445 = vmatpush2.msra.mxu0 0.0
        %2446 = vmatprep.subr.mxu0 0.0
        %2447 = vmatpush2.msra.mxu0 0.0
        %2448 = vmatprep.subr.mxu0 0.0
        %2449 = vmatpush2.msra.mxu0 0.0
        %2450 = vmatprep.subr.mxu0 0.0
        %2451 = vmatpush2.msra.mxu0 0.0
        %2452 = vmatprep.subr.mxu0 0.0
        %2453 = vmatpush2.msra.mxu0 0.0
        %2454 = vmatprep.subr.mxu0 0.0
        %2455 = vmatpush2.msra.mxu0 0.0
        %2456 = vmatprep.subr.mxu0 0.0
        %2457 = vmatpush2.msra.mxu0 0.0
        %2458 = vmatprep.subr.mxu0 0.0
        %2459 = vmatpush2.msra.mxu0 0.0
        %2460 = vmatprep.subr.mxu0 0.0
        %2461 = vmatpush2.msra.mxu0 0.0
        %2462 = vmatprep.subr.mxu0 0.0
        %2463 = vmatpush2.msra.mxu0 0.0
        %2464 = vmatprep.subr.mxu0 0.0
        %2465 = vmatpush2.msra.mxu0 0.0
        %2466 = vmatprep.subr.mxu0 0.0
        %2467 = vmatpush2.msra.mxu0 0.0
        %2468 = vmatprep.subr.mxu0 0.0
        %2469 = vmatpush2.msra.mxu0 0.0
        %2470 = vmatprep.subr.mxu0 0.0
        %2471 = vmatpush2.msra.mxu0 0.0
        %2472 = vmatprep.mubr.f32.mxu0 0.0
        %2473 = vmatmul.mubr.f32.gmra.mxu0 %v2309
        %v2474 = vpop.f32.mrf.mxu0
        %v2475 = vadd.f32 0.0, %v2474
        %v2476 = vpop.f32.mrf.mxu0
        %v2477 = vadd.f32 0.0, %v2476
        %2478 = vmatprep.mubr.f32.mxu0 0.0
        %2479 = vmatmul.mubr.f32.gmra.mxu0 %v2312
        %v2480 = vpop.f32.mrf.mxu0
        %v2481 = vadd.f32 0.0, %v2480
        %v2482 = vpop.f32.mrf.mxu0
        %v2483 = vadd.f32 0.0, %v2482
        %2484 = vdwg.mxu0
        %2485 = vmatprep.subr.mxu0 0.0
        %2486 = vmatpush1.msra.mxu0 0.0
        %2487 = vmatprep.subr.mxu0 0.0
        %2488 = vmatpush1.msra.mxu0 0.0
        %2489 = vmatprep.subr.mxu0 0.0
        %2490 = vmatpush1.msra.mxu0 0.0
        %2491 = vmatprep.subr.mxu0 0.0
        %2492 = vmatpush1.msra.mxu0 0.0
        %2493 = vmatprep.subr.mxu0 0.0
        %2494 = vmatpush1.msra.mxu0 0.0
        %2495 = vmatprep.subr.mxu0 0.0
        %2496 = vmatpush1.msra.mxu0 0.0
        %2497 = vmatprep.subr.mxu0 0.0
        %2498 = vmatpush1.msra.mxu0 0.0
        %2499 = vmatprep.subr.mxu0 0.0
        %2500 = vmatpush1.msra.mxu0 0.0
        %2501 = vmatprep.subr.mxu0 0.0
        %2502 = vmatpush1.msra.mxu0 0.0
        %2503 = vmatprep.subr.mxu0 0.0
        %2504 = vmatpush1.msra.mxu0 0.0
        %2505 = vmatprep.subr.mxu0 0.0
        %2506 = vmatpush1.msra.mxu0 0.0
        %2507 = vmatprep.subr.mxu0 0.0
        %2508 = vmatpush1.msra.mxu0 0.0
        %2509 = vmatprep.subr.mxu0 0.0
        %2510 = vmatpush1.msra.mxu0 0.0
        %2511 = vmatprep.subr.mxu0 0.0
        %2512 = vmatpush1.msra.mxu0 0.0
        %2513 = vmatprep.subr.mxu0 0.0
        %2514 = vmatpush1.msra.mxu0 0.0
        %2515 = vmatprep.subr.mxu0 %v2325
        %2516 = vmatpush1.msra.mxu0 %v2323
        %2517 = vmatprep.subr.mxu0 0.0
        %2518 = vmatpush2.msra.mxu0 0.0
        %2519 = vmatprep.subr.mxu0 0.0
        %2520 = vmatpush2.msra.mxu0 0.0
        %2521 = vmatprep.subr.mxu0 0.0
        %2522 = vmatpush2.msra.mxu0 0.0
        %2523 = vmatprep.subr.mxu0 0.0
        %2524 = vmatpush2.msra.mxu0 0.0
        %2525 = vmatprep.subr.mxu0 0.0
        %2526 = vmatpush2.msra.mxu0 0.0
        %2527 = vmatprep.subr.mxu0 0.0
        %2528 = vmatpush2.msra.mxu0 0.0
        %2529 = vmatprep.subr.mxu0 0.0
        %2530 = vmatpush2.msra.mxu0 0.0
        %2531 = vmatprep.subr.mxu0 0.0
        %2532 = vmatpush2.msra.mxu0 0.0
        %2533 = vmatprep.subr.mxu0 0.0
        %2534 = vmatpush2.msra.mxu0 0.0
        %2535 = vmatprep.subr.mxu0 0.0
        %2536 = vmatpush2.msra.mxu0 0.0
        %2537 = vmatprep.subr.mxu0 0.0
        %2538 = vmatpush2.msra.mxu0 0.0
        %2539 = vmatprep.subr.mxu0 0.0
        %2540 = vmatpush2.msra.mxu0 0.0
        %2541 = vmatprep.subr.mxu0 0.0
        %2542 = vmatpush2.msra.mxu0 0.0
        %2543 = vmatprep.subr.mxu0 0.0
        %2544 = vmatpush2.msra.mxu0 0.0
        %2545 = vmatprep.subr.mxu0 0.0
        %2546 = vmatpush2.msra.mxu0 0.0
        %2547 = vmatprep.subr.mxu0 0.0
        %2548 = vmatpush2.msra.mxu0 0.0
        %2549 = vmatprep.mubr.f32.mxu0 0.0
        %2550 = vmatmul.mubr.f32.gmra.mxu0 %v2309
        %v2551 = vpop.f32.mrf.mxu0
        %v2552 = vadd.f32 0.0, %v2551
        %v2553 = vpop.f32.mrf.mxu0
        %v2554 = vadd.f32 0.0, %v2553
        %2555 = vmatprep.mubr.f32.mxu0 0.0
        %2556 = vmatmul.mubr.f32.gmra.mxu0 %v2312
        %v2557 = vpop.f32.mrf.mxu0
        %v2558 = vadd.f32 0.0, %v2557
        %v2559 = vpop.f32.mrf.mxu0
        %v2560 = vadd.f32 0.0, %v2559
        %2561 = vdwg.mxu0
        %2562 = vmatprep.subr.mxu0 0.0
        %2563 = vmatpush1.msra.mxu0 0.0
        %2564 = vmatprep.subr.mxu0 0.0
        %2565 = vmatpush1.msra.mxu0 0.0
        %2566 = vmatprep.subr.mxu0 0.0
        %2567 = vmatpush1.msra.mxu0 0.0
        %2568 = vmatprep.subr.mxu0 0.0
        %2569 = vmatpush1.msra.mxu0 0.0
        %2570 = vmatprep.subr.mxu0 0.0
        %2571 = vmatpush1.msra.mxu0 0.0
        %2572 = vmatprep.subr.mxu0 0.0
        %2573 = vmatpush1.msra.mxu0 0.0
        %2574 = vmatprep.subr.mxu0 0.0
        %2575 = vmatpush1.msra.mxu0 0.0
        %2576 = vmatprep.subr.mxu0 0.0
        %2577 = vmatpush1.msra.mxu0 0.0
        %2578 = vmatprep.subr.mxu0 0.0
        %2579 = vmatpush1.msra.mxu0 0.0
        %2580 = vmatprep.subr.mxu0 0.0
        %2581 = vmatpush1.msra.mxu0 0.0
        %2582 = vmatprep.subr.mxu0 0.0
        %2583 = vmatpush1.msra.mxu0 0.0
        %2584 = vmatprep.subr.mxu0 0.0
        %2585 = vmatpush1.msra.mxu0 0.0
        %2586 = vmatprep.subr.mxu0 0.0
        %2587 = vmatpush1.msra.mxu0 0.0
        %2588 = vmatprep.subr.mxu0 0.0
        %2589 = vmatpush1.msra.mxu0 0.0
        %2590 = vmatprep.subr.mxu0 0.0
        %2591 = vmatpush1.msra.mxu0 0.0
        %2592 = vmatprep.subr.mxu0 %v2329
        %2593 = vmatpush1.msra.mxu0 %v2327
        %2594 = vmatprep.subr.mxu0 0.0
        %2595 = vmatpush2.msra.mxu0 0.0
        %2596 = vmatprep.subr.mxu0 0.0
        %2597 = vmatpush2.msra.mxu0 0.0
        %2598 = vmatprep.subr.mxu0 0.0
        %2599 = vmatpush2.msra.mxu0 0.0
        %2600 = vmatprep.subr.mxu0 0.0
        %2601 = vmatpush2.msra.mxu0 0.0
        %2602 = vmatprep.subr.mxu0 0.0
        %2603 = vmatpush2.msra.mxu0 0.0
        %2604 = vmatprep.subr.mxu0 0.0
        %2605 = vmatpush2.msra.mxu0 0.0
        %2606 = vmatprep.subr.mxu0 0.0
        %2607 = vmatpush2.msra.mxu0 0.0
        %2608 = vmatprep.subr.mxu0 0.0
        %2609 = vmatpush2.msra.mxu0 0.0
        %2610 = vmatprep.subr.mxu0 0.0
        %2611 = vmatpush2.msra.mxu0 0.0
        %2612 = vmatprep.subr.mxu0 0.0
        %2613 = vmatpush2.msra.mxu0 0.0
        %2614 = vmatprep.subr.mxu0 0.0
        %2615 = vmatpush2.msra.mxu0 0.0
        %2616 = vmatprep.subr.mxu0 0.0
        %2617 = vmatpush2.msra.mxu0 0.0
        %2618 = vmatprep.subr.mxu0 0.0
        %2619 = vmatpush2.msra.mxu0 0.0
        %2620 = vmatprep.subr.mxu0 0.0
        %2621 = vmatpush2.msra.mxu0 0.0
        %2622 = vmatprep.subr.mxu0 0.0
        %2623 = vmatpush2.msra.mxu0 0.0
        %2624 = vmatprep.subr.mxu0 0.0
        %2625 = vmatpush2.msra.mxu0 0.0
        %2626 = vmatprep.mubr.f32.mxu0 0.0
        %2627 = vmatmul.mubr.f32.gmra.mxu0 %v2309
        %v2628 = vpop.f32.mrf.mxu0
        %v2629 = vadd.f32 0.0, %v2628
        %v2630 = vpop.f32.mrf.mxu0
        %v2631 = vadd.f32 0.0, %v2630
        %2632 = vmatprep.mubr.f32.mxu0 0.0
        %2633 = vmatmul.mubr.f32.gmra.mxu0 %v2312
        %v2634 = vpop.f32.mrf.mxu0
        %v2635 = vadd.f32 0.0, %v2634
        %v2636 = vpop.f32.mrf.mxu0
        %v2637 = vadd.f32 0.0, %v2636
        %2638 = vdwg.mxu0
        %v2639 = vld [vmem:[%s16] sm:$0xff]
        %v2640 = vld [vmem:[%s16 + $0x8] sm:$0x1]
        %2642 = vset.pattern.permute.xlu0 0
        %2643 = vperm.xlu0 %2642, %v2639
        %v2644 = vpop.permute.xlu0 %2643
        %2647 = vset.pattern.permute.xlu0 0
        %2648 = vperm.xlu0 %2647, %v2640
        %v2649 = vpop.permute.xlu0 %2648
        %v2651 = vmul.f32 %v2398, %v2644
        %v2652 = vmul.f32 %v2400, %v2644
        %v2653 = vmul.f32 %v2475, %v2644
        %v2654 = vmul.f32 %v2477, %v2644
        %v2655 = vmul.f32 %v2552, %v2644
        %v2656 = vmul.f32 %v2554, %v2644
        %v2657 = vmul.f32 %v2629, %v2644
        %v2658 = vmul.f32 %v2631, %v2644
        %v2659 = vmul.f32 %v2404, %v2649
        %v2660 = vmul.f32 %v2406, %v2649
        %v2661 = vmul.f32 %v2481, %v2649
        %v2662 = vmul.f32 %v2483, %v2649
        %v2663 = vmul.f32 %v2558, %v2649
        %v2664 = vmul.f32 %v2560, %v2649
        %v2665 = vmul.f32 %v2635, %v2649
        %v2666 = vmul.f32 %v2637, %v2649
        %v2667 = vld [vmem:[%s17] sm:$0xff]
        %v2668 = vld [vmem:[%s17 + $0x8] sm:$0x1]
        %v2669 = vlaneseq
        %v2670 = vshrl.u32 %v2669, 7
        %v2671 = vsub.s32 0, %v2670
        %v2672 = vrot.slane %v1161, %v2671
        %v2673 = vlaneseq
        %v2674 = vshrl.u32 %v2673, 7
        %v2675 = vsub.s32 0, %v2674
        %v2676 = vrot.slane %v1163, %v2675
        %v2677 = vlaneseq
        %v2678 = vshrl.u32 %v2677, 7
        %v2679 = vsub.s32 0, %v2678
        %v2680 = vrot.slane %v1232, %v2679
        %v2681 = vlaneseq
        %v2682 = vshrl.u32 %v2681, 7
        %v2683 = vsub.s32 0, %v2682
        %v2684 = vrot.slane %v1234, %v2683
        %v2685 = vlaneseq
        %v2686 = vshrl.u32 %v2685, 7
        %v2687 = vsub.s32 0, %v2686
        %v2688 = vrot.slane %v1303, %v2687
        %v2689 = vlaneseq
        %v2690 = vshrl.u32 %v2689, 7
        %v2691 = vsub.s32 0, %v2690
        %v2692 = vrot.slane %v1305, %v2691
        %v2693 = vlaneseq
        %v2694 = vshrl.u32 %v2693, 7
        %v2695 = vsub.s32 0, %v2694
        %v2696 = vrot.slane %v1374, %v2695
        %v2697 = vlaneseq
        %v2698 = vshrl.u32 %v2697, 7
        %v2699 = vsub.s32 0, %v2698
        %v2700 = vrot.slane %v1376, %v2699
        %2702 = vset.pattern.permute.xlu0 0
        %2703 = vperm.xlu0 %2702, %v2667
        %v2704 = vpop.permute.xlu0 %2703
        %2707 = vset.pattern.permute.xlu0 0
        %2708 = vperm.xlu0 %2707, %v2668
        %v2709 = vpop.permute.xlu0 %2708
        %v2711 = vmul.f32 %v2672, %v2704
        %v2712 = vmul.f32 %v2676, %v2704
        %v2713 = vmul.f32 %v2680, %v2704
        %v2714 = vmul.f32 %v2684, %v2704
        %v2715 = vmul.f32 %v2688, %v2704
        %v2716 = vmul.f32 %v2692, %v2704
        %v2717 = vmul.f32 %v2696, %v2704
        %v2718 = vmul.f32 %v2700, %v2704
        %v2719 = vmul.f32 %v2672, %v2709
        %v2720 = vmul.f32 %v2676, %v2709
        %v2721 = vmul.f32 %v2680, %v2709
        %v2722 = vmul.f32 %v2684, %v2709
        %v2723 = vmul.f32 %v2688, %v2709
        %v2724 = vmul.f32 %v2692, %v2709
        %v2725 = vmul.f32 %v2696, %v2709
        %v2726 = vmul.f32 %v2700, %v2709
        %v2727 = vadd.f32 %v2651, %v2711
        %v2728 = vadd.f32 %v2652, %v2712
        %v2729 = vadd.f32 %v2653, %v2713
        %v2730 = vadd.f32 %v2654, %v2714
        %v2731 = vadd.f32 %v2655, %v2715
        %v2732 = vadd.f32 %v2656, %v2716
        %v2733 = vadd.f32 %v2657, %v2717
        %v2734 = vadd.f32 %v2658, %v2718
        %v2735 = vadd.f32 %v2659, %v2719
        %v2736 = vadd.f32 %v2660, %v2720
        %v2737 = vadd.f32 %v2661, %v2721
        %v2738 = vadd.f32 %v2662, %v2722
        %v2739 = vadd.f32 %v2663, %v2723
        %v2740 = vadd.f32 %v2664, %v2724
        %v2741 = vadd.f32 %v2665, %v2725
        %v2742 = vadd.f32 %v2666, %v2726
        %v2743 = vld [vmem:[%s18] sm:$0xff]
        %v2744 = vld [vmem:[%s18 + $0x8] sm:$0x1]
        %v2745 = vlaneseq
        %v2746 = vshrl.u32 %v2745, 7
        %v2747 = vsub.s32 0, %v2746
        %v2748 = vrot.slane %v1570, %v2747
        %v2749 = vlaneseq
        %v2750 = vshrl.u32 %v2749, 7
        %v2751 = vsub.s32 0, %v2750
        %v2752 = vrot.slane %v1572, %v2751
        %v2753 = vlaneseq
        %v2754 = vshrl.u32 %v2753, 7
        %v2755 = vsub.s32 0, %v2754
        %v2756 = vrot.slane %v1641, %v2755
        %v2757 = vlaneseq
        %v2758 = vshrl.u32 %v2757, 7
        %v2759 = vsub.s32 0, %v2758
        %v2760 = vrot.slane %v1643, %v2759
        %v2761 = vlaneseq
        %v2762 = vshrl.u32 %v2761, 7
        %v2763 = vsub.s32 0, %v2762
        %v2764 = vrot.slane %v1712, %v2763
        %v2765 = vlaneseq
        %v2766 = vshrl.u32 %v2765, 7
        %v2767 = vsub.s32 0, %v2766
        %v2768 = vrot.slane %v1714, %v2767
        %v2769 = vlaneseq
        %v2770 = vshrl.u32 %v2769, 7
        %v2771 = vsub.s32 0, %v2770
        %v2772 = vrot.slane %v1783, %v2771
        %v2773 = vlaneseq
        %v2774 = vshrl.u32 %v2773, 7
        %v2775 = vsub.s32 0, %v2774
        %v2776 = vrot.slane %v1785, %v2775
        %2778 = vset.pattern.permute.xlu0 0
        %2779 = vperm.xlu0 %2778, %v2743
        %v2780 = vpop.permute.xlu0 %2779
        %2783 = vset.pattern.permute.xlu0 0
        %2784 = vperm.xlu0 %2783, %v2744
        %v2785 = vpop.permute.xlu0 %2784
        %v2787 = vmul.f32 %v2748, %v2780
        %v2788 = vmul.f32 %v2752, %v2780
        %v2789 = vmul.f32 %v2756, %v2780
        %v2790 = vmul.f32 %v2760, %v2780
        %v2791 = vmul.f32 %v2764, %v2780
        %v2792 = vmul.f32 %v2768, %v2780
        %v2793 = vmul.f32 %v2772, %v2780
        %v2794 = vmul.f32 %v2776, %v2780
        %v2795 = vmul.f32 %v2748, %v2785
        %v2796 = vmul.f32 %v2752, %v2785
        %v2797 = vmul.f32 %v2756, %v2785
        %v2798 = vmul.f32 %v2760, %v2785
        %v2799 = vmul.f32 %v2764, %v2785
        %v2800 = vmul.f32 %v2768, %v2785
        %v2801 = vmul.f32 %v2772, %v2785
        %v2802 = vmul.f32 %v2776, %v2785
        %v2803 = vadd.f32 %v2727, %v2787
        %v2804 = vadd.f32 %v2728, %v2788
        %v2805 = vadd.f32 %v2729, %v2789
        %v2806 = vadd.f32 %v2730, %v2790
        %v2807 = vadd.f32 %v2731, %v2791
        %v2808 = vadd.f32 %v2732, %v2792
        %v2809 = vadd.f32 %v2733, %v2793
        %v2810 = vadd.f32 %v2734, %v2794
        %v2811 = vadd.f32 %v2735, %v2795
        %v2812 = vadd.f32 %v2736, %v2796
        %v2813 = vadd.f32 %v2737, %v2797
        %v2814 = vadd.f32 %v2738, %v2798
        %v2815 = vadd.f32 %v2739, %v2799
        %v2816 = vadd.f32 %v2740, %v2800
        %v2817 = vadd.f32 %v2741, %v2801
        %v2818 = vadd.f32 %v2742, %v2802
        %v2819 = vld [vmem:[%s19] sm:$0xff]
        %v2820 = vld [vmem:[%s19 + $0x8] sm:$0x1]
        %v2821 = vlaneseq
        %v2822 = vshrl.u32 %v2821, 7
        %v2823 = vsub.s32 0, %v2822
        %v2824 = vrot.slane %v1971, %v2823
        %v2825 = vlaneseq
        %v2826 = vshrl.u32 %v2825, 7
        %v2827 = vsub.s32 0, %v2826
        %v2828 = vrot.slane %v1973, %v2827
        %v2829 = vlaneseq
        %v2830 = vshrl.u32 %v2829, 7
        %v2831 = vsub.s32 0, %v2830
        %v2832 = vrot.slane %v2042, %v2831
        %v2833 = vlaneseq
        %v2834 = vshrl.u32 %v2833, 7
        %v2835 = vsub.s32 0, %v2834
        %v2836 = vrot.slane %v2044, %v2835
        %v2837 = vlaneseq
        %v2838 = vshrl.u32 %v2837, 7
        %v2839 = vsub.s32 0, %v2838
        %v2840 = vrot.slane %v2113, %v2839
        %v2841 = vlaneseq
        %v2842 = vshrl.u32 %v2841, 7
        %v2843 = vsub.s32 0, %v2842
        %v2844 = vrot.slane %v2115, %v2843
        %v2845 = vlaneseq
        %v2846 = vshrl.u32 %v2845, 7
        %v2847 = vsub.s32 0, %v2846
        %v2848 = vrot.slane %v2184, %v2847
        %v2849 = vlaneseq
        %v2850 = vshrl.u32 %v2849, 7
        %v2851 = vsub.s32 0, %v2850
        %v2852 = vrot.slane %v2186, %v2851
        %2854 = vset.pattern.permute.xlu0 0
        %2855 = vperm.xlu0 %2854, %v2819
        %v2856 = vpop.permute.xlu0 %2855
        %2859 = vset.pattern.permute.xlu0 0
        %2860 = vperm.xlu0 %2859, %v2820
        %v2861 = vpop.permute.xlu0 %2860
        %v2863 = vmul.f32 %v2824, %v2856
        %v2864 = vmul.f32 %v2828, %v2856
        %v2865 = vmul.f32 %v2832, %v2856
        %v2866 = vmul.f32 %v2836, %v2856
        %v2867 = vmul.f32 %v2840, %v2856
        %v2868 = vmul.f32 %v2844, %v2856
        %v2869 = vmul.f32 %v2848, %v2856
        %v2870 = vmul.f32 %v2852, %v2856
        %v2871 = vmul.f32 %v2824, %v2861
        %v2872 = vmul.f32 %v2828, %v2861
        %v2873 = vmul.f32 %v2832, %v2861
        %v2874 = vmul.f32 %v2836, %v2861
        %v2875 = vmul.f32 %v2840, %v2861
        %v2876 = vmul.f32 %v2844, %v2861
        %v2877 = vmul.f32 %v2848, %v2861
        %v2878 = vmul.f32 %v2852, %v2861
        %v2879 = vadd.f32 %v2803, %v2863
        %v2880 = vadd.f32 %v2804, %v2864
        %v2881 = vadd.f32 %v2805, %v2865
        %v2882 = vadd.f32 %v2806, %v2866
        %v2883 = vadd.f32 %v2807, %v2867
        %v2884 = vadd.f32 %v2808, %v2868
        %v2885 = vadd.f32 %v2809, %v2869
        %v2886 = vadd.f32 %v2810, %v2870
        %v2887 = vadd.f32 %v2811, %v2871
        %v2888 = vadd.f32 %v2812, %v2872
        %v2889 = vadd.f32 %v2813, %v2873
        %v2890 = vadd.f32 %v2814, %v2874
        %v2891 = vadd.f32 %v2815, %v2875
        %v2892 = vadd.f32 %v2816, %v2876
        %v2893 = vadd.f32 %v2817, %v2877
        %v2894 = vadd.f32 %v2818, %v2878
        %v2895 = vld [vmem:[%s20] sm:$0xff]
        %v2896 = vld [vmem:[%s20 + $0x8] sm:$0x1]
        %2898 = vset.pattern.permute.xlu0 0
        %2899 = vperm.xlu0 %2898, %v2895
        %v2900 = vpop.permute.xlu0 %2899
        %2903 = vset.pattern.permute.xlu0 0
        %2904 = vperm.xlu0 %2903, %v2896
        %v2905 = vpop.permute.xlu0 %2904
        %v2907 = vadd.f32 %v2879, %v2900
        %v2908 = vadd.f32 %v2880, %v2900
        %v2909 = vadd.f32 %v2881, %v2900
        %v2910 = vadd.f32 %v2882, %v2900
        %v2911 = vadd.f32 %v2883, %v2900
        %v2912 = vadd.f32 %v2884, %v2900
        %v2913 = vadd.f32 %v2885, %v2900
        %v2914 = vadd.f32 %v2886, %v2900
        %v2915 = vadd.f32 %v2887, %v2905
        %v2916 = vadd.f32 %v2888, %v2905
        %v2917 = vadd.f32 %v2889, %v2905
        %v2918 = vadd.f32 %v2890, %v2905
        %v2919 = vadd.f32 %v2891, %v2905
        %v2920 = vadd.f32 %v2892, %v2905
        %v2921 = vadd.f32 %v2893, %v2905
        %v2922 = vadd.f32 %v2894, %v2905
        %2923 = vst [vmem:[%s789] sm:$0xff] %v2907
        %2924 = vst [vmem:[%s789 + $0x8] sm:$0xff] %v2908
        %2925 = vst [vmem:[%s789 + $0x10] sm:$0xff] %v2909
        %2926 = vst [vmem:[%s789 + $0x18] sm:$0xff] %v2910
        %2927 = vst [vmem:[%s789 + $0x20] sm:$0xff] %v2911
        %2928 = vst [vmem:[%s789 + $0x28] sm:$0xff] %v2912
        %2929 = vst [vmem:[%s789 + $0x30] sm:$0xff] %v2913
        %2930 = vst [vmem:[%s789 + $0x38] sm:$0xff] %v2914
        %2931 = vst [vmem:[%s789 + $0x40] sm:$0x1] %v2915
        %2932 = vst [vmem:[%s789 + $0x48] sm:$0x1] %v2916
        %2933 = vst [vmem:[%s789 + $0x50] sm:$0x1] %v2917
        %2934 = vst [vmem:[%s789 + $0x58] sm:$0x1] %v2918
        %2935 = vst [vmem:[%s789 + $0x60] sm:$0x1] %v2919
        %2936 = vst [vmem:[%s789 + $0x68] sm:$0x1] %v2920
        %2937 = vst [vmem:[%s789 + $0x70] sm:$0x1] %v2921
        %2938 = vst [vmem:[%s789 + $0x78] sm:$0x1] %v2922
        %p2939 = scmp.lt.s32.totalorder %s45, 1
        %s2940 = scalar_select %p2939, %s45, 1
        %s2941 = smul.addr %s2940, 16
        %s2942 = smul.addr %s2941, 8
        %s2943 = scalar_lea.vmem %s21, %s2942
        // Predicated region
        $region121: #{tpu_custom_call.1} parent=103 // pred_check
          %p2944 = pneg %p524
        $region122: #{tpu_custom_call.1} parent=103 // pred_check_branch
          %2946 = sbr.rel (%p2944) target = $region124
        $region123: #{tpu_custom_call.1} parent=103 // pred_region
          _
        $region124: #{tpu_custom_call.1} parent=103 // pred_fallthru
          _
      $region104: #{tpu_custom_call.1} parent=5 // pred_fallthru
        _
      %p2947 = scmp.le.s32.totalorder 2, %s40
      // Predicated region
      $region125: #{tpu_custom_call.1} parent=5 // pred_check
        %p2948 = pneg %p2947
      $region126: #{tpu_custom_call.1} parent=5 // pred_check_branch
        %2950 = sbr.rel (%p2948) target = $region128
      $region127: #{tpu_custom_call.1} parent=5 // pred_region
        %s2951 = ssub.s32 %s40, 2
        // Predicated region
        $region129: #{tpu_custom_call.1} parent=127 // pred_check
          %p2952 = pneg %p530
        $region130: #{tpu_custom_call.1} parent=127 // pred_check_branch
          %2954 = sbr.rel (%p2952) target = $region132
        $region131: #{tpu_custom_call.1} parent=127 // pred_region
          %p2955 = scmp.lt.s32.totalorder %s46, 1
          %s2956 = scalar_select %p2955, %s46, 1
          %s2957 = smul.addr %s2956, 16
          %s2958 = smul.addr %s2957, 8
          %s2959 = scalar_lea.vmem %s21, %s2958
        $region132: #{tpu_custom_call.1} parent=127 // pred_fallthru
          _
      $region128: #{tpu_custom_call.1} parent=5 // pred_fallthru
        _
    $region6: #{tpu_custom_call.1} parent=1 // loop_footer
      %s44 = sadd.s32 1, %s40
    $region7: #{tpu_custom_call.1} parent=1 // loop_footer_branch
      %39 = sbr.rel target = $region3
    $region8: #{tpu_custom_call.1} parent=1 // loop_exit
      _
    %2960 = vsyncpa [#allocation6], 1
    %s2961 = scalar_lea.sflag [#allocation6], 1
    %2962 = vsyncpa %s2961, 1
    %2963 = vsyncpa [#allocation8], 1
    %s2964 = scalar_lea.sflag [#allocation8], 1
    %2965 = vsyncpa %s2964, 1
    %2966 = vsyncpa [#allocation11], 1

</llo_original>
